<compile_context>
chip_gen: v7x
topology: tpu7x:2x2x1
jax: 0.10.0
libtpu: 0.0.40
codegen_flags: <defaults>
</compile_context>

<pallas_src>
import functools

import jax
import jax.numpy as jnp
from jax.experimental import pallas as pl
from jax.experimental.pallas import tpu as pltpu

# ----------------------- module configuration (torch defaults) ---------------
EMBED_DIMS = 8                      # must be divisible by sum(CHANNEL_SPLIT)
DW_DILATION = (1, 2, 3)
CHANNEL_SPLIT = (1, 3, 4)

# column layout of the packed per-channel vector table (shape (8, C, 1))
_B1, _SIGMA, _BG, _BDW0, _B12, _BPW, _B2, _M0 = range(8)


def _split_dims(embed_dims):
    s = sum(CHANNEL_SPLIT)
    d1 = int(CHANNEL_SPLIT[1] / s * embed_dims)
    d2 = int(CHANNEL_SPLIT[2] / s * embed_dims)
    d0 = embed_dims - d1 - d2
    return d0, d1, d2


def _silu(t):
    # Exact SiLU via one EUP tanh: sigmoid(t) = 0.5 * (tanh(t/2) + 1).
    return t * (0.5 * (jnp.tanh(0.5 * t) + 1.0))


# ------------------------------ fused Pallas kernel ---------------------------
def _dw_taps(t, acc, coef_ref, row0, ksize, dil, W, L):
    """acc += depthwise dilated conv of t, using fused (mask*weight) tables."""
    pad = ((ksize - 1) * dil) // 2
    r = row0
    for kh in range(ksize):
        dh = kh * dil - pad
        for kw in range(ksize):
            dw = kw * dil - pad
            off = dh * W + dw
            rolled = t if off == 0 else pltpu.roll(t, (-off) % L, axis=1)
            acc = acc + rolled * coef_ref[r]          # static row index, 1 mul+1 add
            r += 1
    return acc


def _moga_fused_kernel(x_ref, w4_ref, vec_ref, coef_ref, seg_ref, out_ref, *,
                       H, W, FOLD):
    HW = H * W
    L = FOLD * HW
    x = x_ref[...]                                    # (C, L) lane-dense

    # proj_1 (1x1, MXU) -> feature decompose (ElementScale) -> SiLU
    y = jnp.dot(w4_ref[0], x, preferred_element_type=jnp.float32) + vec_ref[_B1]
    inv_hw = 1.0 / HW
    y_d = jnp.zeros_like(y)
    for f in range(FOLD):                             # per-image adaptive_avg_pool2d(.,1)
        seg = seg_ref[f]                              # (1, L) indicator of image f
        mean_f = jnp.sum(y * seg, axis=1, keepdims=True) * inv_hw
        y_d = y_d + mean_f * seg
    y = y + vec_ref[_SIGMA] * (y - y_d)               # ElementScale: x * sigma
    y = _silu(y)

    # gate branch: 1x1 conv -> SiLU
    g = _silu(jnp.dot(w4_ref[1], y, preferred_element_type=jnp.float32)
              + vec_ref[_BG])

    # multi-order depthwise dilated convs (XLU rolls + fused coefficient tables)
    x0 = _dw_taps(y, jnp.zeros_like(y), coef_ref, 0, 5, DW_DILATION[0], W, L) \
         + vec_ref[_BDW0]
    # dw1/dw2 weights & biases are zero-embedded outside their channel slices,
    # so their taps accumulate straight into v (no m1/m2 masks, no x1/x2).
    v = vec_ref[_M0] * x0 + vec_ref[_B12]
    v = _dw_taps(x0, v, coef_ref, 25, 5, DW_DILATION[1], W, L)
    v = _dw_taps(x0, v, coef_ref, 50, 7, DW_DILATION[2], W, L)

    # pointwise conv -> SiLU(g) * SiLU(v) -> proj_2 -> residual
    v = jnp.dot(w4_ref[2], v, preferred_element_type=jnp.float32) + vec_ref[_BPW]
    z = g * _silu(v)
    out = jnp.dot(w4_ref[3], z, preferred_element_type=jnp.float32) + vec_ref[_B2]
    out_ref[...] = out + x


# ------------------------------ host-side packing ------------------------------
def _pack_params(p, C, H, W, FOLD):
    d0, d1, d2 = _split_dims(C)
    HW = H * W

    # 1) the four (C,C) 1x1-conv weights -> one (4,C,C) array
    w4 = jnp.stack([p['w1'], p['wg'], p['wpw'], p['w2']], axis=0)

    # 2) all per-channel column vectors -> one (8,C,1) array
    def embed(v, start, length):
        return jnp.zeros((C,), jnp.float32).at[start:start + length].set(v)

    b12 = embed(p['b_dw1'], d0, d1) + embed(p['b_dw2'], d0 + d1, d2)
    m0 = (jnp.arange(C) < d0).astype(jnp.float32)
    vec = jnp.stack([p['b1'], p['sigma'], p['bg'], p['b_dw0'],
                     b12, p['bpw'], p['b2'], m0], axis=0)[:, :, None]

    # 3) fused per-tap coefficient tables: coef[tap] = border_mask(1,L) * w_tap(C,1)
    pos = jnp.arange(HW, dtype=jnp.int32)
    h_idx, w_idx = pos // W, pos % W

    def branch(w, ksize, dil, c_start, c_len):
        pad = ((ksize - 1) * dil) // 2
        taps = []
        for kh in range(ksize):
            dh = kh * dil - pad
            for kw in range(ksize):
                dw = kw * dil - pad
                ok = ((h_idx + dh >= 0) & (h_idx + dh < H) &
                      (w_idx + dw >= 0) & (w_idx + dw < W)).astype(jnp.float32)
                mask = jnp.tile(ok, FOLD)[None, :]                 # (1, L)
                wt = embed(w[:, kh, kw], c_start, c_len)[:, None]  # (C, 1)
                taps.append(wt * mask)                             # (C, L)
        return jnp.stack(taps, axis=0)                             # (K*K, C, L)

    coef = jnp.concatenate([
        branch(p['w_dw0'], 5, DW_DILATION[0], 0, C),
        branch(p['w_dw1'], 5, DW_DILATION[1], d0, d1),
        branch(p['w_dw2'], 7, DW_DILATION[2], d0 + d1, d2),
    ], axis=0)                                                     # (99, C, L)

    # 4) per-image segment indicators along the folded lane axis
    seg = jnp.zeros((FOLD, 1, FOLD * HW), jnp.float32)
    for f in range(FOLD):
        seg = seg.at[f, 0, f * HW:(f + 1) * HW].set(1.0)

    return w4, vec, coef, seg


def _full_spec(shape):
    n = len(shape)
    return pl.BlockSpec(tuple(shape), lambda b, _n=n: (0,) * _n)


def moga_forward(x, p):
    B, C, H, W = x.shape
    HW = H * W
    FOLD = 2 if B % 2 == 0 else 1            # fold batch pairs into the lane axis
    L = FOLD * HW

    w4, vec, coef, seg = _pack_params(p, C, H, W, FOLD)

    # (B,C,H,W) -> lane-dense (C, B*HW); each grid step processes FOLD images.
    x_fold = jnp.transpose(x, (1, 0, 2, 3)).reshape(C, B * HW)

    blk = pl.BlockSpec((C, L), lambda b: (0, b))
    kern = functools.partial(_moga_fused_kernel, H=H, W=W, FOLD=FOLD)
    out_fold = pl.pallas_call(
        kern,
        grid=(B // FOLD,),
        in_specs=[blk, _full_spec(w4.shape), _full_spec(vec.shape),
                  _full_spec(coef.shape), _full_spec(seg.shape)],
        out_specs=blk,
        out_shape=jax.ShapeDtypeStruct((C, B * HW), jnp.float32),
        compiler_params=pltpu.CompilerParams(
            dimension_semantics=("parallel",)),
    )(x_fold, w4, vec, coef, seg)
    return jnp.transpose(out_fold.reshape(C, B, HW), (1, 0, 2)).reshape(B, C, H, W)


# -------------------------- deterministic parameters --------------------------
def init_params(key, C):
    d0, d1, d2 = _split_dims(C)
    ks = jax.random.split(key, 15)

    def rnd(k, shape, scale=0.25):
        return (scale * jax.random.normal(k, shape)).astype(jnp.float32)

    return dict(
        w1=rnd(ks[0], (C, C)),        b1=rnd(ks[1], (C,), 0.1),
        sigma=rnd(ks[2], (C,), 0.1),  # ElementScale (torch init is 0.0; random to exercise it)
        wg=rnd(ks[3], (C, C)),        bg=rnd(ks[4], (C,), 0.1),
        w_dw0=rnd(ks[5], (C, 5, 5)),  b_dw0=rnd(ks[6], (C,), 0.1),
        w_dw1=rnd(ks[7], (d1, 5, 5)), b_dw1=rnd(ks[8], (d1,), 0.1),
        w_dw2=rnd(ks[9], (d2, 7, 7)), b_dw2=rnd(ks[10], (d2,), 0.1),
        wpw=rnd(ks[11], (C, C)),      bpw=rnd(ks[12], (C,), 0.1),
        w2=rnd(ks[13], (C, C)),       b2=rnd(ks[14], (C,), 0.1),
    )


# ------------------------------ pure-JAX reference -----------------------------
def reference_forward(x, p):
    C = x.shape[1]
    d0, d1, d2 = _split_dims(C)
    hi = jax.lax.Precision.HIGHEST

    def conv1x1(t, w, b):
        return jnp.einsum('oc,nchw->nohw', w, t, precision=hi) + b[None, :, None, None]

    def dw(t, w, b, dil, pad):
        wk = w[:, None, :, :]   # (C,1,K,K) OIHW, groups=C
        y = jax.lax.conv_general_dilated(
            t, wk, window_strides=(1, 1), padding=[(pad, pad), (pad, pad)],
            rhs_dilation=(dil, dil), dimension_numbers=('NCHW', 'OIHW', 'NCHW'),
            feature_group_count=t.shape[1], precision=hi)
        return y + b[None, :, None, None]

    shortcut = x
    y = conv1x1(x, p['w1'], p['b1'])
    y_d = jnp.mean(y, axis=(2, 3), keepdims=True)
    y = y + p['sigma'][None, :, None, None] * (y - y_d)
    y = jax.nn.silu(y)
    g = conv1x1(y, p['wg'], p['bg'])
    x0 = dw(y, p['w_dw0'], p['b_dw0'], DW_DILATION[0], (1 + 4 * DW_DILATION[0]) // 2)
    x1 = dw(x0[:, d0:d0 + d1], p['w_dw1'], p['b_dw1'], DW_DILATION[1],
            (1 + 4 * DW_DILATION[1]) // 2)
    x2 = dw(x0[:, C - d2:], p['w_dw2'], p['b_dw2'], DW_DILATION[2],
            (1 + 6 * DW_DILATION[2]) // 2)
    v = jnp.concatenate([x0[:, :d0], x1, x2], axis=1)
    v = conv1x1(v, p['wpw'], p['bpw'])
    out = conv1x1(jax.nn.silu(g) * jax.nn.silu(v), p['w2'], p['b2'])
    return out + shortcut


# ------------------------------------ main -------------------------------------
if __name__ == "__main__":
    B, C, H, W = 2, EMBED_DIMS, 16, 16
    key = jax.random.PRNGKey(0)
    kx, kp = jax.random.split(key)
    x = jax.random.normal(kx, (B, C, H, W), dtype=jnp.float32)
    params = init_params(kp, C)

    out = jax.jit(moga_forward)(x, params)
    out = jax.block_until_ready(out)

    ref = jax.block_until_ready(reference_forward(x, params))
    assert out.shape == (B, C, H, W), out.shape
    max_err = float(jnp.max(jnp.abs(out - ref)))
    # SiLU is exact now; the only residual error is MXU f32 pass precision of the
    # four tiny 1x1 matmuls (typically ~1e-5).  Bound kept conservative.
    assert max_err < 2e-2, f"mismatch vs reference: max abs err = {max_err}"

    print("KERNEL_OK")
</pallas_src>

<mosaic_0001>
module attributes {stable_mosaic.version = 11 : i64} {
  func.func @_moga_fused_kernel(%arg0: i32, %arg1: memref<8x512xf32, #tpu.memory_space<vmem>>, %arg2: memref<4x8x8xf32, #tpu.memory_space<vmem>>, %arg3: memref<8x8x1xf32, #tpu.memory_space<vmem>>, %arg4: memref<99x8x512xf32, #tpu.memory_space<vmem>>, %arg5: memref<2x1x512xf32, #tpu.memory_space<vmem>>, %arg6: memref<8x512xf32, #tpu.memory_space<vmem>>) attributes {dimension_semantics = [#tpu.dimension_semantics<parallel>], iteration_bounds = array<i64: 1>, scalar_prefetch = 0 : i64, scratch_operands = 0 : i64, tpu.core_type = #tpu.core_type<tc>, window_params = [{transform_indices = @transform_0, window_bounds = array<i64: 8, 512>}, {pipeline_mode = #tpu.pipeline_mode<synchronous>, transform_indices = @transform_1, window_bounds = array<i64: 4, 8, 8>}, {pipeline_mode = #tpu.pipeline_mode<synchronous>, transform_indices = @transform_2, window_bounds = array<i64: 8, 8, 1>}, {pipeline_mode = #tpu.pipeline_mode<synchronous>, transform_indices = @transform_3, window_bounds = array<i64: 99, 8, 512>}, {pipeline_mode = #tpu.pipeline_mode<synchronous>, transform_indices = @transform_4, window_bounds = array<i64: 2, 1, 512>}, {transform_indices = @transform_5, window_bounds = array<i64: 8, 512>}]} {
    %c0 = arith.constant 0 : index
    %c0_0 = arith.constant 0 : index
    %0 = vector.load %arg1[%c0, %c0_0] : memref<8x512xf32, #tpu.memory_space<vmem>>, vector<8x512xf32>
    %c0_1 = arith.constant 0 : index
    %c0_2 = arith.constant 0 : index
    %c0_3 = arith.constant 0 : index
    %1 = vector.load %arg2[%c0_1, %c0_2, %c0_3] : memref<4x8x8xf32, #tpu.memory_space<vmem>>, vector<1x8x8xf32>
    %2 = vector.shape_cast %1 : vector<1x8x8xf32> to vector<8x8xf32>
    %cst = arith.constant dense<0.000000e+00> : vector<8x512xf32>
    %3 = tpu.matmul %2, %0, %cst {dimension_numbers = #tpu.dot_dimension_numbers<[1], [0], [0], [1], [0, 0, 1, 1], [], []>} : vector<8x8xf32>, vector<8x512xf32>, vector<8x512xf32> -> vector<8x512xf32>
    %c0_4 = arith.constant 0 : index
    %c0_5 = arith.constant 0 : index
    %c0_6 = arith.constant 0 : index
    %4 = vector.load %arg3[%c0_4, %c0_5, %c0_6] : memref<8x8x1xf32, #tpu.memory_space<vmem>>, vector<1x8x1xf32>
    %5 = vector.shape_cast %4 : vector<1x8x1xf32> to vector<8x1xf32>
    %6 = vector.broadcast %5 : vector<8x1xf32> to vector<8x512xf32>
    %7 = arith.addf %3, %6 : vector<8x512xf32>
    %cst_7 = arith.constant 0.000000e+00 : f32
    %8 = vector.broadcast %cst_7 : f32 to vector<8x512xf32>
    %c0_8 = arith.constant 0 : index
    %c0_9 = arith.constant 0 : index
    %c0_10 = arith.constant 0 : index
    %9 = vector.load %arg5[%c0_8, %c0_9, %c0_10] : memref<2x1x512xf32, #tpu.memory_space<vmem>>, vector<1x1x512xf32>
    %10 = vector.shape_cast %9 : vector<1x1x512xf32> to vector<1x512xf32>
    %11 = vector.broadcast %10 : vector<1x512xf32> to vector<8x512xf32>
    %12 = arith.mulf %7, %11 : vector<8x512xf32>
    %cst_11 = arith.constant dense<0.000000e+00> : vector<8xf32>
    %13 = vector.multi_reduction <add>, %12, %cst_11 [1] : vector<8x512xf32> to vector<8xf32>
    %14 = vector.shape_cast %13 : vector<8xf32> to vector<8x1xf32>
    %cst_12 = arith.constant 3.906250e-03 : f32
    %15 = vector.broadcast %cst_12 : f32 to vector<8x1xf32>
    %16 = arith.mulf %14, %15 : vector<8x1xf32>
    %17 = vector.broadcast %16 : vector<8x1xf32> to vector<8x512xf32>
    %18 = vector.broadcast %10 : vector<1x512xf32> to vector<8x512xf32>
    %19 = arith.mulf %17, %18 : vector<8x512xf32>
    %20 = arith.addf %8, %19 : vector<8x512xf32>
    %c1 = arith.constant 1 : index
    %c0_13 = arith.constant 0 : index
    %c0_14 = arith.constant 0 : index
    %21 = vector.load %arg5[%c1, %c0_13, %c0_14] : memref<2x1x512xf32, #tpu.memory_space<vmem>>, vector<1x1x512xf32>
    %22 = vector.shape_cast %21 : vector<1x1x512xf32> to vector<1x512xf32>
    %23 = vector.broadcast %22 : vector<1x512xf32> to vector<8x512xf32>
    %24 = arith.mulf %7, %23 : vector<8x512xf32>
    %cst_15 = arith.constant dense<0.000000e+00> : vector<8xf32>
    %25 = vector.multi_reduction <add>, %24, %cst_15 [1] : vector<8x512xf32> to vector<8xf32>
    %26 = vector.shape_cast %25 : vector<8xf32> to vector<8x1xf32>
    %cst_16 = arith.constant 3.906250e-03 : f32
    %27 = vector.broadcast %cst_16 : f32 to vector<8x1xf32>
    %28 = arith.mulf %26, %27 : vector<8x1xf32>
    %29 = vector.broadcast %28 : vector<8x1xf32> to vector<8x512xf32>
    %30 = vector.broadcast %22 : vector<1x512xf32> to vector<8x512xf32>
    %31 = arith.mulf %29, %30 : vector<8x512xf32>
    %32 = arith.addf %20, %31 : vector<8x512xf32>
    %c1_17 = arith.constant 1 : index
    %c0_18 = arith.constant 0 : index
    %c0_19 = arith.constant 0 : index
    %33 = vector.load %arg3[%c1_17, %c0_18, %c0_19] : memref<8x8x1xf32, #tpu.memory_space<vmem>>, vector<1x8x1xf32>
    %34 = vector.shape_cast %33 : vector<1x8x1xf32> to vector<8x1xf32>
    %35 = arith.subf %7, %32 : vector<8x512xf32>
    %36 = vector.broadcast %34 : vector<8x1xf32> to vector<8x512xf32>
    %37 = arith.mulf %36, %35 : vector<8x512xf32>
    %38 = arith.addf %7, %37 : vector<8x512xf32>
    %cst_20 = arith.constant 5.000000e-01 : f32
    %39 = vector.broadcast %cst_20 : f32 to vector<8x512xf32>
    %40 = arith.mulf %39, %38 : vector<8x512xf32>
    %41 = math.tanh %40 : vector<8x512xf32>
    %cst_21 = arith.constant 1.000000e+00 : f32
    %42 = vector.broadcast %cst_21 : f32 to vector<8x512xf32>
    %43 = arith.addf %41, %42 : vector<8x512xf32>
    %cst_22 = arith.constant 5.000000e-01 : f32
    %44 = vector.broadcast %cst_22 : f32 to vector<8x512xf32>
    %45 = arith.mulf %44, %43 : vector<8x512xf32>
    %46 = arith.mulf %38, %45 : vector<8x512xf32>
    %c1_23 = arith.constant 1 : index
    %c0_24 = arith.constant 0 : index
    %c0_25 = arith.constant 0 : index
    %47 = vector.load %arg2[%c1_23, %c0_24, %c0_25] : memref<4x8x8xf32, #tpu.memory_space<vmem>>, vector<1x8x8xf32>
    %48 = vector.shape_cast %47 : vector<1x8x8xf32> to vector<8x8xf32>
    %cst_26 = arith.constant dense<0.000000e+00> : vector<8x512xf32>
    %49 = tpu.matmul %48, %46, %cst_26 {dimension_numbers = #tpu.dot_dimension_numbers<[1], [0], [0], [1], [0, 0, 1, 1], [], []>} : vector<8x8xf32>, vector<8x512xf32>, vector<8x512xf32> -> vector<8x512xf32>
    %c2 = arith.constant 2 : index
    %c0_27 = arith.constant 0 : index
    %c0_28 = arith.constant 0 : index
    %50 = vector.load %arg3[%c2, %c0_27, %c0_28] : memref<8x8x1xf32, #tpu.memory_space<vmem>>, vector<1x8x1xf32>
    %51 = vector.shape_cast %50 : vector<1x8x1xf32> to vector<8x1xf32>
    %52 = vector.broadcast %51 : vector<8x1xf32> to vector<8x512xf32>
    %53 = arith.addf %49, %52 : vector<8x512xf32>
    %cst_29 = arith.constant 5.000000e-01 : f32
    %54 = vector.broadcast %cst_29 : f32 to vector<8x512xf32>
    %55 = arith.mulf %54, %53 : vector<8x512xf32>
    %56 = math.tanh %55 : vector<8x512xf32>
    %cst_30 = arith.constant 1.000000e+00 : f32
    %57 = vector.broadcast %cst_30 : f32 to vector<8x512xf32>
    %58 = arith.addf %56, %57 : vector<8x512xf32>
    %cst_31 = arith.constant 5.000000e-01 : f32
    %59 = vector.broadcast %cst_31 : f32 to vector<8x512xf32>
    %60 = arith.mulf %59, %58 : vector<8x512xf32>
    %61 = arith.mulf %53, %60 : vector<8x512xf32>
    %cst_32 = arith.constant 0.000000e+00 : f32
    %62 = vector.broadcast %cst_32 : f32 to vector<8x512xf32>
    %c34_i32 = arith.constant 34 : i32
    %63 = tpu.dynamic_rotate %46 by %c34_i32 dim 1 : vector<8x512xf32>, i32 -> vector<8x512xf32>
    %c0_33 = arith.constant 0 : index
    %c0_34 = arith.constant 0 : index
    %c0_35 = arith.constant 0 : index
    %64 = vector.load %arg4[%c0_33, %c0_34, %c0_35] : memref<99x8x512xf32, #tpu.memory_space<vmem>>, vector<1x8x512xf32>
    %65 = vector.shape_cast %64 : vector<1x8x512xf32> to vector<8x512xf32>
    %66 = arith.mulf %63, %65 : vector<8x512xf32>
    %67 = arith.addf %62, %66 : vector<8x512xf32>
    %c33_i32 = arith.constant 33 : i32
    %68 = tpu.dynamic_rotate %46 by %c33_i32 dim 1 : vector<8x512xf32>, i32 -> vector<8x512xf32>
    %c1_36 = arith.constant 1 : index
    %c0_37 = arith.constant 0 : index
    %c0_38 = arith.constant 0 : index
    %69 = vector.load %arg4[%c1_36, %c0_37, %c0_38] : memref<99x8x512xf32, #tpu.memory_space<vmem>>, vector<1x8x512xf32>
    %70 = vector.shape_cast %69 : vector<1x8x512xf32> to vector<8x512xf32>
    %71 = arith.mulf %68, %70 : vector<8x512xf32>
    %72 = arith.addf %67, %71 : vector<8x512xf32>
    %c32_i32 = arith.constant 32 : i32
    %73 = tpu.dynamic_rotate %46 by %c32_i32 dim 1 : vector<8x512xf32>, i32 -> vector<8x512xf32>
    %c2_39 = arith.constant 2 : index
    %c0_40 = arith.constant 0 : index
    %c0_41 = arith.constant 0 : index
    %74 = vector.load %arg4[%c2_39, %c0_40, %c0_41] : memref<99x8x512xf32, #tpu.memory_space<vmem>>, vector<1x8x512xf32>
    %75 = vector.shape_cast %74 : vector<1x8x512xf32> to vector<8x512xf32>
    %76 = arith.mulf %73, %75 : vector<8x512xf32>
    %77 = arith.addf %72, %76 : vector<8x512xf32>
    %c31_i32 = arith.constant 31 : i32
    %78 = tpu.dynamic_rotate %46 by %c31_i32 dim 1 : vector<8x512xf32>, i32 -> vector<8x512xf32>
    %c3 = arith.constant 3 : index
    %c0_42 = arith.constant 0 : index
    %c0_43 = arith.constant 0 : index
    %79 = vector.load %arg4[%c3, %c0_42, %c0_43] : memref<99x8x512xf32, #tpu.memory_space<vmem>>, vector<1x8x512xf32>
    %80 = vector.shape_cast %79 : vector<1x8x512xf32> to vector<8x512xf32>
    %81 = arith.mulf %78, %80 : vector<8x512xf32>
    %82 = arith.addf %77, %81 : vector<8x512xf32>
    %c30_i32 = arith.constant 30 : i32
    %83 = tpu.dynamic_rotate %46 by %c30_i32 dim 1 : vector<8x512xf32>, i32 -> vector<8x512xf32>
    %c4 = arith.constant 4 : index
    %c0_44 = arith.constant 0 : index
    %c0_45 = arith.constant 0 : index
    %84 = vector.load %arg4[%c4, %c0_44, %c0_45] : memref<99x8x512xf32, #tpu.memory_space<vmem>>, vector<1x8x512xf32>
    %85 = vector.shape_cast %84 : vector<1x8x512xf32> to vector<8x512xf32>
    %86 = arith.mulf %83, %85 : vector<8x512xf32>
    %87 = arith.addf %82, %86 : vector<8x512xf32>
    %c18_i32 = arith.constant 18 : i32
    %88 = tpu.dynamic_rotate %46 by %c18_i32 dim 1 : vector<8x512xf32>, i32 -> vector<8x512xf32>
    %c5 = arith.constant 5 : index
    %c0_46 = arith.constant 0 : index
    %c0_47 = arith.constant 0 : index
    %89 = vector.load %arg4[%c5, %c0_46, %c0_47] : memref<99x8x512xf32, #tpu.memory_space<vmem>>, vector<1x8x512xf32>
    %90 = vector.shape_cast %89 : vector<1x8x512xf32> to vector<8x512xf32>
    %91 = arith.mulf %88, %90 : vector<8x512xf32>
    %92 = arith.addf %87, %91 : vector<8x512xf32>
    %c17_i32 = arith.constant 17 : i32
    %93 = tpu.dynamic_rotate %46 by %c17_i32 dim 1 : vector<8x512xf32>, i32 -> vector<8x512xf32>
    %c6 = arith.constant 6 : index
    %c0_48 = arith.constant 0 : index
    %c0_49 = arith.constant 0 : index
    %94 = vector.load %arg4[%c6, %c0_48, %c0_49] : memref<99x8x512xf32, #tpu.memory_space<vmem>>, vector<1x8x512xf32>
    %95 = vector.shape_cast %94 : vector<1x8x512xf32> to vector<8x512xf32>
    %96 = arith.mulf %93, %95 : vector<8x512xf32>
    %97 = arith.addf %92, %96 : vector<8x512xf32>
    %c16_i32 = arith.constant 16 : i32
    %98 = tpu.dynamic_rotate %46 by %c16_i32 dim 1 : vector<8x512xf32>, i32 -> vector<8x512xf32>
    %c7 = arith.constant 7 : index
    %c0_50 = arith.constant 0 : index
    %c0_51 = arith.constant 0 : index
    %99 = vector.load %arg4[%c7, %c0_50, %c0_51] : memref<99x8x512xf32, #tpu.memory_space<vmem>>, vector<1x8x512xf32>
    %100 = vector.shape_cast %99 : vector<1x8x512xf32> to vector<8x512xf32>
    %101 = arith.mulf %98, %100 : vector<8x512xf32>
    %102 = arith.addf %97, %101 : vector<8x512xf32>
    %c15_i32 = arith.constant 15 : i32
    %103 = tpu.dynamic_rotate %46 by %c15_i32 dim 1 : vector<8x512xf32>, i32 -> vector<8x512xf32>
    %c8 = arith.constant 8 : index
    %c0_52 = arith.constant 0 : index
    %c0_53 = arith.constant 0 : index
    %104 = vector.load %arg4[%c8, %c0_52, %c0_53] : memref<99x8x512xf32, #tpu.memory_space<vmem>>, vector<1x8x512xf32>
    %105 = vector.shape_cast %104 : vector<1x8x512xf32> to vector<8x512xf32>
    %106 = arith.mulf %103, %105 : vector<8x512xf32>
    %107 = arith.addf %102, %106 : vector<8x512xf32>
    %c14_i32 = arith.constant 14 : i32
    %108 = tpu.dynamic_rotate %46 by %c14_i32 dim 1 : vector<8x512xf32>, i32 -> vector<8x512xf32>
    %c9 = arith.constant 9 : index
    %c0_54 = arith.constant 0 : index
    %c0_55 = arith.constant 0 : index
    %109 = vector.load %arg4[%c9, %c0_54, %c0_55] : memref<99x8x512xf32, #tpu.memory_space<vmem>>, vector<1x8x512xf32>
    %110 = vector.shape_cast %109 : vector<1x8x512xf32> to vector<8x512xf32>
    %111 = arith.mulf %108, %110 : vector<8x512xf32>
    %112 = arith.addf %107, %111 : vector<8x512xf32>
    %c2_i32 = arith.constant 2 : i32
    %113 = tpu.dynamic_rotate %46 by %c2_i32 dim 1 : vector<8x512xf32>, i32 -> vector<8x512xf32>
    %c10 = arith.constant 10 : index
    %c0_56 = arith.constant 0 : index
    %c0_57 = arith.constant 0 : index
    %114 = vector.load %arg4[%c10, %c0_56, %c0_57] : memref<99x8x512xf32, #tpu.memory_space<vmem>>, vector<1x8x512xf32>
    %115 = vector.shape_cast %114 : vector<1x8x512xf32> to vector<8x512xf32>
    %116 = arith.mulf %113, %115 : vector<8x512xf32>
    %117 = arith.addf %112, %116 : vector<8x512xf32>
    %c1_i32 = arith.constant 1 : i32
    %118 = tpu.dynamic_rotate %46 by %c1_i32 dim 1 : vector<8x512xf32>, i32 -> vector<8x512xf32>
    %c11 = arith.constant 11 : index
    %c0_58 = arith.constant 0 : index
    %c0_59 = arith.constant 0 : index
    %119 = vector.load %arg4[%c11, %c0_58, %c0_59] : memref<99x8x512xf32, #tpu.memory_space<vmem>>, vector<1x8x512xf32>
    %120 = vector.shape_cast %119 : vector<1x8x512xf32> to vector<8x512xf32>
    %121 = arith.mulf %118, %120 : vector<8x512xf32>
    %122 = arith.addf %117, %121 : vector<8x512xf32>
    %c12 = arith.constant 12 : index
    %c0_60 = arith.constant 0 : index
    %c0_61 = arith.constant 0 : index
    %123 = vector.load %arg4[%c12, %c0_60, %c0_61] : memref<99x8x512xf32, #tpu.memory_space<vmem>>, vector<1x8x512xf32>
    %124 = vector.shape_cast %123 : vector<1x8x512xf32> to vector<8x512xf32>
    %125 = arith.mulf %46, %124 : vector<8x512xf32>
    %126 = arith.addf %122, %125 : vector<8x512xf32>
    %c511_i32 = arith.constant 511 : i32
    %127 = tpu.dynamic_rotate %46 by %c511_i32 dim 1 : vector<8x512xf32>, i32 -> vector<8x512xf32>
    %c13 = arith.constant 13 : index
    %c0_62 = arith.constant 0 : index
    %c0_63 = arith.constant 0 : index
    %128 = vector.load %arg4[%c13, %c0_62, %c0_63] : memref<99x8x512xf32, #tpu.memory_space<vmem>>, vector<1x8x512xf32>
    %129 = vector.shape_cast %128 : vector<1x8x512xf32> to vector<8x512xf32>
    %130 = arith.mulf %127, %129 : vector<8x512xf32>
    %131 = arith.addf %126, %130 : vector<8x512xf32>
    %c510_i32 = arith.constant 510 : i32
    %132 = tpu.dynamic_rotate %46 by %c510_i32 dim 1 : vector<8x512xf32>, i32 -> vector<8x512xf32>
    %c14 = arith.constant 14 : index
    %c0_64 = arith.constant 0 : index
    %c0_65 = arith.constant 0 : index
    %133 = vector.load %arg4[%c14, %c0_64, %c0_65] : memref<99x8x512xf32, #tpu.memory_space<vmem>>, vector<1x8x512xf32>
    %134 = vector.shape_cast %133 : vector<1x8x512xf32> to vector<8x512xf32>
    %135 = arith.mulf %132, %134 : vector<8x512xf32>
    %136 = arith.addf %131, %135 : vector<8x512xf32>
    %c498_i32 = arith.constant 498 : i32
    %137 = tpu.dynamic_rotate %46 by %c498_i32 dim 1 : vector<8x512xf32>, i32 -> vector<8x512xf32>
    %c15 = arith.constant 15 : index
    %c0_66 = arith.constant 0 : index
    %c0_67 = arith.constant 0 : index
    %138 = vector.load %arg4[%c15, %c0_66, %c0_67] : memref<99x8x512xf32, #tpu.memory_space<vmem>>, vector<1x8x512xf32>
    %139 = vector.shape_cast %138 : vector<1x8x512xf32> to vector<8x512xf32>
    %140 = arith.mulf %137, %139 : vector<8x512xf32>
    %141 = arith.addf %136, %140 : vector<8x512xf32>
    %c497_i32 = arith.constant 497 : i32
    %142 = tpu.dynamic_rotate %46 by %c497_i32 dim 1 : vector<8x512xf32>, i32 -> vector<8x512xf32>
    %c16 = arith.constant 16 : index
    %c0_68 = arith.constant 0 : index
    %c0_69 = arith.constant 0 : index
    %143 = vector.load %arg4[%c16, %c0_68, %c0_69] : memref<99x8x512xf32, #tpu.memory_space<vmem>>, vector<1x8x512xf32>
    %144 = vector.shape_cast %143 : vector<1x8x512xf32> to vector<8x512xf32>
    %145 = arith.mulf %142, %144 : vector<8x512xf32>
    %146 = arith.addf %141, %145 : vector<8x512xf32>
    %c496_i32 = arith.constant 496 : i32
    %147 = tpu.dynamic_rotate %46 by %c496_i32 dim 1 : vector<8x512xf32>, i32 -> vector<8x512xf32>
    %c17 = arith.constant 17 : index
    %c0_70 = arith.constant 0 : index
    %c0_71 = arith.constant 0 : index
    %148 = vector.load %arg4[%c17, %c0_70, %c0_71] : memref<99x8x512xf32, #tpu.memory_space<vmem>>, vector<1x8x512xf32>
    %149 = vector.shape_cast %148 : vector<1x8x512xf32> to vector<8x512xf32>
    %150 = arith.mulf %147, %149 : vector<8x512xf32>
    %151 = arith.addf %146, %150 : vector<8x512xf32>
    %c495_i32 = arith.constant 495 : i32
    %152 = tpu.dynamic_rotate %46 by %c495_i32 dim 1 : vector<8x512xf32>, i32 -> vector<8x512xf32>
    %c18 = arith.constant 18 : index
    %c0_72 = arith.constant 0 : index
    %c0_73 = arith.constant 0 : index
    %153 = vector.load %arg4[%c18, %c0_72, %c0_73] : memref<99x8x512xf32, #tpu.memory_space<vmem>>, vector<1x8x512xf32>
    %154 = vector.shape_cast %153 : vector<1x8x512xf32> to vector<8x512xf32>
    %155 = arith.mulf %152, %154 : vector<8x512xf32>
    %156 = arith.addf %151, %155 : vector<8x512xf32>
    %c494_i32 = arith.constant 494 : i32
    %157 = tpu.dynamic_rotate %46 by %c494_i32 dim 1 : vector<8x512xf32>, i32 -> vector<8x512xf32>
    %c19 = arith.constant 19 : index
    %c0_74 = arith.constant 0 : index
    %c0_75 = arith.constant 0 : index
    %158 = vector.load %arg4[%c19, %c0_74, %c0_75] : memref<99x8x512xf32, #tpu.memory_space<vmem>>, vector<1x8x512xf32>
    %159 = vector.shape_cast %158 : vector<1x8x512xf32> to vector<8x512xf32>
    %160 = arith.mulf %157, %159 : vector<8x512xf32>
    %161 = arith.addf %156, %160 : vector<8x512xf32>
    %c482_i32 = arith.constant 482 : i32
    %162 = tpu.dynamic_rotate %46 by %c482_i32 dim 1 : vector<8x512xf32>, i32 -> vector<8x512xf32>
    %c20 = arith.constant 20 : index
    %c0_76 = arith.constant 0 : index
    %c0_77 = arith.constant 0 : index
    %163 = vector.load %arg4[%c20, %c0_76, %c0_77] : memref<99x8x512xf32, #tpu.memory_space<vmem>>, vector<1x8x512xf32>
    %164 = vector.shape_cast %163 : vector<1x8x512xf32> to vector<8x512xf32>
    %165 = arith.mulf %162, %164 : vector<8x512xf32>
    %166 = arith.addf %161, %165 : vector<8x512xf32>
    %c481_i32 = arith.constant 481 : i32
    %167 = tpu.dynamic_rotate %46 by %c481_i32 dim 1 : vector<8x512xf32>, i32 -> vector<8x512xf32>
    %c21 = arith.constant 21 : index
    %c0_78 = arith.constant 0 : index
    %c0_79 = arith.constant 0 : index
    %168 = vector.load %arg4[%c21, %c0_78, %c0_79] : memref<99x8x512xf32, #tpu.memory_space<vmem>>, vector<1x8x512xf32>
    %169 = vector.shape_cast %168 : vector<1x8x512xf32> to vector<8x512xf32>
    %170 = arith.mulf %167, %169 : vector<8x512xf32>
    %171 = arith.addf %166, %170 : vector<8x512xf32>
    %c480_i32 = arith.constant 480 : i32
    %172 = tpu.dynamic_rotate %46 by %c480_i32 dim 1 : vector<8x512xf32>, i32 -> vector<8x512xf32>
    %c22 = arith.constant 22 : index
    %c0_80 = arith.constant 0 : index
    %c0_81 = arith.constant 0 : index
    %173 = vector.load %arg4[%c22, %c0_80, %c0_81] : memref<99x8x512xf32, #tpu.memory_space<vmem>>, vector<1x8x512xf32>
    %174 = vector.shape_cast %173 : vector<1x8x512xf32> to vector<8x512xf32>
    %175 = arith.mulf %172, %174 : vector<8x512xf32>
    %176 = arith.addf %171, %175 : vector<8x512xf32>
    %c479_i32 = arith.constant 479 : i32
    %177 = tpu.dynamic_rotate %46 by %c479_i32 dim 1 : vector<8x512xf32>, i32 -> vector<8x512xf32>
    %c23 = arith.constant 23 : index
    %c0_82 = arith.constant 0 : index
    %c0_83 = arith.constant 0 : index
    %178 = vector.load %arg4[%c23, %c0_82, %c0_83] : memref<99x8x512xf32, #tpu.memory_space<vmem>>, vector<1x8x512xf32>
    %179 = vector.shape_cast %178 : vector<1x8x512xf32> to vector<8x512xf32>
    %180 = arith.mulf %177, %179 : vector<8x512xf32>
    %181 = arith.addf %176, %180 : vector<8x512xf32>
    %c478_i32 = arith.constant 478 : i32
    %182 = tpu.dynamic_rotate %46 by %c478_i32 dim 1 : vector<8x512xf32>, i32 -> vector<8x512xf32>
    %c24 = arith.constant 24 : index
    %c0_84 = arith.constant 0 : index
    %c0_85 = arith.constant 0 : index
    %183 = vector.load %arg4[%c24, %c0_84, %c0_85] : memref<99x8x512xf32, #tpu.memory_space<vmem>>, vector<1x8x512xf32>
    %184 = vector.shape_cast %183 : vector<1x8x512xf32> to vector<8x512xf32>
    %185 = arith.mulf %182, %184 : vector<8x512xf32>
    %186 = arith.addf %181, %185 : vector<8x512xf32>
    %c3_86 = arith.constant 3 : index
    %c0_87 = arith.constant 0 : index
    %c0_88 = arith.constant 0 : index
    %187 = vector.load %arg3[%c3_86, %c0_87, %c0_88] : memref<8x8x1xf32, #tpu.memory_space<vmem>>, vector<1x8x1xf32>
    %188 = vector.shape_cast %187 : vector<1x8x1xf32> to vector<8x1xf32>
    %189 = vector.broadcast %188 : vector<8x1xf32> to vector<8x512xf32>
    %190 = arith.addf %186, %189 : vector<8x512xf32>
    %c7_89 = arith.constant 7 : index
    %c0_90 = arith.constant 0 : index
    %c0_91 = arith.constant 0 : index
    %191 = vector.load %arg3[%c7_89, %c0_90, %c0_91] : memref<8x8x1xf32, #tpu.memory_space<vmem>>, vector<1x8x1xf32>
    %192 = vector.shape_cast %191 : vector<1x8x1xf32> to vector<8x1xf32>
    %193 = vector.broadcast %192 : vector<8x1xf32> to vector<8x512xf32>
    %194 = arith.mulf %193, %190 : vector<8x512xf32>
    %c4_92 = arith.constant 4 : index
    %c0_93 = arith.constant 0 : index
    %c0_94 = arith.constant 0 : index
    %195 = vector.load %arg3[%c4_92, %c0_93, %c0_94] : memref<8x8x1xf32, #tpu.memory_space<vmem>>, vector<1x8x1xf32>
    %196 = vector.shape_cast %195 : vector<1x8x1xf32> to vector<8x1xf32>
    %197 = vector.broadcast %196 : vector<8x1xf32> to vector<8x512xf32>
    %198 = arith.addf %194, %197 : vector<8x512xf32>
    %c68_i32 = arith.constant 68 : i32
    %199 = tpu.dynamic_rotate %190 by %c68_i32 dim 1 : vector<8x512xf32>, i32 -> vector<8x512xf32>
    %c25 = arith.constant 25 : index
    %c0_95 = arith.constant 0 : index
    %c0_96 = arith.constant 0 : index
    %200 = vector.load %arg4[%c25, %c0_95, %c0_96] : memref<99x8x512xf32, #tpu.memory_space<vmem>>, vector<1x8x512xf32>
    %201 = vector.shape_cast %200 : vector<1x8x512xf32> to vector<8x512xf32>
    %202 = arith.mulf %199, %201 : vector<8x512xf32>
    %203 = arith.addf %198, %202 : vector<8x512xf32>
    %c66_i32 = arith.constant 66 : i32
    %204 = tpu.dynamic_rotate %190 by %c66_i32 dim 1 : vector<8x512xf32>, i32 -> vector<8x512xf32>
    %c26 = arith.constant 26 : index
    %c0_97 = arith.constant 0 : index
    %c0_98 = arith.constant 0 : index
    %205 = vector.load %arg4[%c26, %c0_97, %c0_98] : memref<99x8x512xf32, #tpu.memory_space<vmem>>, vector<1x8x512xf32>
    %206 = vector.shape_cast %205 : vector<1x8x512xf32> to vector<8x512xf32>
    %207 = arith.mulf %204, %206 : vector<8x512xf32>
    %208 = arith.addf %203, %207 : vector<8x512xf32>
    %c64_i32 = arith.constant 64 : i32
    %209 = tpu.dynamic_rotate %190 by %c64_i32 dim 1 : vector<8x512xf32>, i32 -> vector<8x512xf32>
    %c27 = arith.constant 27 : index
    %c0_99 = arith.constant 0 : index
    %c0_100 = arith.constant 0 : index
    %210 = vector.load %arg4[%c27, %c0_99, %c0_100] : memref<99x8x512xf32, #tpu.memory_space<vmem>>, vector<1x8x512xf32>
    %211 = vector.shape_cast %210 : vector<1x8x512xf32> to vector<8x512xf32>
    %212 = arith.mulf %209, %211 : vector<8x512xf32>
    %213 = arith.addf %208, %212 : vector<8x512xf32>
    %c62_i32 = arith.constant 62 : i32
    %214 = tpu.dynamic_rotate %190 by %c62_i32 dim 1 : vector<8x512xf32>, i32 -> vector<8x512xf32>
    %c28 = arith.constant 28 : index
    %c0_101 = arith.constant 0 : index
    %c0_102 = arith.constant 0 : index
    %215 = vector.load %arg4[%c28, %c0_101, %c0_102] : memref<99x8x512xf32, #tpu.memory_space<vmem>>, vector<1x8x512xf32>
    %216 = vector.shape_cast %215 : vector<1x8x512xf32> to vector<8x512xf32>
    %217 = arith.mulf %214, %216 : vector<8x512xf32>
    %218 = arith.addf %213, %217 : vector<8x512xf32>
    %c60_i32 = arith.constant 60 : i32
    %219 = tpu.dynamic_rotate %190 by %c60_i32 dim 1 : vector<8x512xf32>, i32 -> vector<8x512xf32>
    %c29 = arith.constant 29 : index
    %c0_103 = arith.constant 0 : index
    %c0_104 = arith.constant 0 : index
    %220 = vector.load %arg4[%c29, %c0_103, %c0_104] : memref<99x8x512xf32, #tpu.memory_space<vmem>>, vector<1x8x512xf32>
    %221 = vector.shape_cast %220 : vector<1x8x512xf32> to vector<8x512xf32>
    %222 = arith.mulf %219, %221 : vector<8x512xf32>
    %223 = arith.addf %218, %222 : vector<8x512xf32>
    %c36_i32 = arith.constant 36 : i32
    %224 = tpu.dynamic_rotate %190 by %c36_i32 dim 1 : vector<8x512xf32>, i32 -> vector<8x512xf32>
    %c30 = arith.constant 30 : index
    %c0_105 = arith.constant 0 : index
    %c0_106 = arith.constant 0 : index
    %225 = vector.load %arg4[%c30, %c0_105, %c0_106] : memref<99x8x512xf32, #tpu.memory_space<vmem>>, vector<1x8x512xf32>
    %226 = vector.shape_cast %225 : vector<1x8x512xf32> to vector<8x512xf32>
    %227 = arith.mulf %224, %226 : vector<8x512xf32>
    %228 = arith.addf %223, %227 : vector<8x512xf32>
    %c34_i32_107 = arith.constant 34 : i32
    %229 = tpu.dynamic_rotate %190 by %c34_i32_107 dim 1 : vector<8x512xf32>, i32 -> vector<8x512xf32>
    %c31 = arith.constant 31 : index
    %c0_108 = arith.constant 0 : index
    %c0_109 = arith.constant 0 : index
    %230 = vector.load %arg4[%c31, %c0_108, %c0_109] : memref<99x8x512xf32, #tpu.memory_space<vmem>>, vector<1x8x512xf32>
    %231 = vector.shape_cast %230 : vector<1x8x512xf32> to vector<8x512xf32>
    %232 = arith.mulf %229, %231 : vector<8x512xf32>
    %233 = arith.addf %228, %232 : vector<8x512xf32>
    %c32_i32_110 = arith.constant 32 : i32
    %234 = tpu.dynamic_rotate %190 by %c32_i32_110 dim 1 : vector<8x512xf32>, i32 -> vector<8x512xf32>
    %c32 = arith.constant 32 : index
    %c0_111 = arith.constant 0 : index
    %c0_112 = arith.constant 0 : index
    %235 = vector.load %arg4[%c32, %c0_111, %c0_112] : memref<99x8x512xf32, #tpu.memory_space<vmem>>, vector<1x8x512xf32>
    %236 = vector.shape_cast %235 : vector<1x8x512xf32> to vector<8x512xf32>
    %237 = arith.mulf %234, %236 : vector<8x512xf32>
    %238 = arith.addf %233, %237 : vector<8x512xf32>
    %c30_i32_113 = arith.constant 30 : i32
    %239 = tpu.dynamic_rotate %190 by %c30_i32_113 dim 1 : vector<8x512xf32>, i32 -> vector<8x512xf32>
    %c33 = arith.constant 33 : index
    %c0_114 = arith.constant 0 : index
    %c0_115 = arith.constant 0 : index
    %240 = vector.load %arg4[%c33, %c0_114, %c0_115] : memref<99x8x512xf32, #tpu.memory_space<vmem>>, vector<1x8x512xf32>
    %241 = vector.shape_cast %240 : vector<1x8x512xf32> to vector<8x512xf32>
    %242 = arith.mulf %239, %241 : vector<8x512xf32>
    %243 = arith.addf %238, %242 : vector<8x512xf32>
    %c28_i32 = arith.constant 28 : i32
    %244 = tpu.dynamic_rotate %190 by %c28_i32 dim 1 : vector<8x512xf32>, i32 -> vector<8x512xf32>
    %c34 = arith.constant 34 : index
    %c0_116 = arith.constant 0 : index
    %c0_117 = arith.constant 0 : index
    %245 = vector.load %arg4[%c34, %c0_116, %c0_117] : memref<99x8x512xf32, #tpu.memory_space<vmem>>, vector<1x8x512xf32>
    %246 = vector.shape_cast %245 : vector<1x8x512xf32> to vector<8x512xf32>
    %247 = arith.mulf %244, %246 : vector<8x512xf32>
    %248 = arith.addf %243, %247 : vector<8x512xf32>
    %c4_i32 = arith.constant 4 : i32
    %249 = tpu.dynamic_rotate %190 by %c4_i32 dim 1 : vector<8x512xf32>, i32 -> vector<8x512xf32>
    %c35 = arith.constant 35 : index
    %c0_118 = arith.constant 0 : index
    %c0_119 = arith.constant 0 : index
    %250 = vector.load %arg4[%c35, %c0_118, %c0_119] : memref<99x8x512xf32, #tpu.memory_space<vmem>>, vector<1x8x512xf32>
    %251 = vector.shape_cast %250 : vector<1x8x512xf32> to vector<8x512xf32>
    %252 = arith.mulf %249, %251 : vector<8x512xf32>
    %253 = arith.addf %248, %252 : vector<8x512xf32>
    %c2_i32_120 = arith.constant 2 : i32
    %254 = tpu.dynamic_rotate %190 by %c2_i32_120 dim 1 : vector<8x512xf32>, i32 -> vector<8x512xf32>
    %c36 = arith.constant 36 : index
    %c0_121 = arith.constant 0 : index
    %c0_122 = arith.constant 0 : index
    %255 = vector.load %arg4[%c36, %c0_121, %c0_122] : memref<99x8x512xf32, #tpu.memory_space<vmem>>, vector<1x8x512xf32>
    %256 = vector.shape_cast %255 : vector<1x8x512xf32> to vector<8x512xf32>
    %257 = arith.mulf %254, %256 : vector<8x512xf32>
    %258 = arith.addf %253, %257 : vector<8x512xf32>
    %c37 = arith.constant 37 : index
    %c0_123 = arith.constant 0 : index
    %c0_124 = arith.constant 0 : index
    %259 = vector.load %arg4[%c37, %c0_123, %c0_124] : memref<99x8x512xf32, #tpu.memory_space<vmem>>, vector<1x8x512xf32>
    %260 = vector.shape_cast %259 : vector<1x8x512xf32> to vector<8x512xf32>
    %261 = arith.mulf %190, %260 : vector<8x512xf32>
    %262 = arith.addf %258, %261 : vector<8x512xf32>
    %c510_i32_125 = arith.constant 510 : i32
    %263 = tpu.dynamic_rotate %190 by %c510_i32_125 dim 1 : vector<8x512xf32>, i32 -> vector<8x512xf32>
    %c38 = arith.constant 38 : index
    %c0_126 = arith.constant 0 : index
    %c0_127 = arith.constant 0 : index
    %264 = vector.load %arg4[%c38, %c0_126, %c0_127] : memref<99x8x512xf32, #tpu.memory_space<vmem>>, vector<1x8x512xf32>
    %265 = vector.shape_cast %264 : vector<1x8x512xf32> to vector<8x512xf32>
    %266 = arith.mulf %263, %265 : vector<8x512xf32>
    %267 = arith.addf %262, %266 : vector<8x512xf32>
    %c508_i32 = arith.constant 508 : i32
    %268 = tpu.dynamic_rotate %190 by %c508_i32 dim 1 : vector<8x512xf32>, i32 -> vector<8x512xf32>
    %c39 = arith.constant 39 : index
    %c0_128 = arith.constant 0 : index
    %c0_129 = arith.constant 0 : index
    %269 = vector.load %arg4[%c39, %c0_128, %c0_129] : memref<99x8x512xf32, #tpu.memory_space<vmem>>, vector<1x8x512xf32>
    %270 = vector.shape_cast %269 : vector<1x8x512xf32> to vector<8x512xf32>
    %271 = arith.mulf %268, %270 : vector<8x512xf32>
    %272 = arith.addf %267, %271 : vector<8x512xf32>
    %c484_i32 = arith.constant 484 : i32
    %273 = tpu.dynamic_rotate %190 by %c484_i32 dim 1 : vector<8x512xf32>, i32 -> vector<8x512xf32>
    %c40 = arith.constant 40 : index
    %c0_130 = arith.constant 0 : index
    %c0_131 = arith.constant 0 : index
    %274 = vector.load %arg4[%c40, %c0_130, %c0_131] : memref<99x8x512xf32, #tpu.memory_space<vmem>>, vector<1x8x512xf32>
    %275 = vector.shape_cast %274 : vector<1x8x512xf32> to vector<8x512xf32>
    %276 = arith.mulf %273, %275 : vector<8x512xf32>
    %277 = arith.addf %272, %276 : vector<8x512xf32>
    %c482_i32_132 = arith.constant 482 : i32
    %278 = tpu.dynamic_rotate %190 by %c482_i32_132 dim 1 : vector<8x512xf32>, i32 -> vector<8x512xf32>
    %c41 = arith.constant 41 : index
    %c0_133 = arith.constant 0 : index
    %c0_134 = arith.constant 0 : index
    %279 = vector.load %arg4[%c41, %c0_133, %c0_134] : memref<99x8x512xf32, #tpu.memory_space<vmem>>, vector<1x8x512xf32>
    %280 = vector.shape_cast %279 : vector<1x8x512xf32> to vector<8x512xf32>
    %281 = arith.mulf %278, %280 : vector<8x512xf32>
    %282 = arith.addf %277, %281 : vector<8x512xf32>
    %c480_i32_135 = arith.constant 480 : i32
    %283 = tpu.dynamic_rotate %190 by %c480_i32_135 dim 1 : vector<8x512xf32>, i32 -> vector<8x512xf32>
    %c42 = arith.constant 42 : index
    %c0_136 = arith.constant 0 : index
    %c0_137 = arith.constant 0 : index
    %284 = vector.load %arg4[%c42, %c0_136, %c0_137] : memref<99x8x512xf32, #tpu.memory_space<vmem>>, vector<1x8x512xf32>
    %285 = vector.shape_cast %284 : vector<1x8x512xf32> to vector<8x512xf32>
    %286 = arith.mulf %283, %285 : vector<8x512xf32>
    %287 = arith.addf %282, %286 : vector<8x512xf32>
    %c478_i32_138 = arith.constant 478 : i32
    %288 = tpu.dynamic_rotate %190 by %c478_i32_138 dim 1 : vector<8x512xf32>, i32 -> vector<8x512xf32>
    %c43 = arith.constant 43 : index
    %c0_139 = arith.constant 0 : index
    %c0_140 = arith.constant 0 : index
    %289 = vector.load %arg4[%c43, %c0_139, %c0_140] : memref<99x8x512xf32, #tpu.memory_space<vmem>>, vector<1x8x512xf32>
    %290 = vector.shape_cast %289 : vector<1x8x512xf32> to vector<8x512xf32>
    %291 = arith.mulf %288, %290 : vector<8x512xf32>
    %292 = arith.addf %287, %291 : vector<8x512xf32>
    %c476_i32 = arith.constant 476 : i32
    %293 = tpu.dynamic_rotate %190 by %c476_i32 dim 1 : vector<8x512xf32>, i32 -> vector<8x512xf32>
    %c44 = arith.constant 44 : index
    %c0_141 = arith.constant 0 : index
    %c0_142 = arith.constant 0 : index
    %294 = vector.load %arg4[%c44, %c0_141, %c0_142] : memref<99x8x512xf32, #tpu.memory_space<vmem>>, vector<1x8x512xf32>
    %295 = vector.shape_cast %294 : vector<1x8x512xf32> to vector<8x512xf32>
    %296 = arith.mulf %293, %295 : vector<8x512xf32>
    %297 = arith.addf %292, %296 : vector<8x512xf32>
    %c452_i32 = arith.constant 452 : i32
    %298 = tpu.dynamic_rotate %190 by %c452_i32 dim 1 : vector<8x512xf32>, i32 -> vector<8x512xf32>
    %c45 = arith.constant 45 : index
    %c0_143 = arith.constant 0 : index
    %c0_144 = arith.constant 0 : index
    %299 = vector.load %arg4[%c45, %c0_143, %c0_144] : memref<99x8x512xf32, #tpu.memory_space<vmem>>, vector<1x8x512xf32>
    %300 = vector.shape_cast %299 : vector<1x8x512xf32> to vector<8x512xf32>
    %301 = arith.mulf %298, %300 : vector<8x512xf32>
    %302 = arith.addf %297, %301 : vector<8x512xf32>
    %c450_i32 = arith.constant 450 : i32
    %303 = tpu.dynamic_rotate %190 by %c450_i32 dim 1 : vector<8x512xf32>, i32 -> vector<8x512xf32>
    %c46 = arith.constant 46 : index
    %c0_145 = arith.constant 0 : index
    %c0_146 = arith.constant 0 : index
    %304 = vector.load %arg4[%c46, %c0_145, %c0_146] : memref<99x8x512xf32, #tpu.memory_space<vmem>>, vector<1x8x512xf32>
    %305 = vector.shape_cast %304 : vector<1x8x512xf32> to vector<8x512xf32>
    %306 = arith.mulf %303, %305 : vector<8x512xf32>
    %307 = arith.addf %302, %306 : vector<8x512xf32>
    %c448_i32 = arith.constant 448 : i32
    %308 = tpu.dynamic_rotate %190 by %c448_i32 dim 1 : vector<8x512xf32>, i32 -> vector<8x512xf32>
    %c47 = arith.constant 47 : index
    %c0_147 = arith.constant 0 : index
    %c0_148 = arith.constant 0 : index
    %309 = vector.load %arg4[%c47, %c0_147, %c0_148] : memref<99x8x512xf32, #tpu.memory_space<vmem>>, vector<1x8x512xf32>
    %310 = vector.shape_cast %309 : vector<1x8x512xf32> to vector<8x512xf32>
    %311 = arith.mulf %308, %310 : vector<8x512xf32>
    %312 = arith.addf %307, %311 : vector<8x512xf32>
    %c446_i32 = arith.constant 446 : i32
    %313 = tpu.dynamic_rotate %190 by %c446_i32 dim 1 : vector<8x512xf32>, i32 -> vector<8x512xf32>
    %c48 = arith.constant 48 : index
    %c0_149 = arith.constant 0 : index
    %c0_150 = arith.constant 0 : index
    %314 = vector.load %arg4[%c48, %c0_149, %c0_150] : memref<99x8x512xf32, #tpu.memory_space<vmem>>, vector<1x8x512xf32>
    %315 = vector.shape_cast %314 : vector<1x8x512xf32> to vector<8x512xf32>
    %316 = arith.mulf %313, %315 : vector<8x512xf32>
    %317 = arith.addf %312, %316 : vector<8x512xf32>
    %c444_i32 = arith.constant 444 : i32
    %318 = tpu.dynamic_rotate %190 by %c444_i32 dim 1 : vector<8x512xf32>, i32 -> vector<8x512xf32>
    %c49 = arith.constant 49 : index
    %c0_151 = arith.constant 0 : index
    %c0_152 = arith.constant 0 : index
    %319 = vector.load %arg4[%c49, %c0_151, %c0_152] : memref<99x8x512xf32, #tpu.memory_space<vmem>>, vector<1x8x512xf32>
    %320 = vector.shape_cast %319 : vector<1x8x512xf32> to vector<8x512xf32>
    %321 = arith.mulf %318, %320 : vector<8x512xf32>
    %322 = arith.addf %317, %321 : vector<8x512xf32>
    %c153_i32 = arith.constant 153 : i32
    %323 = tpu.dynamic_rotate %190 by %c153_i32 dim 1 : vector<8x512xf32>, i32 -> vector<8x512xf32>
    %c50 = arith.constant 50 : index
    %c0_153 = arith.constant 0 : index
    %c0_154 = arith.constant 0 : index
    %324 = vector.load %arg4[%c50, %c0_153, %c0_154] : memref<99x8x512xf32, #tpu.memory_space<vmem>>, vector<1x8x512xf32>
    %325 = vector.shape_cast %324 : vector<1x8x512xf32> to vector<8x512xf32>
    %326 = arith.mulf %323, %325 : vector<8x512xf32>
    %327 = arith.addf %322, %326 : vector<8x512xf32>
    %c150_i32 = arith.constant 150 : i32
    %328 = tpu.dynamic_rotate %190 by %c150_i32 dim 1 : vector<8x512xf32>, i32 -> vector<8x512xf32>
    %c51 = arith.constant 51 : index
    %c0_155 = arith.constant 0 : index
    %c0_156 = arith.constant 0 : index
    %329 = vector.load %arg4[%c51, %c0_155, %c0_156] : memref<99x8x512xf32, #tpu.memory_space<vmem>>, vector<1x8x512xf32>
    %330 = vector.shape_cast %329 : vector<1x8x512xf32> to vector<8x512xf32>
    %331 = arith.mulf %328, %330 : vector<8x512xf32>
    %332 = arith.addf %327, %331 : vector<8x512xf32>
    %c147_i32 = arith.constant 147 : i32
    %333 = tpu.dynamic_rotate %190 by %c147_i32 dim 1 : vector<8x512xf32>, i32 -> vector<8x512xf32>
    %c52 = arith.constant 52 : index
    %c0_157 = arith.constant 0 : index
    %c0_158 = arith.constant 0 : index
    %334 = vector.load %arg4[%c52, %c0_157, %c0_158] : memref<99x8x512xf32, #tpu.memory_space<vmem>>, vector<1x8x512xf32>
    %335 = vector.shape_cast %334 : vector<1x8x512xf32> to vector<8x512xf32>
    %336 = arith.mulf %333, %335 : vector<8x512xf32>
    %337 = arith.addf %332, %336 : vector<8x512xf32>
    %c144_i32 = arith.constant 144 : i32
    %338 = tpu.dynamic_rotate %190 by %c144_i32 dim 1 : vector<8x512xf32>, i32 -> vector<8x512xf32>
    %c53 = arith.constant 53 : index
    %c0_159 = arith.constant 0 : index
    %c0_160 = arith.constant 0 : index
    %339 = vector.load %arg4[%c53, %c0_159, %c0_160] : memref<99x8x512xf32, #tpu.memory_space<vmem>>, vector<1x8x512xf32>
    %340 = vector.shape_cast %339 : vector<1x8x512xf32> to vector<8x512xf32>
    %341 = arith.mulf %338, %340 : vector<8x512xf32>
    %342 = arith.addf %337, %341 : vector<8x512xf32>
    %c141_i32 = arith.constant 141 : i32
    %343 = tpu.dynamic_rotate %190 by %c141_i32 dim 1 : vector<8x512xf32>, i32 -> vector<8x512xf32>
    %c54 = arith.constant 54 : index
    %c0_161 = arith.constant 0 : index
    %c0_162 = arith.constant 0 : index
    %344 = vector.load %arg4[%c54, %c0_161, %c0_162] : memref<99x8x512xf32, #tpu.memory_space<vmem>>, vector<1x8x512xf32>
    %345 = vector.shape_cast %344 : vector<1x8x512xf32> to vector<8x512xf32>
    %346 = arith.mulf %343, %345 : vector<8x512xf32>
    %347 = arith.addf %342, %346 : vector<8x512xf32>
    %c138_i32 = arith.constant 138 : i32
    %348 = tpu.dynamic_rotate %190 by %c138_i32 dim 1 : vector<8x512xf32>, i32 -> vector<8x512xf32>
    %c55 = arith.constant 55 : index
    %c0_163 = arith.constant 0 : index
    %c0_164 = arith.constant 0 : index
    %349 = vector.load %arg4[%c55, %c0_163, %c0_164] : memref<99x8x512xf32, #tpu.memory_space<vmem>>, vector<1x8x512xf32>
    %350 = vector.shape_cast %349 : vector<1x8x512xf32> to vector<8x512xf32>
    %351 = arith.mulf %348, %350 : vector<8x512xf32>
    %352 = arith.addf %347, %351 : vector<8x512xf32>
    %c135_i32 = arith.constant 135 : i32
    %353 = tpu.dynamic_rotate %190 by %c135_i32 dim 1 : vector<8x512xf32>, i32 -> vector<8x512xf32>
    %c56 = arith.constant 56 : index
    %c0_165 = arith.constant 0 : index
    %c0_166 = arith.constant 0 : index
    %354 = vector.load %arg4[%c56, %c0_165, %c0_166] : memref<99x8x512xf32, #tpu.memory_space<vmem>>, vector<1x8x512xf32>
    %355 = vector.shape_cast %354 : vector<1x8x512xf32> to vector<8x512xf32>
    %356 = arith.mulf %353, %355 : vector<8x512xf32>
    %357 = arith.addf %352, %356 : vector<8x512xf32>
    %c105_i32 = arith.constant 105 : i32
    %358 = tpu.dynamic_rotate %190 by %c105_i32 dim 1 : vector<8x512xf32>, i32 -> vector<8x512xf32>
    %c57 = arith.constant 57 : index
    %c0_167 = arith.constant 0 : index
    %c0_168 = arith.constant 0 : index
    %359 = vector.load %arg4[%c57, %c0_167, %c0_168] : memref<99x8x512xf32, #tpu.memory_space<vmem>>, vector<1x8x512xf32>
    %360 = vector.shape_cast %359 : vector<1x8x512xf32> to vector<8x512xf32>
    %361 = arith.mulf %358, %360 : vector<8x512xf32>
    %362 = arith.addf %357, %361 : vector<8x512xf32>
    %c102_i32 = arith.constant 102 : i32
    %363 = tpu.dynamic_rotate %190 by %c102_i32 dim 1 : vector<8x512xf32>, i32 -> vector<8x512xf32>
    %c58 = arith.constant 58 : index
    %c0_169 = arith.constant 0 : index
    %c0_170 = arith.constant 0 : index
    %364 = vector.load %arg4[%c58, %c0_169, %c0_170] : memref<99x8x512xf32, #tpu.memory_space<vmem>>, vector<1x8x512xf32>
    %365 = vector.shape_cast %364 : vector<1x8x512xf32> to vector<8x512xf32>
    %366 = arith.mulf %363, %365 : vector<8x512xf32>
    %367 = arith.addf %362, %366 : vector<8x512xf32>
    %c99_i32 = arith.constant 99 : i32
    %368 = tpu.dynamic_rotate %190 by %c99_i32 dim 1 : vector<8x512xf32>, i32 -> vector<8x512xf32>
    %c59 = arith.constant 59 : index
    %c0_171 = arith.constant 0 : index
    %c0_172 = arith.constant 0 : index
    %369 = vector.load %arg4[%c59, %c0_171, %c0_172] : memref<99x8x512xf32, #tpu.memory_space<vmem>>, vector<1x8x512xf32>
    %370 = vector.shape_cast %369 : vector<1x8x512xf32> to vector<8x512xf32>
    %371 = arith.mulf %368, %370 : vector<8x512xf32>
    %372 = arith.addf %367, %371 : vector<8x512xf32>
    %c96_i32 = arith.constant 96 : i32
    %373 = tpu.dynamic_rotate %190 by %c96_i32 dim 1 : vector<8x512xf32>, i32 -> vector<8x512xf32>
    %c60 = arith.constant 60 : index
    %c0_173 = arith.constant 0 : index
    %c0_174 = arith.constant 0 : index
    %374 = vector.load %arg4[%c60, %c0_173, %c0_174] : memref<99x8x512xf32, #tpu.memory_space<vmem>>, vector<1x8x512xf32>
    %375 = vector.shape_cast %374 : vector<1x8x512xf32> to vector<8x512xf32>
    %376 = arith.mulf %373, %375 : vector<8x512xf32>
    %377 = arith.addf %372, %376 : vector<8x512xf32>
    %c93_i32 = arith.constant 93 : i32
    %378 = tpu.dynamic_rotate %190 by %c93_i32 dim 1 : vector<8x512xf32>, i32 -> vector<8x512xf32>
    %c61 = arith.constant 61 : index
    %c0_175 = arith.constant 0 : index
    %c0_176 = arith.constant 0 : index
    %379 = vector.load %arg4[%c61, %c0_175, %c0_176] : memref<99x8x512xf32, #tpu.memory_space<vmem>>, vector<1x8x512xf32>
    %380 = vector.shape_cast %379 : vector<1x8x512xf32> to vector<8x512xf32>
    %381 = arith.mulf %378, %380 : vector<8x512xf32>
    %382 = arith.addf %377, %381 : vector<8x512xf32>
    %c90_i32 = arith.constant 90 : i32
    %383 = tpu.dynamic_rotate %190 by %c90_i32 dim 1 : vector<8x512xf32>, i32 -> vector<8x512xf32>
    %c62 = arith.constant 62 : index
    %c0_177 = arith.constant 0 : index
    %c0_178 = arith.constant 0 : index
    %384 = vector.load %arg4[%c62, %c0_177, %c0_178] : memref<99x8x512xf32, #tpu.memory_space<vmem>>, vector<1x8x512xf32>
    %385 = vector.shape_cast %384 : vector<1x8x512xf32> to vector<8x512xf32>
    %386 = arith.mulf %383, %385 : vector<8x512xf32>
    %387 = arith.addf %382, %386 : vector<8x512xf32>
    %c87_i32 = arith.constant 87 : i32
    %388 = tpu.dynamic_rotate %190 by %c87_i32 dim 1 : vector<8x512xf32>, i32 -> vector<8x512xf32>
    %c63 = arith.constant 63 : index
    %c0_179 = arith.constant 0 : index
    %c0_180 = arith.constant 0 : index
    %389 = vector.load %arg4[%c63, %c0_179, %c0_180] : memref<99x8x512xf32, #tpu.memory_space<vmem>>, vector<1x8x512xf32>
    %390 = vector.shape_cast %389 : vector<1x8x512xf32> to vector<8x512xf32>
    %391 = arith.mulf %388, %390 : vector<8x512xf32>
    %392 = arith.addf %387, %391 : vector<8x512xf32>
    %c57_i32 = arith.constant 57 : i32
    %393 = tpu.dynamic_rotate %190 by %c57_i32 dim 1 : vector<8x512xf32>, i32 -> vector<8x512xf32>
    %c64 = arith.constant 64 : index
    %c0_181 = arith.constant 0 : index
    %c0_182 = arith.constant 0 : index
    %394 = vector.load %arg4[%c64, %c0_181, %c0_182] : memref<99x8x512xf32, #tpu.memory_space<vmem>>, vector<1x8x512xf32>
    %395 = vector.shape_cast %394 : vector<1x8x512xf32> to vector<8x512xf32>
    %396 = arith.mulf %393, %395 : vector<8x512xf32>
    %397 = arith.addf %392, %396 : vector<8x512xf32>
    %c54_i32 = arith.constant 54 : i32
    %398 = tpu.dynamic_rotate %190 by %c54_i32 dim 1 : vector<8x512xf32>, i32 -> vector<8x512xf32>
    %c65 = arith.constant 65 : index
    %c0_183 = arith.constant 0 : index
    %c0_184 = arith.constant 0 : index
    %399 = vector.load %arg4[%c65, %c0_183, %c0_184] : memref<99x8x512xf32, #tpu.memory_space<vmem>>, vector<1x8x512xf32>
    %400 = vector.shape_cast %399 : vector<1x8x512xf32> to vector<8x512xf32>
    %401 = arith.mulf %398, %400 : vector<8x512xf32>
    %402 = arith.addf %397, %401 : vector<8x512xf32>
    %c51_i32 = arith.constant 51 : i32
    %403 = tpu.dynamic_rotate %190 by %c51_i32 dim 1 : vector<8x512xf32>, i32 -> vector<8x512xf32>
    %c66 = arith.constant 66 : index
    %c0_185 = arith.constant 0 : index
    %c0_186 = arith.constant 0 : index
    %404 = vector.load %arg4[%c66, %c0_185, %c0_186] : memref<99x8x512xf32, #tpu.memory_space<vmem>>, vector<1x8x512xf32>
    %405 = vector.shape_cast %404 : vector<1x8x512xf32> to vector<8x512xf32>
    %406 = arith.mulf %403, %405 : vector<8x512xf32>
    %407 = arith.addf %402, %406 : vector<8x512xf32>
    %c48_i32 = arith.constant 48 : i32
    %408 = tpu.dynamic_rotate %190 by %c48_i32 dim 1 : vector<8x512xf32>, i32 -> vector<8x512xf32>
    %c67 = arith.constant 67 : index
    %c0_187 = arith.constant 0 : index
    %c0_188 = arith.constant 0 : index
    %409 = vector.load %arg4[%c67, %c0_187, %c0_188] : memref<99x8x512xf32, #tpu.memory_space<vmem>>, vector<1x8x512xf32>
    %410 = vector.shape_cast %409 : vector<1x8x512xf32> to vector<8x512xf32>
    %411 = arith.mulf %408, %410 : vector<8x512xf32>
    %412 = arith.addf %407, %411 : vector<8x512xf32>
    %c45_i32 = arith.constant 45 : i32
    %413 = tpu.dynamic_rotate %190 by %c45_i32 dim 1 : vector<8x512xf32>, i32 -> vector<8x512xf32>
    %c68 = arith.constant 68 : index
    %c0_189 = arith.constant 0 : index
    %c0_190 = arith.constant 0 : index
    %414 = vector.load %arg4[%c68, %c0_189, %c0_190] : memref<99x8x512xf32, #tpu.memory_space<vmem>>, vector<1x8x512xf32>
    %415 = vector.shape_cast %414 : vector<1x8x512xf32> to vector<8x512xf32>
    %416 = arith.mulf %413, %415 : vector<8x512xf32>
    %417 = arith.addf %412, %416 : vector<8x512xf32>
    %c42_i32 = arith.constant 42 : i32
    %418 = tpu.dynamic_rotate %190 by %c42_i32 dim 1 : vector<8x512xf32>, i32 -> vector<8x512xf32>
    %c69 = arith.constant 69 : index
    %c0_191 = arith.constant 0 : index
    %c0_192 = arith.constant 0 : index
    %419 = vector.load %arg4[%c69, %c0_191, %c0_192] : memref<99x8x512xf32, #tpu.memory_space<vmem>>, vector<1x8x512xf32>
    %420 = vector.shape_cast %419 : vector<1x8x512xf32> to vector<8x512xf32>
    %421 = arith.mulf %418, %420 : vector<8x512xf32>
    %422 = arith.addf %417, %421 : vector<8x512xf32>
    %c39_i32 = arith.constant 39 : i32
    %423 = tpu.dynamic_rotate %190 by %c39_i32 dim 1 : vector<8x512xf32>, i32 -> vector<8x512xf32>
    %c70 = arith.constant 70 : index
    %c0_193 = arith.constant 0 : index
    %c0_194 = arith.constant 0 : index
    %424 = vector.load %arg4[%c70, %c0_193, %c0_194] : memref<99x8x512xf32, #tpu.memory_space<vmem>>, vector<1x8x512xf32>
    %425 = vector.shape_cast %424 : vector<1x8x512xf32> to vector<8x512xf32>
    %426 = arith.mulf %423, %425 : vector<8x512xf32>
    %427 = arith.addf %422, %426 : vector<8x512xf32>
    %c9_i32 = arith.constant 9 : i32
    %428 = tpu.dynamic_rotate %190 by %c9_i32 dim 1 : vector<8x512xf32>, i32 -> vector<8x512xf32>
    %c71 = arith.constant 71 : index
    %c0_195 = arith.constant 0 : index
    %c0_196 = arith.constant 0 : index
    %429 = vector.load %arg4[%c71, %c0_195, %c0_196] : memref<99x8x512xf32, #tpu.memory_space<vmem>>, vector<1x8x512xf32>
    %430 = vector.shape_cast %429 : vector<1x8x512xf32> to vector<8x512xf32>
    %431 = arith.mulf %428, %430 : vector<8x512xf32>
    %432 = arith.addf %427, %431 : vector<8x512xf32>
    %c6_i32 = arith.constant 6 : i32
    %433 = tpu.dynamic_rotate %190 by %c6_i32 dim 1 : vector<8x512xf32>, i32 -> vector<8x512xf32>
    %c72 = arith.constant 72 : index
    %c0_197 = arith.constant 0 : index
    %c0_198 = arith.constant 0 : index
    %434 = vector.load %arg4[%c72, %c0_197, %c0_198] : memref<99x8x512xf32, #tpu.memory_space<vmem>>, vector<1x8x512xf32>
    %435 = vector.shape_cast %434 : vector<1x8x512xf32> to vector<8x512xf32>
    %436 = arith.mulf %433, %435 : vector<8x512xf32>
    %437 = arith.addf %432, %436 : vector<8x512xf32>
    %c3_i32 = arith.constant 3 : i32
    %438 = tpu.dynamic_rotate %190 by %c3_i32 dim 1 : vector<8x512xf32>, i32 -> vector<8x512xf32>
    %c73 = arith.constant 73 : index
    %c0_199 = arith.constant 0 : index
    %c0_200 = arith.constant 0 : index
    %439 = vector.load %arg4[%c73, %c0_199, %c0_200] : memref<99x8x512xf32, #tpu.memory_space<vmem>>, vector<1x8x512xf32>
    %440 = vector.shape_cast %439 : vector<1x8x512xf32> to vector<8x512xf32>
    %441 = arith.mulf %438, %440 : vector<8x512xf32>
    %442 = arith.addf %437, %441 : vector<8x512xf32>
    %c74 = arith.constant 74 : index
    %c0_201 = arith.constant 0 : index
    %c0_202 = arith.constant 0 : index
    %443 = vector.load %arg4[%c74, %c0_201, %c0_202] : memref<99x8x512xf32, #tpu.memory_space<vmem>>, vector<1x8x512xf32>
    %444 = vector.shape_cast %443 : vector<1x8x512xf32> to vector<8x512xf32>
    %445 = arith.mulf %190, %444 : vector<8x512xf32>
    %446 = arith.addf %442, %445 : vector<8x512xf32>
    %c509_i32 = arith.constant 509 : i32
    %447 = tpu.dynamic_rotate %190 by %c509_i32 dim 1 : vector<8x512xf32>, i32 -> vector<8x512xf32>
    %c75 = arith.constant 75 : index
    %c0_203 = arith.constant 0 : index
    %c0_204 = arith.constant 0 : index
    %448 = vector.load %arg4[%c75, %c0_203, %c0_204] : memref<99x8x512xf32, #tpu.memory_space<vmem>>, vector<1x8x512xf32>
    %449 = vector.shape_cast %448 : vector<1x8x512xf32> to vector<8x512xf32>
    %450 = arith.mulf %447, %449 : vector<8x512xf32>
    %451 = arith.addf %446, %450 : vector<8x512xf32>
    %c506_i32 = arith.constant 506 : i32
    %452 = tpu.dynamic_rotate %190 by %c506_i32 dim 1 : vector<8x512xf32>, i32 -> vector<8x512xf32>
    %c76 = arith.constant 76 : index
    %c0_205 = arith.constant 0 : index
    %c0_206 = arith.constant 0 : index
    %453 = vector.load %arg4[%c76, %c0_205, %c0_206] : memref<99x8x512xf32, #tpu.memory_space<vmem>>, vector<1x8x512xf32>
    %454 = vector.shape_cast %453 : vector<1x8x512xf32> to vector<8x512xf32>
    %455 = arith.mulf %452, %454 : vector<8x512xf32>
    %456 = arith.addf %451, %455 : vector<8x512xf32>
    %c503_i32 = arith.constant 503 : i32
    %457 = tpu.dynamic_rotate %190 by %c503_i32 dim 1 : vector<8x512xf32>, i32 -> vector<8x512xf32>
    %c77 = arith.constant 77 : index
    %c0_207 = arith.constant 0 : index
    %c0_208 = arith.constant 0 : index
    %458 = vector.load %arg4[%c77, %c0_207, %c0_208] : memref<99x8x512xf32, #tpu.memory_space<vmem>>, vector<1x8x512xf32>
    %459 = vector.shape_cast %458 : vector<1x8x512xf32> to vector<8x512xf32>
    %460 = arith.mulf %457, %459 : vector<8x512xf32>
    %461 = arith.addf %456, %460 : vector<8x512xf32>
    %c473_i32 = arith.constant 473 : i32
    %462 = tpu.dynamic_rotate %190 by %c473_i32 dim 1 : vector<8x512xf32>, i32 -> vector<8x512xf32>
    %c78 = arith.constant 78 : index
    %c0_209 = arith.constant 0 : index
    %c0_210 = arith.constant 0 : index
    %463 = vector.load %arg4[%c78, %c0_209, %c0_210] : memref<99x8x512xf32, #tpu.memory_space<vmem>>, vector<1x8x512xf32>
    %464 = vector.shape_cast %463 : vector<1x8x512xf32> to vector<8x512xf32>
    %465 = arith.mulf %462, %464 : vector<8x512xf32>
    %466 = arith.addf %461, %465 : vector<8x512xf32>
    %c470_i32 = arith.constant 470 : i32
    %467 = tpu.dynamic_rotate %190 by %c470_i32 dim 1 : vector<8x512xf32>, i32 -> vector<8x512xf32>
    %c79 = arith.constant 79 : index
    %c0_211 = arith.constant 0 : index
    %c0_212 = arith.constant 0 : index
    %468 = vector.load %arg4[%c79, %c0_211, %c0_212] : memref<99x8x512xf32, #tpu.memory_space<vmem>>, vector<1x8x512xf32>
    %469 = vector.shape_cast %468 : vector<1x8x512xf32> to vector<8x512xf32>
    %470 = arith.mulf %467, %469 : vector<8x512xf32>
    %471 = arith.addf %466, %470 : vector<8x512xf32>
    %c467_i32 = arith.constant 467 : i32
    %472 = tpu.dynamic_rotate %190 by %c467_i32 dim 1 : vector<8x512xf32>, i32 -> vector<8x512xf32>
    %c80 = arith.constant 80 : index
    %c0_213 = arith.constant 0 : index
    %c0_214 = arith.constant 0 : index
    %473 = vector.load %arg4[%c80, %c0_213, %c0_214] : memref<99x8x512xf32, #tpu.memory_space<vmem>>, vector<1x8x512xf32>
    %474 = vector.shape_cast %473 : vector<1x8x512xf32> to vector<8x512xf32>
    %475 = arith.mulf %472, %474 : vector<8x512xf32>
    %476 = arith.addf %471, %475 : vector<8x512xf32>
    %c464_i32 = arith.constant 464 : i32
    %477 = tpu.dynamic_rotate %190 by %c464_i32 dim 1 : vector<8x512xf32>, i32 -> vector<8x512xf32>
    %c81 = arith.constant 81 : index
    %c0_215 = arith.constant 0 : index
    %c0_216 = arith.constant 0 : index
    %478 = vector.load %arg4[%c81, %c0_215, %c0_216] : memref<99x8x512xf32, #tpu.memory_space<vmem>>, vector<1x8x512xf32>
    %479 = vector.shape_cast %478 : vector<1x8x512xf32> to vector<8x512xf32>
    %480 = arith.mulf %477, %479 : vector<8x512xf32>
    %481 = arith.addf %476, %480 : vector<8x512xf32>
    %c461_i32 = arith.constant 461 : i32
    %482 = tpu.dynamic_rotate %190 by %c461_i32 dim 1 : vector<8x512xf32>, i32 -> vector<8x512xf32>
    %c82 = arith.constant 82 : index
    %c0_217 = arith.constant 0 : index
    %c0_218 = arith.constant 0 : index
    %483 = vector.load %arg4[%c82, %c0_217, %c0_218] : memref<99x8x512xf32, #tpu.memory_space<vmem>>, vector<1x8x512xf32>
    %484 = vector.shape_cast %483 : vector<1x8x512xf32> to vector<8x512xf32>
    %485 = arith.mulf %482, %484 : vector<8x512xf32>
    %486 = arith.addf %481, %485 : vector<8x512xf32>
    %c458_i32 = arith.constant 458 : i32
    %487 = tpu.dynamic_rotate %190 by %c458_i32 dim 1 : vector<8x512xf32>, i32 -> vector<8x512xf32>
    %c83 = arith.constant 83 : index
    %c0_219 = arith.constant 0 : index
    %c0_220 = arith.constant 0 : index
    %488 = vector.load %arg4[%c83, %c0_219, %c0_220] : memref<99x8x512xf32, #tpu.memory_space<vmem>>, vector<1x8x512xf32>
    %489 = vector.shape_cast %488 : vector<1x8x512xf32> to vector<8x512xf32>
    %490 = arith.mulf %487, %489 : vector<8x512xf32>
    %491 = arith.addf %486, %490 : vector<8x512xf32>
    %c455_i32 = arith.constant 455 : i32
    %492 = tpu.dynamic_rotate %190 by %c455_i32 dim 1 : vector<8x512xf32>, i32 -> vector<8x512xf32>
    %c84 = arith.constant 84 : index
    %c0_221 = arith.constant 0 : index
    %c0_222 = arith.constant 0 : index
    %493 = vector.load %arg4[%c84, %c0_221, %c0_222] : memref<99x8x512xf32, #tpu.memory_space<vmem>>, vector<1x8x512xf32>
    %494 = vector.shape_cast %493 : vector<1x8x512xf32> to vector<8x512xf32>
    %495 = arith.mulf %492, %494 : vector<8x512xf32>
    %496 = arith.addf %491, %495 : vector<8x512xf32>
    %c425_i32 = arith.constant 425 : i32
    %497 = tpu.dynamic_rotate %190 by %c425_i32 dim 1 : vector<8x512xf32>, i32 -> vector<8x512xf32>
    %c85 = arith.constant 85 : index
    %c0_223 = arith.constant 0 : index
    %c0_224 = arith.constant 0 : index
    %498 = vector.load %arg4[%c85, %c0_223, %c0_224] : memref<99x8x512xf32, #tpu.memory_space<vmem>>, vector<1x8x512xf32>
    %499 = vector.shape_cast %498 : vector<1x8x512xf32> to vector<8x512xf32>
    %500 = arith.mulf %497, %499 : vector<8x512xf32>
    %501 = arith.addf %496, %500 : vector<8x512xf32>
    %c422_i32 = arith.constant 422 : i32
    %502 = tpu.dynamic_rotate %190 by %c422_i32 dim 1 : vector<8x512xf32>, i32 -> vector<8x512xf32>
    %c86 = arith.constant 86 : index
    %c0_225 = arith.constant 0 : index
    %c0_226 = arith.constant 0 : index
    %503 = vector.load %arg4[%c86, %c0_225, %c0_226] : memref<99x8x512xf32, #tpu.memory_space<vmem>>, vector<1x8x512xf32>
    %504 = vector.shape_cast %503 : vector<1x8x512xf32> to vector<8x512xf32>
    %505 = arith.mulf %502, %504 : vector<8x512xf32>
    %506 = arith.addf %501, %505 : vector<8x512xf32>
    %c419_i32 = arith.constant 419 : i32
    %507 = tpu.dynamic_rotate %190 by %c419_i32 dim 1 : vector<8x512xf32>, i32 -> vector<8x512xf32>
    %c87 = arith.constant 87 : index
    %c0_227 = arith.constant 0 : index
    %c0_228 = arith.constant 0 : index
    %508 = vector.load %arg4[%c87, %c0_227, %c0_228] : memref<99x8x512xf32, #tpu.memory_space<vmem>>, vector<1x8x512xf32>
    %509 = vector.shape_cast %508 : vector<1x8x512xf32> to vector<8x512xf32>
    %510 = arith.mulf %507, %509 : vector<8x512xf32>
    %511 = arith.addf %506, %510 : vector<8x512xf32>
    %c416_i32 = arith.constant 416 : i32
    %512 = tpu.dynamic_rotate %190 by %c416_i32 dim 1 : vector<8x512xf32>, i32 -> vector<8x512xf32>
    %c88 = arith.constant 88 : index
    %c0_229 = arith.constant 0 : index
    %c0_230 = arith.constant 0 : index
    %513 = vector.load %arg4[%c88, %c0_229, %c0_230] : memref<99x8x512xf32, #tpu.memory_space<vmem>>, vector<1x8x512xf32>
    %514 = vector.shape_cast %513 : vector<1x8x512xf32> to vector<8x512xf32>
    %515 = arith.mulf %512, %514 : vector<8x512xf32>
    %516 = arith.addf %511, %515 : vector<8x512xf32>
    %c413_i32 = arith.constant 413 : i32
    %517 = tpu.dynamic_rotate %190 by %c413_i32 dim 1 : vector<8x512xf32>, i32 -> vector<8x512xf32>
    %c89 = arith.constant 89 : index
    %c0_231 = arith.constant 0 : index
    %c0_232 = arith.constant 0 : index
    %518 = vector.load %arg4[%c89, %c0_231, %c0_232] : memref<99x8x512xf32, #tpu.memory_space<vmem>>, vector<1x8x512xf32>
    %519 = vector.shape_cast %518 : vector<1x8x512xf32> to vector<8x512xf32>
    %520 = arith.mulf %517, %519 : vector<8x512xf32>
    %521 = arith.addf %516, %520 : vector<8x512xf32>
    %c410_i32 = arith.constant 410 : i32
    %522 = tpu.dynamic_rotate %190 by %c410_i32 dim 1 : vector<8x512xf32>, i32 -> vector<8x512xf32>
    %c90 = arith.constant 90 : index
    %c0_233 = arith.constant 0 : index
    %c0_234 = arith.constant 0 : index
    %523 = vector.load %arg4[%c90, %c0_233, %c0_234] : memref<99x8x512xf32, #tpu.memory_space<vmem>>, vector<1x8x512xf32>
    %524 = vector.shape_cast %523 : vector<1x8x512xf32> to vector<8x512xf32>
    %525 = arith.mulf %522, %524 : vector<8x512xf32>
    %526 = arith.addf %521, %525 : vector<8x512xf32>
    %c407_i32 = arith.constant 407 : i32
    %527 = tpu.dynamic_rotate %190 by %c407_i32 dim 1 : vector<8x512xf32>, i32 -> vector<8x512xf32>
    %c91 = arith.constant 91 : index
    %c0_235 = arith.constant 0 : index
    %c0_236 = arith.constant 0 : index
    %528 = vector.load %arg4[%c91, %c0_235, %c0_236] : memref<99x8x512xf32, #tpu.memory_space<vmem>>, vector<1x8x512xf32>
    %529 = vector.shape_cast %528 : vector<1x8x512xf32> to vector<8x512xf32>
    %530 = arith.mulf %527, %529 : vector<8x512xf32>
    %531 = arith.addf %526, %530 : vector<8x512xf32>
    %c377_i32 = arith.constant 377 : i32
    %532 = tpu.dynamic_rotate %190 by %c377_i32 dim 1 : vector<8x512xf32>, i32 -> vector<8x512xf32>
    %c92 = arith.constant 92 : index
    %c0_237 = arith.constant 0 : index
    %c0_238 = arith.constant 0 : index
    %533 = vector.load %arg4[%c92, %c0_237, %c0_238] : memref<99x8x512xf32, #tpu.memory_space<vmem>>, vector<1x8x512xf32>
    %534 = vector.shape_cast %533 : vector<1x8x512xf32> to vector<8x512xf32>
    %535 = arith.mulf %532, %534 : vector<8x512xf32>
    %536 = arith.addf %531, %535 : vector<8x512xf32>
    %c374_i32 = arith.constant 374 : i32
    %537 = tpu.dynamic_rotate %190 by %c374_i32 dim 1 : vector<8x512xf32>, i32 -> vector<8x512xf32>
    %c93 = arith.constant 93 : index
    %c0_239 = arith.constant 0 : index
    %c0_240 = arith.constant 0 : index
    %538 = vector.load %arg4[%c93, %c0_239, %c0_240] : memref<99x8x512xf32, #tpu.memory_space<vmem>>, vector<1x8x512xf32>
    %539 = vector.shape_cast %538 : vector<1x8x512xf32> to vector<8x512xf32>
    %540 = arith.mulf %537, %539 : vector<8x512xf32>
    %541 = arith.addf %536, %540 : vector<8x512xf32>
    %c371_i32 = arith.constant 371 : i32
    %542 = tpu.dynamic_rotate %190 by %c371_i32 dim 1 : vector<8x512xf32>, i32 -> vector<8x512xf32>
    %c94 = arith.constant 94 : index
    %c0_241 = arith.constant 0 : index
    %c0_242 = arith.constant 0 : index
    %543 = vector.load %arg4[%c94, %c0_241, %c0_242] : memref<99x8x512xf32, #tpu.memory_space<vmem>>, vector<1x8x512xf32>
    %544 = vector.shape_cast %543 : vector<1x8x512xf32> to vector<8x512xf32>
    %545 = arith.mulf %542, %544 : vector<8x512xf32>
    %546 = arith.addf %541, %545 : vector<8x512xf32>
    %c368_i32 = arith.constant 368 : i32
    %547 = tpu.dynamic_rotate %190 by %c368_i32 dim 1 : vector<8x512xf32>, i32 -> vector<8x512xf32>
    %c95 = arith.constant 95 : index
    %c0_243 = arith.constant 0 : index
    %c0_244 = arith.constant 0 : index
    %548 = vector.load %arg4[%c95, %c0_243, %c0_244] : memref<99x8x512xf32, #tpu.memory_space<vmem>>, vector<1x8x512xf32>
    %549 = vector.shape_cast %548 : vector<1x8x512xf32> to vector<8x512xf32>
    %550 = arith.mulf %547, %549 : vector<8x512xf32>
    %551 = arith.addf %546, %550 : vector<8x512xf32>
    %c365_i32 = arith.constant 365 : i32
    %552 = tpu.dynamic_rotate %190 by %c365_i32 dim 1 : vector<8x512xf32>, i32 -> vector<8x512xf32>
    %c96 = arith.constant 96 : index
    %c0_245 = arith.constant 0 : index
    %c0_246 = arith.constant 0 : index
    %553 = vector.load %arg4[%c96, %c0_245, %c0_246] : memref<99x8x512xf32, #tpu.memory_space<vmem>>, vector<1x8x512xf32>
    %554 = vector.shape_cast %553 : vector<1x8x512xf32> to vector<8x512xf32>
    %555 = arith.mulf %552, %554 : vector<8x512xf32>
    %556 = arith.addf %551, %555 : vector<8x512xf32>
    %c362_i32 = arith.constant 362 : i32
    %557 = tpu.dynamic_rotate %190 by %c362_i32 dim 1 : vector<8x512xf32>, i32 -> vector<8x512xf32>
    %c97 = arith.constant 97 : index
    %c0_247 = arith.constant 0 : index
    %c0_248 = arith.constant 0 : index
    %558 = vector.load %arg4[%c97, %c0_247, %c0_248] : memref<99x8x512xf32, #tpu.memory_space<vmem>>, vector<1x8x512xf32>
    %559 = vector.shape_cast %558 : vector<1x8x512xf32> to vector<8x512xf32>
    %560 = arith.mulf %557, %559 : vector<8x512xf32>
    %561 = arith.addf %556, %560 : vector<8x512xf32>
    %c359_i32 = arith.constant 359 : i32
    %562 = tpu.dynamic_rotate %190 by %c359_i32 dim 1 : vector<8x512xf32>, i32 -> vector<8x512xf32>
    %c98 = arith.constant 98 : index
    %c0_249 = arith.constant 0 : index
    %c0_250 = arith.constant 0 : index
    %563 = vector.load %arg4[%c98, %c0_249, %c0_250] : memref<99x8x512xf32, #tpu.memory_space<vmem>>, vector<1x8x512xf32>
    %564 = vector.shape_cast %563 : vector<1x8x512xf32> to vector<8x512xf32>
    %565 = arith.mulf %562, %564 : vector<8x512xf32>
    %566 = arith.addf %561, %565 : vector<8x512xf32>
    %c2_251 = arith.constant 2 : index
    %c0_252 = arith.constant 0 : index
    %c0_253 = arith.constant 0 : index
    %567 = vector.load %arg2[%c2_251, %c0_252, %c0_253] : memref<4x8x8xf32, #tpu.memory_space<vmem>>, vector<1x8x8xf32>
    %568 = vector.shape_cast %567 : vector<1x8x8xf32> to vector<8x8xf32>
    %cst_254 = arith.constant dense<0.000000e+00> : vector<8x512xf32>
    %569 = tpu.matmul %568, %566, %cst_254 {dimension_numbers = #tpu.dot_dimension_numbers<[1], [0], [0], [1], [0, 0, 1, 1], [], []>} : vector<8x8xf32>, vector<8x512xf32>, vector<8x512xf32> -> vector<8x512xf32>
    %c5_255 = arith.constant 5 : index
    %c0_256 = arith.constant 0 : index
    %c0_257 = arith.constant 0 : index
    %570 = vector.load %arg3[%c5_255, %c0_256, %c0_257] : memref<8x8x1xf32, #tpu.memory_space<vmem>>, vector<1x8x1xf32>
    %571 = vector.shape_cast %570 : vector<1x8x1xf32> to vector<8x1xf32>
    %572 = vector.broadcast %571 : vector<8x1xf32> to vector<8x512xf32>
    %573 = arith.addf %569, %572 : vector<8x512xf32>
    %cst_258 = arith.constant 5.000000e-01 : f32
    %574 = vector.broadcast %cst_258 : f32 to vector<8x512xf32>
    %575 = arith.mulf %574, %573 : vector<8x512xf32>
    %576 = math.tanh %575 : vector<8x512xf32>
    %cst_259 = arith.constant 1.000000e+00 : f32
    %577 = vector.broadcast %cst_259 : f32 to vector<8x512xf32>
    %578 = arith.addf %576, %577 : vector<8x512xf32>
    %cst_260 = arith.constant 5.000000e-01 : f32
    %579 = vector.broadcast %cst_260 : f32 to vector<8x512xf32>
    %580 = arith.mulf %579, %578 : vector<8x512xf32>
    %581 = arith.mulf %573, %580 : vector<8x512xf32>
    %582 = arith.mulf %61, %581 : vector<8x512xf32>
    %c3_261 = arith.constant 3 : index
    %c0_262 = arith.constant 0 : index
    %c0_263 = arith.constant 0 : index
    %583 = vector.load %arg2[%c3_261, %c0_262, %c0_263] : memref<4x8x8xf32, #tpu.memory_space<vmem>>, vector<1x8x8xf32>
    %584 = vector.shape_cast %583 : vector<1x8x8xf32> to vector<8x8xf32>
    %cst_264 = arith.constant dense<0.000000e+00> : vector<8x512xf32>
    %585 = tpu.matmul %584, %582, %cst_264 {dimension_numbers = #tpu.dot_dimension_numbers<[1], [0], [0], [1], [0, 0, 1, 1], [], []>} : vector<8x8xf32>, vector<8x512xf32>, vector<8x512xf32> -> vector<8x512xf32>
    %c6_265 = arith.constant 6 : index
    %c0_266 = arith.constant 0 : index
    %c0_267 = arith.constant 0 : index
    %586 = vector.load %arg3[%c6_265, %c0_266, %c0_267] : memref<8x8x1xf32, #tpu.memory_space<vmem>>, vector<1x8x1xf32>
    %587 = vector.shape_cast %586 : vector<1x8x1xf32> to vector<8x1xf32>
    %588 = vector.broadcast %587 : vector<8x1xf32> to vector<8x512xf32>
    %589 = arith.addf %585, %588 : vector<8x512xf32>
    %590 = arith.addf %589, %0 : vector<8x512xf32>
    %c0_268 = arith.constant 0 : index
    %c0_269 = arith.constant 0 : index
    %591 = vector.load %arg6[%c0_268, %c0_269] : memref<8x512xf32, #tpu.memory_space<vmem>>, vector<8x512xf32>
    tpu.vector_store %arg6[%c0_268, %c0_269], %590 {strides = array<i32>} : memref<8x512xf32, #tpu.memory_space<vmem>>, vector<8x512xf32>,
    return
  }
  func.func @transform_0(%arg0: i32) -> (i32, i32) {
    %c0_i32 = arith.constant 0 : i32
    %c0_i32_0 = arith.constant 0 : i32
    return %c0_i32, %arg0 : i32, i32
  }
  func.func @transform_1(%arg0: i32) -> (i32, i32, i32) {
    %c0_i32 = arith.constant 0 : i32
    %c0_i32_0 = arith.constant 0 : i32
    %c0_i32_1 = arith.constant 0 : i32
    %c0_i32_2 = arith.constant 0 : i32
    return %c0_i32, %c0_i32_0, %c0_i32_1 : i32, i32, i32
  }
  func.func @transform_2(%arg0: i32) -> (i32, i32, i32) {
    %c0_i32 = arith.constant 0 : i32
    %c0_i32_0 = arith.constant 0 : i32
    %c0_i32_1 = arith.constant 0 : i32
    %c0_i32_2 = arith.constant 0 : i32
    return %c0_i32, %c0_i32_0, %c0_i32_1 : i32, i32, i32
  }
  func.func @transform_3(%arg0: i32) -> (i32, i32, i32) {
    %c0_i32 = arith.constant 0 : i32
    %c0_i32_0 = arith.constant 0 : i32
    %c0_i32_1 = arith.constant 0 : i32
    %c0_i32_2 = arith.constant 0 : i32
    return %c0_i32, %c0_i32_0, %c0_i32_1 : i32, i32, i32
  }
  func.func @transform_4(%arg0: i32) -> (i32, i32, i32) {
    %c0_i32 = arith.constant 0 : i32
    %c0_i32_0 = arith.constant 0 : i32
    %c0_i32_1 = arith.constant 0 : i32
    %c0_i32_2 = arith.constant 0 : i32
    return %c0_i32, %c0_i32_0, %c0_i32_1 : i32, i32, i32
  }
  func.func @transform_5(%arg0: i32) -> (i32, i32) {
    %c0_i32 = arith.constant 0 : i32
    %c0_i32_0 = arith.constant 0 : i32
    return %c0_i32, %arg0 : i32, i32
  }
}

</mosaic_0001>

<llo_original>
// kernel: moga_forward.1
$region0: #{moga_forward.1}
  #allocation0 [shape = 'u32[]', space=smem, size = 0x4, offset = 0x4, fixed_abs, tag = 'smem constant byte address 0x4 - core index']
  #allocation1 [shape = 'u32[144,128]{1,0:T(1,128)}', space=vmem, size = 0x12000, scoped, tag = 'internal scratch']
  %s0 = inlined_call_operand.vmem [shape: f32[8,512], index: 0, kind: input, shape index: {}]
  %s1 = inlined_call_operand.vmem [shape: f32[4,8,8], index: 1, kind: input, shape index: {}]
  %s2 = inlined_call_operand.vmem [shape: f32[8,8,1], index: 2, kind: input, shape index: {}]
  %s3 = inlined_call_operand.vmem [shape: f32[99,8,512], index: 3, kind: input, shape index: {}]
  %s4 = inlined_call_operand.vmem [shape: f32[2,1,512], index: 4, kind: input, shape index: {}]
  %s5 = inlined_call_operand.vmem [shape: f32[8,512], index: 5, kind: output, shape index: {}]
  %s6 = sld [smem:[#allocation0]]
  $region30: #{moga_forward.1} parent=0
    _
  %s8 = ssub.s32 1, %s6
  %s9 = scalar_select 0, %s8, %s6
  // Predicated region
  $region2: #{moga_forward.1} parent=0 // pred_check
    _
  $region3: #{moga_forward.1} parent=0 // pred_check_branch
    %11 = sbr.rel (0) target = $region5
  $region4: #{moga_forward.1} parent=0 // pred_region
    _
  $region5: #{moga_forward.1} parent=0 // pred_fallthru
    _
  // Predicated region
  $region6: #{moga_forward.1} parent=0 // pred_check
    _
  $region7: #{moga_forward.1} parent=0 // pred_check_branch
    %13 = sbr.rel (0) target = $region9
  $region8: #{moga_forward.1} parent=0 // pred_region
    _
  $region9: #{moga_forward.1} parent=0 // pred_fallthru
    _
  // Predicated region
  $region10: #{moga_forward.1} parent=0 // pred_check
    _
  $region11: #{moga_forward.1} parent=0 // pred_check_branch
    %15 = sbr.rel (0) target = $region13
  $region12: #{moga_forward.1} parent=0 // pred_region
    _
  $region13: #{moga_forward.1} parent=0 // pred_fallthru
    _
  // Predicated region
  $region14: #{moga_forward.1} parent=0 // pred_check
    _
  $region15: #{moga_forward.1} parent=0 // pred_check_branch
    %17 = sbr.rel (0) target = $region17
  $region16: #{moga_forward.1} parent=0 // pred_region
    _
  $region17: #{moga_forward.1} parent=0 // pred_fallthru
    _
  // Predicated region
  $region18: #{moga_forward.1} parent=0 // pred_check
    _
  $region19: #{moga_forward.1} parent=0 // pred_check_branch
    %19 = sbr.rel (0) target = $region21
  $region20: #{moga_forward.1} parent=0 // pred_region
    _
  $region21: #{moga_forward.1} parent=0 // pred_fallthru
    _
  %v20 = vld [vmem:[%s0] sm:$0xff]
  %v21 = vld [vmem:[%s0 + $0x8] sm:$0xff]
  %v22 = vld [vmem:[%s0 + $0x10] sm:$0xff]
  %v23 = vld [vmem:[%s0 + $0x18] sm:$0xff]
  %v24 = vld [vmem:[%s1] sm:$0xff]
  %v25 = vld [vmem:[%s2] sm:$0xff]
  %27 = vset.pattern.permute.xlu0 0
  %28 = vperm.xlu0 %27, %v25
  %v29 = vpop.permute.xlu0 %28
  %vm31 = vcmask 64512
  %v33 = vsel %vm31, %v24, 0
  %35 = vmatprep.subr.mxu0 %v21
  %36 = vmatpush1.msra.mxu0 %v20
  %37 = vmatprep.subr.mxu0 0.0
  %38 = vmatpush1.msra.mxu0 0.0
  %39 = vmatprep.subr.mxu0 0.0
  %40 = vmatpush1.msra.mxu0 0.0
  %41 = vmatprep.subr.mxu0 0.0
  %42 = vmatpush1.msra.mxu0 0.0
  %43 = vmatprep.subr.mxu0 0.0
  %44 = vmatpush1.msra.mxu0 0.0
  %45 = vmatprep.subr.mxu0 0.0
  %46 = vmatpush1.msra.mxu0 0.0
  %47 = vmatprep.subr.mxu0 0.0
  %48 = vmatpush1.msra.mxu0 0.0
  %49 = vmatprep.subr.mxu0 0.0
  %50 = vmatpush1.msra.mxu0 0.0
  %51 = vmatprep.subr.mxu0 0.0
  %52 = vmatpush1.msra.mxu0 0.0
  %53 = vmatprep.subr.mxu0 0.0
  %54 = vmatpush1.msra.mxu0 0.0
  %55 = vmatprep.subr.mxu0 0.0
  %56 = vmatpush1.msra.mxu0 0.0
  %57 = vmatprep.subr.mxu0 0.0
  %58 = vmatpush1.msra.mxu0 0.0
  %59 = vmatprep.subr.mxu0 0.0
  %60 = vmatpush1.msra.mxu0 0.0
  %61 = vmatprep.subr.mxu0 0.0
  %62 = vmatpush1.msra.mxu0 0.0
  %63 = vmatprep.subr.mxu0 0.0
  %64 = vmatpush1.msra.mxu0 0.0
  %65 = vmatprep.subr.mxu0 0.0
  %66 = vmatpush1.msra.mxu0 0.0
  %67 = vmatprep.subr.mxu0 0.0
  %68 = vmatpush1.msra.mxu0 0.0
  %69 = vmatprep.subr.mxu0 0.0
  %70 = vmatpush1.msra.mxu0 0.0
  %71 = vmatprep.subr.mxu0 0.0
  %72 = vmatpush1.msra.mxu0 0.0
  %73 = vmatprep.subr.mxu0 0.0
  %74 = vmatpush1.msra.mxu0 0.0
  %75 = vmatprep.subr.mxu0 0.0
  %76 = vmatpush1.msra.mxu0 0.0
  %77 = vmatprep.subr.mxu0 0.0
  %78 = vmatpush1.msra.mxu0 0.0
  %79 = vmatprep.subr.mxu0 0.0
  %80 = vmatpush1.msra.mxu0 0.0
  %81 = vmatprep.subr.mxu0 0.0
  %82 = vmatpush1.msra.mxu0 0.0
  %83 = vmatprep.subr.mxu0 0.0
  %84 = vmatpush1.msra.mxu0 0.0
  %85 = vmatprep.subr.mxu0 0.0
  %86 = vmatpush1.msra.mxu0 0.0
  %87 = vmatprep.subr.mxu0 0.0
  %88 = vmatpush1.msra.mxu0 0.0
  %89 = vmatprep.subr.mxu0 0.0
  %90 = vmatpush1.msra.mxu0 0.0
  %91 = vmatprep.subr.mxu0 0.0
  %92 = vmatpush1.msra.mxu0 0.0
  %93 = vmatprep.subr.mxu0 0.0
  %94 = vmatpush1.msra.mxu0 0.0
  %95 = vmatprep.subr.mxu0 0.0
  %96 = vmatpush1.msra.mxu0 0.0
  %97 = vmatprep.subr.mxu0 0.0
  %98 = vmatpush1.msra.mxu0 0.0
  %99 = vmatprep.mubr.f32.mxu0 0.0
  %100 = vmatmul.mubr.f32.gmra.mrb[0].mxu0 %v33
  %v101 = vpop.f32.mrb[0].mxu0
  %v102 = vadd.f32 %v29, %v101
  %v103 = vpop.f32.mrb[0].mxu0
  %v104 = vadd.f32 %v29, %v103
  %105 = vdwg.mxu0
  %106 = vmatprep.subr.mxu0 %v23
  %107 = vmatpush1.msra.mxu0 %v22
  %108 = vmatprep.subr.mxu0 0.0
  %109 = vmatpush1.msra.mxu0 0.0
  %110 = vmatprep.subr.mxu0 0.0
  %111 = vmatpush1.msra.mxu0 0.0
  %112 = vmatprep.subr.mxu0 0.0
  %113 = vmatpush1.msra.mxu0 0.0
  %114 = vmatprep.subr.mxu0 0.0
  %115 = vmatpush1.msra.mxu0 0.0
  %116 = vmatprep.subr.mxu0 0.0
  %117 = vmatpush1.msra.mxu0 0.0
  %118 = vmatprep.subr.mxu0 0.0
  %119 = vmatpush1.msra.mxu0 0.0
  %120 = vmatprep.subr.mxu0 0.0
  %121 = vmatpush1.msra.mxu0 0.0
  %122 = vmatprep.subr.mxu0 0.0
  %123 = vmatpush1.msra.mxu0 0.0
  %124 = vmatprep.subr.mxu0 0.0
  %125 = vmatpush1.msra.mxu0 0.0
  %126 = vmatprep.subr.mxu0 0.0
  %127 = vmatpush1.msra.mxu0 0.0
  %128 = vmatprep.subr.mxu0 0.0
  %129 = vmatpush1.msra.mxu0 0.0
  %130 = vmatprep.subr.mxu0 0.0
  %131 = vmatpush1.msra.mxu0 0.0
  %132 = vmatprep.subr.mxu0 0.0
  %133 = vmatpush1.msra.mxu0 0.0
  %134 = vmatprep.subr.mxu0 0.0
  %135 = vmatpush1.msra.mxu0 0.0
  %136 = vmatprep.subr.mxu0 0.0
  %137 = vmatpush1.msra.mxu0 0.0
  %138 = vmatprep.subr.mxu0 0.0
  %139 = vmatpush1.msra.mxu0 0.0
  %140 = vmatprep.subr.mxu0 0.0
  %141 = vmatpush1.msra.mxu0 0.0
  %142 = vmatprep.subr.mxu0 0.0
  %143 = vmatpush1.msra.mxu0 0.0
  %144 = vmatprep.subr.mxu0 0.0
  %145 = vmatpush1.msra.mxu0 0.0
  %146 = vmatprep.subr.mxu0 0.0
  %147 = vmatpush1.msra.mxu0 0.0
  %148 = vmatprep.subr.mxu0 0.0
  %149 = vmatpush1.msra.mxu0 0.0
  %150 = vmatprep.subr.mxu0 0.0
  %151 = vmatpush1.msra.mxu0 0.0
  %152 = vmatprep.subr.mxu0 0.0
  %153 = vmatpush1.msra.mxu0 0.0
  %154 = vmatprep.subr.mxu0 0.0
  %155 = vmatpush1.msra.mxu0 0.0
  %156 = vmatprep.subr.mxu0 0.0
  %157 = vmatpush1.msra.mxu0 0.0
  %158 = vmatprep.subr.mxu0 0.0
  %159 = vmatpush1.msra.mxu0 0.0
  %160 = vmatprep.subr.mxu0 0.0
  %161 = vmatpush1.msra.mxu0 0.0
  %162 = vmatprep.subr.mxu0 0.0
  %163 = vmatpush1.msra.mxu0 0.0
  %164 = vmatprep.subr.mxu0 0.0
  %165 = vmatpush1.msra.mxu0 0.0
  %166 = vmatprep.subr.mxu0 0.0
  %167 = vmatpush1.msra.mxu0 0.0
  %168 = vmatprep.subr.mxu0 0.0
  %169 = vmatpush1.msra.mxu0 0.0
  %170 = vmatprep.mubr.f32.mxu0 0.0
  %171 = vmatmul.mubr.f32.gmra.mrb[0].mxu0 %v33
  %v172 = vpop.f32.mrb[0].mxu0
  %v173 = vadd.f32 %v29, %v172
  %v174 = vpop.f32.mrb[0].mxu0
  %v175 = vadd.f32 %v29, %v174
  %176 = vdwg.mxu0
  %v177 = vld [vmem:[%s4] sm:$0xf]
  %v179 = vlaneseq
  %v180 = vshrl.u32 %v179, 7
  %v181 = vsub.s32 0, %v180
  %v182 = vrot.slane %v177, %v181
  %v183 = vlaneseq
  %v184 = vshrl.u32 %v183, 7
  %v185 = vsub.s32 1, %v184
  %v186 = vrot.slane %v177, %v185
  %v187 = vlaneseq
  %v188 = vshrl.u32 %v187, 7
  %v189 = vsub.s32 2, %v188
  %v190 = vrot.slane %v177, %v189
  %v191 = vlaneseq
  %v192 = vshrl.u32 %v191, 7
  %v193 = vsub.s32 3, %v192
  %v194 = vrot.slane %v177, %v193
  %v199 = vmul.f32 %v102, %v182
  %v200 = vmul.f32 %v104, %v186
  %v201 = vmul.f32 %v173, %v190
  %v202 = vmul.f32 %v175, %v194
  %v203 = vadd.f32 %v199, %v200
  %v204 = vadd.f32 %v203, %v201
  %v205 = vadd.f32 %v204, %v202
  %206 = vadd.xlane.f32.xlu0 %v205
  %v207 = vpop.xlane.xlu0 %206
  %v208 = vmul.f32 %v207, 0.00390625
  %v209 = vmul.f32 %v208, %v182
  %v210 = vmul.f32 %v208, %v186
  %v211 = vmul.f32 %v208, %v190
  %v212 = vmul.f32 %v208, %v194
  %v213 = vadd.f32 %v209, 0.0
  %v214 = vadd.f32 %v210, 0.0
  %v215 = vadd.f32 %v211, 0.0
  %v216 = vadd.f32 %v212, 0.0
  %s217 = scalar_lea.vmem %s4, 4
  %v218 = vld [vmem:[%s217] sm:$0xf]
  %v220 = vlaneseq
  %v221 = vshrl.u32 %v220, 7
  %v222 = vsub.s32 0, %v221
  %v223 = vrot.slane %v218, %v222
  %v224 = vlaneseq
  %v225 = vshrl.u32 %v224, 7
  %v226 = vsub.s32 1, %v225
  %v227 = vrot.slane %v218, %v226
  %v228 = vlaneseq
  %v229 = vshrl.u32 %v228, 7
  %v230 = vsub.s32 2, %v229
  %v231 = vrot.slane %v218, %v230
  %v232 = vlaneseq
  %v233 = vshrl.u32 %v232, 7
  %v234 = vsub.s32 3, %v233
  %v235 = vrot.slane %v218, %v234
  %v240 = vmul.f32 %v102, %v223
  %v241 = vmul.f32 %v104, %v227
  %v242 = vmul.f32 %v173, %v231
  %v243 = vmul.f32 %v175, %v235
  %v244 = vadd.f32 %v240, %v241
  %v245 = vadd.f32 %v244, %v242
  %v246 = vadd.f32 %v245, %v243
  %247 = vadd.xlane.f32.xlu0 %v246
  %v248 = vpop.xlane.xlu0 %247
  %v249 = vmul.f32 %v248, 0.00390625
  %v250 = vmul.f32 %v249, %v223
  %v251 = vmul.f32 %v249, %v227
  %v252 = vmul.f32 %v249, %v231
  %v253 = vmul.f32 %v249, %v235
  %v254 = vadd.f32 %v213, %v250
  %v255 = vadd.f32 %v214, %v251
  %v256 = vadd.f32 %v215, %v252
  %v257 = vadd.f32 %v216, %v253
  %s258 = scalar_lea.vmem %s2, 8
  %v259 = vld [vmem:[%s258] sm:$0xff]
  %v260 = vsub.f32 %v102, %v254
  %v261 = vsub.f32 %v104, %v255
  %v262 = vsub.f32 %v173, %v256
  %v263 = vsub.f32 %v175, %v257
  %265 = vset.pattern.permute.xlu0 0
  %266 = vperm.xlu0 %265, %v259
  %v267 = vpop.permute.xlu0 %266
  %v269 = vmul.f32 %v267, %v260
  %v270 = vmul.f32 %v267, %v261
  %v271 = vmul.f32 %v267, %v262
  %v272 = vmul.f32 %v267, %v263
  %v273 = vadd.f32 %v102, %v269
  %v274 = vadd.f32 %v104, %v270
  %v275 = vadd.f32 %v173, %v271
  %v276 = vadd.f32 %v175, %v272
  %v277 = vmul.f32 %v273, 0.5
  %v278 = vmul.f32 %v274, 0.5
  %v279 = vmul.f32 %v275, 0.5
  %v280 = vmul.f32 %v276, 0.5
  %v281 = vtanh.pop %v277
  %v282 = vtanh.pop %v278
  %v283 = vtanh.pop %v279
  %v284 = vtanh.pop %v280
  %v285 = vadd.f32 %v281, 1.0
  %v286 = vadd.f32 %v282, 1.0
  %v287 = vadd.f32 %v283, 1.0
  %v288 = vadd.f32 %v284, 1.0
  %v289 = vmul.f32 %v285, 0.5
  %v290 = vmul.f32 %v286, 0.5
  %v291 = vmul.f32 %v287, 0.5
  %v292 = vmul.f32 %v288, 0.5
  %v293 = vmul.f32 %v273, %v289
  %v294 = vmul.f32 %v274, %v290
  %v295 = vmul.f32 %v275, %v291
  %v296 = vmul.f32 %v276, %v292
  %s297 = scalar_lea.vmem %s1, 8
  %v298 = vld [vmem:[%s297] sm:$0xff]
  %s299 = scalar_lea.vmem %s2, 16
  %v300 = vld [vmem:[%s299] sm:$0xff]
  %302 = vset.pattern.permute.xlu0 0
  %303 = vperm.xlu0 %302, %v300
  %v304 = vpop.permute.xlu0 %303
  %v307 = vsel %vm31, %v298, 0
  %309 = vmatprep.subr.mxu0 %v294
  %310 = vmatpush1.msra.mxu0 %v293
  %311 = vmatprep.subr.mxu0 0.0
  %312 = vmatpush1.msra.mxu0 0.0
  %313 = vmatprep.subr.mxu0 0.0
  %314 = vmatpush1.msra.mxu0 0.0
  %315 = vmatprep.subr.mxu0 0.0
  %316 = vmatpush1.msra.mxu0 0.0
  %317 = vmatprep.subr.mxu0 0.0
  %318 = vmatpush1.msra.mxu0 0.0
  %319 = vmatprep.subr.mxu0 0.0
  %320 = vmatpush1.msra.mxu0 0.0
  %321 = vmatprep.subr.mxu0 0.0
  %322 = vmatpush1.msra.mxu0 0.0
  %323 = vmatprep.subr.mxu0 0.0
  %324 = vmatpush1.msra.mxu0 0.0
  %325 = vmatprep.subr.mxu0 0.0
  %326 = vmatpush1.msra.mxu0 0.0
  %327 = vmatprep.subr.mxu0 0.0
  %328 = vmatpush1.msra.mxu0 0.0
  %329 = vmatprep.subr.mxu0 0.0
  %330 = vmatpush1.msra.mxu0 0.0
  %331 = vmatprep.subr.mxu0 0.0
  %332 = vmatpush1.msra.mxu0 0.0
  %333 = vmatprep.subr.mxu0 0.0
  %334 = vmatpush1.msra.mxu0 0.0
  %335 = vmatprep.subr.mxu0 0.0
  %336 = vmatpush1.msra.mxu0 0.0
  %337 = vmatprep.subr.mxu0 0.0
  %338 = vmatpush1.msra.mxu0 0.0
  %339 = vmatprep.subr.mxu0 0.0
  %340 = vmatpush1.msra.mxu0 0.0
  %341 = vmatprep.subr.mxu0 0.0
  %342 = vmatpush1.msra.mxu0 0.0
  %343 = vmatprep.subr.mxu0 0.0
  %344 = vmatpush1.msra.mxu0 0.0
  %345 = vmatprep.subr.mxu0 0.0
  %346 = vmatpush1.msra.mxu0 0.0
  %347 = vmatprep.subr.mxu0 0.0
  %348 = vmatpush1.msra.mxu0 0.0
  %349 = vmatprep.subr.mxu0 0.0
  %350 = vmatpush1.msra.mxu0 0.0
  %351 = vmatprep.subr.mxu0 0.0
  %352 = vmatpush1.msra.mxu0 0.0
  %353 = vmatprep.subr.mxu0 0.0
  %354 = vmatpush1.msra.mxu0 0.0
  %355 = vmatprep.subr.mxu0 0.0
  %356 = vmatpush1.msra.mxu0 0.0
  %357 = vmatprep.subr.mxu0 0.0
  %358 = vmatpush1.msra.mxu0 0.0
  %359 = vmatprep.subr.mxu0 0.0
  %360 = vmatpush1.msra.mxu0 0.0
  %361 = vmatprep.subr.mxu0 0.0
  %362 = vmatpush1.msra.mxu0 0.0
  %363 = vmatprep.subr.mxu0 0.0
  %364 = vmatpush1.msra.mxu0 0.0
  %365 = vmatprep.subr.mxu0 0.0
  %366 = vmatpush1.msra.mxu0 0.0
  %367 = vmatprep.subr.mxu0 0.0
  %368 = vmatpush1.msra.mxu0 0.0
  %369 = vmatprep.subr.mxu0 0.0
  %370 = vmatpush1.msra.mxu0 0.0
  %371 = vmatprep.subr.mxu0 0.0
  %372 = vmatpush1.msra.mxu0 0.0
  %373 = vmatprep.mubr.f32.mxu0 0.0
  %374 = vmatmul.mubr.f32.gmra.mrb[0].mxu0 %v307
  %v375 = vpop.f32.mrb[0].mxu0
  %v376 = vadd.f32 %v304, %v375
  %v377 = vpop.f32.mrb[0].mxu0
  %v378 = vadd.f32 %v304, %v377
  %379 = vdwg.mxu0
  %380 = vmatprep.subr.mxu0 %v296
  %381 = vmatpush1.msra.mxu0 %v295
  %382 = vmatprep.subr.mxu0 0.0
  %383 = vmatpush1.msra.mxu0 0.0
  %384 = vmatprep.subr.mxu0 0.0
  %385 = vmatpush1.msra.mxu0 0.0
  %386 = vmatprep.subr.mxu0 0.0
  %387 = vmatpush1.msra.mxu0 0.0
  %388 = vmatprep.subr.mxu0 0.0
  %389 = vmatpush1.msra.mxu0 0.0
  %390 = vmatprep.subr.mxu0 0.0
  %391 = vmatpush1.msra.mxu0 0.0
  %392 = vmatprep.subr.mxu0 0.0
  %393 = vmatpush1.msra.mxu0 0.0
  %394 = vmatprep.subr.mxu0 0.0
  %395 = vmatpush1.msra.mxu0 0.0
  %396 = vmatprep.subr.mxu0 0.0
  %397 = vmatpush1.msra.mxu0 0.0
  %398 = vmatprep.subr.mxu0 0.0
  %399 = vmatpush1.msra.mxu0 0.0
  %400 = vmatprep.subr.mxu0 0.0
  %401 = vmatpush1.msra.mxu0 0.0
  %402 = vmatprep.subr.mxu0 0.0
  %403 = vmatpush1.msra.mxu0 0.0
  %404 = vmatprep.subr.mxu0 0.0
  %405 = vmatpush1.msra.mxu0 0.0
  %406 = vmatprep.subr.mxu0 0.0
  %407 = vmatpush1.msra.mxu0 0.0
  %408 = vmatprep.subr.mxu0 0.0
  %409 = vmatpush1.msra.mxu0 0.0
  %410 = vmatprep.subr.mxu0 0.0
  %411 = vmatpush1.msra.mxu0 0.0
  %412 = vmatprep.subr.mxu0 0.0
  %413 = vmatpush1.msra.mxu0 0.0
  %414 = vmatprep.subr.mxu0 0.0
  %415 = vmatpush1.msra.mxu0 0.0
  %416 = vmatprep.subr.mxu0 0.0
  %417 = vmatpush1.msra.mxu0 0.0
  %418 = vmatprep.subr.mxu0 0.0
  %419 = vmatpush1.msra.mxu0 0.0
  %420 = vmatprep.subr.mxu0 0.0
  %421 = vmatpush1.msra.mxu0 0.0
  %422 = vmatprep.subr.mxu0 0.0
  %423 = vmatpush1.msra.mxu0 0.0
  %424 = vmatprep.subr.mxu0 0.0
  %425 = vmatpush1.msra.mxu0 0.0
  %426 = vmatprep.subr.mxu0 0.0
  %427 = vmatpush1.msra.mxu0 0.0
  %428 = vmatprep.subr.mxu0 0.0
  %429 = vmatpush1.msra.mxu0 0.0
  %430 = vmatprep.subr.mxu0 0.0
  %431 = vmatpush1.msra.mxu0 0.0
  %432 = vmatprep.subr.mxu0 0.0
  %433 = vmatpush1.msra.mxu0 0.0
  %434 = vmatprep.subr.mxu0 0.0
  %435 = vmatpush1.msra.mxu0 0.0
  %436 = vmatprep.subr.mxu0 0.0
  %437 = vmatpush1.msra.mxu0 0.0
  %438 = vmatprep.subr.mxu0 0.0
  %439 = vmatpush1.msra.mxu0 0.0
  %440 = vmatprep.subr.mxu0 0.0
  %441 = vmatpush1.msra.mxu0 0.0
  %442 = vmatprep.subr.mxu0 0.0
  %443 = vmatpush1.msra.mxu0 0.0
  %444 = vmatprep.mubr.f32.mxu0 0.0
  %445 = vmatmul.mubr.f32.gmra.mrb[0].mxu0 %v307
  %v446 = vpop.f32.mrb[0].mxu0
  %v447 = vadd.f32 %v304, %v446
  %v448 = vpop.f32.mrb[0].mxu0
  %v449 = vadd.f32 %v304, %v448
  %450 = vdwg.mxu0
  %v451 = vmul.f32 %v376, 0.5
  %v452 = vmul.f32 %v378, 0.5
  %v453 = vmul.f32 %v447, 0.5
  %v454 = vmul.f32 %v449, 0.5
  %v455 = vtanh.pop %v451
  %v456 = vtanh.pop %v452
  %v457 = vtanh.pop %v453
  %v458 = vtanh.pop %v454
  %v459 = vadd.f32 %v455, 1.0
  %v460 = vadd.f32 %v456, 1.0
  %v461 = vadd.f32 %v457, 1.0
  %v462 = vadd.f32 %v458, 1.0
  %v463 = vmul.f32 %v459, 0.5
  %v464 = vmul.f32 %v460, 0.5
  %v465 = vmul.f32 %v461, 0.5
  %v466 = vmul.f32 %v462, 0.5
  %v467 = vmul.f32 %v376, %v463
  %v468 = vmul.f32 %v378, %v464
  %v469 = vmul.f32 %v447, %v465
  %v470 = vmul.f32 %v449, %v466
  %471 = vrot.lane.b32.xlu0 %v293, 34
  %v472 = vpop.permute.xlu0 %471
  %473 = vrot.lane.b32.xlu0 %v294, 34
  %v474 = vpop.permute.xlu0 %473
  %475 = vrot.lane.b32.xlu0 %v295, 34
  %v476 = vpop.permute.xlu0 %475
  %477 = vrot.lane.b32.xlu0 %v296, 34
  %v478 = vpop.permute.xlu0 %477
  %v479 = vlaneseq
  %v480 = vand.u32 %v479, 127
  %vm481 = vcmp.lt.s32.totalorder %v480, 34
  %v482 = vsel %vm481, %v476, %v478
  %v483 = vsel %vm481, %v474, %v476
  %v484 = vsel %vm481, %v472, %v474
  %v485 = vsel %vm481, %v478, %v472
  %v486 = vld [vmem:[%s3] sm:$0xff]
  %v487 = vld [vmem:[%s3 + $0x8] sm:$0xff]
  %v488 = vld [vmem:[%s3 + $0x10] sm:$0xff]
  %v489 = vld [vmem:[%s3 + $0x18] sm:$0xff]
  %v490 = vmul.f32 %v485, %v486
  %v491 = vmul.f32 %v484, %v487
  %v492 = vmul.f32 %v483, %v488
  %v493 = vmul.f32 %v482, %v489
  %v494 = vadd.f32 %v490, 0.0
  %v495 = vadd.f32 %v491, 0.0
  %v496 = vadd.f32 %v492, 0.0
  %v497 = vadd.f32 %v493, 0.0
  %498 = vrot.lane.b32.xlu0 %v293, 33
  %v499 = vpop.permute.xlu0 %498
  %500 = vrot.lane.b32.xlu0 %v294, 33
  %v501 = vpop.permute.xlu0 %500
  %502 = vrot.lane.b32.xlu0 %v295, 33
  %v503 = vpop.permute.xlu0 %502
  %504 = vrot.lane.b32.xlu0 %v296, 33
  %v505 = vpop.permute.xlu0 %504
  %vm506 = vcmp.lt.s32.totalorder %v480, 33
  %v507 = vsel %vm506, %v503, %v505
  %v508 = vsel %vm506, %v501, %v503
  %v509 = vsel %vm506, %v499, %v501
  %v510 = vsel %vm506, %v505, %v499
  %s511 = scalar_lea.vmem %s3, 32
  %v512 = vld [vmem:[%s511] sm:$0xff]
  %v513 = vld [vmem:[%s511 + $0x8] sm:$0xff]
  %v514 = vld [vmem:[%s511 + $0x10] sm:$0xff]
  %v515 = vld [vmem:[%s511 + $0x18] sm:$0xff]
  %v516 = vmul.f32 %v510, %v512
  %v517 = vmul.f32 %v509, %v513
  %v518 = vmul.f32 %v508, %v514
  %v519 = vmul.f32 %v507, %v515
  %v520 = vadd.f32 %v494, %v516
  %v521 = vadd.f32 %v495, %v517
  %v522 = vadd.f32 %v496, %v518
  %v523 = vadd.f32 %v497, %v519
  %524 = vrot.lane.b32.xlu0 %v293, 32
  %v525 = vpop.permute.xlu0 %524
  %526 = vrot.lane.b32.xlu0 %v294, 32
  %v527 = vpop.permute.xlu0 %526
  %528 = vrot.lane.b32.xlu0 %v295, 32
  %v529 = vpop.permute.xlu0 %528
  %530 = vrot.lane.b32.xlu0 %v296, 32
  %v531 = vpop.permute.xlu0 %530
  %vm532 = vcmp.lt.s32.totalorder %v480, 32
  %v533 = vsel %vm532, %v529, %v531
  %v534 = vsel %vm532, %v527, %v529
  %v535 = vsel %vm532, %v525, %v527
  %v536 = vsel %vm532, %v531, %v525
  %s537 = scalar_lea.vmem %s3, 64
  %v538 = vld [vmem:[%s537] sm:$0xff]
  %v539 = vld [vmem:[%s537 + $0x8] sm:$0xff]
  %v540 = vld [vmem:[%s537 + $0x10] sm:$0xff]
  %v541 = vld [vmem:[%s537 + $0x18] sm:$0xff]
  %v542 = vmul.f32 %v536, %v538
  %v543 = vmul.f32 %v535, %v539
  %v544 = vmul.f32 %v534, %v540
  %v545 = vmul.f32 %v533, %v541
  %v546 = vadd.f32 %v520, %v542
  %v547 = vadd.f32 %v521, %v543
  %v548 = vadd.f32 %v522, %v544
  %v549 = vadd.f32 %v523, %v545
  %550 = vrot.lane.b32.xlu0 %v293, 31
  %v551 = vpop.permute.xlu0 %550
  %552 = vrot.lane.b32.xlu0 %v294, 31
  %v553 = vpop.permute.xlu0 %552
  %554 = vrot.lane.b32.xlu0 %v295, 31
  %v555 = vpop.permute.xlu0 %554
  %556 = vrot.lane.b32.xlu0 %v296, 31
  %v557 = vpop.permute.xlu0 %556
  %vm558 = vcmp.lt.s32.totalorder %v480, 31
  %v559 = vsel %vm558, %v555, %v557
  %v560 = vsel %vm558, %v553, %v555
  %v561 = vsel %vm558, %v551, %v553
  %v562 = vsel %vm558, %v557, %v551
  %s563 = scalar_lea.vmem %s3, 96
  %v564 = vld [vmem:[%s563] sm:$0xff]
  %v565 = vld [vmem:[%s563 + $0x8] sm:$0xff]
  %v566 = vld [vmem:[%s563 + $0x10] sm:$0xff]
  %v567 = vld [vmem:[%s563 + $0x18] sm:$0xff]
  %v568 = vmul.f32 %v562, %v564
  %v569 = vmul.f32 %v561, %v565
  %v570 = vmul.f32 %v560, %v566
  %v571 = vmul.f32 %v559, %v567
  %v572 = vadd.f32 %v546, %v568
  %v573 = vadd.f32 %v547, %v569
  %v574 = vadd.f32 %v548, %v570
  %v575 = vadd.f32 %v549, %v571
  %576 = vrot.lane.b32.xlu0 %v293, 30
  %v577 = vpop.permute.xlu0 %576
  %578 = vrot.lane.b32.xlu0 %v294, 30
  %v579 = vpop.permute.xlu0 %578
  %580 = vrot.lane.b32.xlu0 %v295, 30
  %v581 = vpop.permute.xlu0 %580
  %582 = vrot.lane.b32.xlu0 %v296, 30
  %v583 = vpop.permute.xlu0 %582
  %vm584 = vcmp.lt.s32.totalorder %v480, 30
  %v585 = vsel %vm584, %v581, %v583
  %v586 = vsel %vm584, %v579, %v581
  %v587 = vsel %vm584, %v577, %v579
  %v588 = vsel %vm584, %v583, %v577
  %s589 = scalar_lea.vmem %s3, 128
  %v590 = vld [vmem:[%s589] sm:$0xff]
  %v591 = vld [vmem:[%s589 + $0x8] sm:$0xff]
  %v592 = vld [vmem:[%s589 + $0x10] sm:$0xff]
  %v593 = vld [vmem:[%s589 + $0x18] sm:$0xff]
  %v594 = vmul.f32 %v588, %v590
  %v595 = vmul.f32 %v587, %v591
  %v596 = vmul.f32 %v586, %v592
  %v597 = vmul.f32 %v585, %v593
  %v598 = vadd.f32 %v572, %v594
  %v599 = vadd.f32 %v573, %v595
  %v600 = vadd.f32 %v574, %v596
  %v601 = vadd.f32 %v575, %v597
  %602 = vrot.lane.b32.xlu0 %v293, 18
  %v603 = vpop.permute.xlu0 %602
  %604 = vrot.lane.b32.xlu0 %v294, 18
  %v605 = vpop.permute.xlu0 %604
  %606 = vrot.lane.b32.xlu0 %v295, 18
  %v607 = vpop.permute.xlu0 %606
  %608 = vrot.lane.b32.xlu0 %v296, 18
  %v609 = vpop.permute.xlu0 %608
  %vm610 = vcmp.lt.s32.totalorder %v480, 18
  %v611 = vsel %vm610, %v607, %v609
  %v612 = vsel %vm610, %v605, %v607
  %v613 = vsel %vm610, %v603, %v605
  %v614 = vsel %vm610, %v609, %v603
  %s615 = scalar_lea.vmem %s3, 160
  %v616 = vld [vmem:[%s615] sm:$0xff]
  %v617 = vld [vmem:[%s615 + $0x8] sm:$0xff]
  %v618 = vld [vmem:[%s615 + $0x10] sm:$0xff]
  %v619 = vld [vmem:[%s615 + $0x18] sm:$0xff]
  %v620 = vmul.f32 %v614, %v616
  %v621 = vmul.f32 %v613, %v617
  %v622 = vmul.f32 %v612, %v618
  %v623 = vmul.f32 %v611, %v619
  %v624 = vadd.f32 %v598, %v620
  %v625 = vadd.f32 %v599, %v621
  %v626 = vadd.f32 %v600, %v622
  %v627 = vadd.f32 %v601, %v623
  %628 = vrot.lane.b32.xlu0 %v293, 17
  %v629 = vpop.permute.xlu0 %628
  %630 = vrot.lane.b32.xlu0 %v294, 17
  %v631 = vpop.permute.xlu0 %630
  %632 = vrot.lane.b32.xlu0 %v295, 17
  %v633 = vpop.permute.xlu0 %632
  %634 = vrot.lane.b32.xlu0 %v296, 17
  %v635 = vpop.permute.xlu0 %634
  %vm636 = vcmp.lt.s32.totalorder %v480, 17
  %v637 = vsel %vm636, %v633, %v635
  %v638 = vsel %vm636, %v631, %v633
  %v639 = vsel %vm636, %v629, %v631
  %v640 = vsel %vm636, %v635, %v629
  %s641 = scalar_lea.vmem %s3, 192
  %v642 = vld [vmem:[%s641] sm:$0xff]
  %v643 = vld [vmem:[%s641 + $0x8] sm:$0xff]
  %v644 = vld [vmem:[%s641 + $0x10] sm:$0xff]
  %v645 = vld [vmem:[%s641 + $0x18] sm:$0xff]
  %v646 = vmul.f32 %v640, %v642
  %v647 = vmul.f32 %v639, %v643
  %v648 = vmul.f32 %v638, %v644
  %v649 = vmul.f32 %v637, %v645
  %v650 = vadd.f32 %v624, %v646
  %v651 = vadd.f32 %v625, %v647
  %v652 = vadd.f32 %v626, %v648
  %v653 = vadd.f32 %v627, %v649
  %654 = vrot.lane.b32.xlu0 %v293, 16
  %v655 = vpop.permute.xlu0 %654
  %656 = vrot.lane.b32.xlu0 %v294, 16
  %v657 = vpop.permute.xlu0 %656
  %658 = vrot.lane.b32.xlu0 %v295, 16
  %v659 = vpop.permute.xlu0 %658
  %660 = vrot.lane.b32.xlu0 %v296, 16
  %v661 = vpop.permute.xlu0 %660
  %vm662 = vcmp.lt.s32.totalorder %v480, 16
  %v663 = vsel %vm662, %v659, %v661
  %v664 = vsel %vm662, %v657, %v659
  %v665 = vsel %vm662, %v655, %v657
  %v666 = vsel %vm662, %v661, %v655
  %s667 = scalar_lea.vmem %s3, 224
  %v668 = vld [vmem:[%s667] sm:$0xff]
  %v669 = vld [vmem:[%s667 + $0x8] sm:$0xff]
  %v670 = vld [vmem:[%s667 + $0x10] sm:$0xff]
  %v671 = vld [vmem:[%s667 + $0x18] sm:$0xff]
  %v672 = vmul.f32 %v666, %v668
  %v673 = vmul.f32 %v665, %v669
  %v674 = vmul.f32 %v664, %v670
  %v675 = vmul.f32 %v663, %v671
  %v676 = vadd.f32 %v650, %v672
  %v677 = vadd.f32 %v651, %v673
  %v678 = vadd.f32 %v652, %v674
  %v679 = vadd.f32 %v653, %v675
  %680 = vrot.lane.b32.xlu0 %v293, 15
  %v681 = vpop.permute.xlu0 %680
  %682 = vrot.lane.b32.xlu0 %v294, 15
  %v683 = vpop.permute.xlu0 %682
  %684 = vrot.lane.b32.xlu0 %v295, 15
  %v685 = vpop.permute.xlu0 %684
  %686 = vrot.lane.b32.xlu0 %v296, 15
  %v687 = vpop.permute.xlu0 %686
  %vm688 = vcmp.lt.s32.totalorder %v480, 15
  %v689 = vsel %vm688, %v685, %v687
  %v690 = vsel %vm688, %v683, %v685
  %v691 = vsel %vm688, %v681, %v683
  %v692 = vsel %vm688, %v687, %v681
  %s693 = scalar_lea.vmem %s3, 256
  %v694 = vld [vmem:[%s693] sm:$0xff]
  %v695 = vld [vmem:[%s693 + $0x8] sm:$0xff]
  %v696 = vld [vmem:[%s693 + $0x10] sm:$0xff]
  %v697 = vld [vmem:[%s693 + $0x18] sm:$0xff]
  %v698 = vmul.f32 %v692, %v694
  %v699 = vmul.f32 %v691, %v695
  %v700 = vmul.f32 %v690, %v696
  %v701 = vmul.f32 %v689, %v697
  %v702 = vadd.f32 %v676, %v698
  %v703 = vadd.f32 %v677, %v699
  %v704 = vadd.f32 %v678, %v700
  %v705 = vadd.f32 %v679, %v701
  %706 = vrot.lane.b32.xlu0 %v293, 14
  %v707 = vpop.permute.xlu0 %706
  %708 = vrot.lane.b32.xlu0 %v294, 14
  %v709 = vpop.permute.xlu0 %708
  %710 = vrot.lane.b32.xlu0 %v295, 14
  %v711 = vpop.permute.xlu0 %710
  %712 = vrot.lane.b32.xlu0 %v296, 14
  %v713 = vpop.permute.xlu0 %712
  %vm714 = vcmp.lt.s32.totalorder %v480, 14
  %v715 = vsel %vm714, %v711, %v713
  %v716 = vsel %vm714, %v709, %v711
  %v717 = vsel %vm714, %v707, %v709
  %v718 = vsel %vm714, %v713, %v707
  %s719 = scalar_lea.vmem %s3, 288
  %v720 = vld [vmem:[%s719] sm:$0xff]
  %v721 = vld [vmem:[%s719 + $0x8] sm:$0xff]
  %v722 = vld [vmem:[%s719 + $0x10] sm:$0xff]
  %v723 = vld [vmem:[%s719 + $0x18] sm:$0xff]
  %v724 = vmul.f32 %v718, %v720
  %v725 = vmul.f32 %v717, %v721
  %v726 = vmul.f32 %v716, %v722
  %v727 = vmul.f32 %v715, %v723
  %v728 = vadd.f32 %v702, %v724
  %v729 = vadd.f32 %v703, %v725
  %v730 = vadd.f32 %v704, %v726
  %v731 = vadd.f32 %v705, %v727
  %732 = vrot.lane.b32.xlu0 %v293, 2
  %v733 = vpop.permute.xlu0 %732
  %734 = vrot.lane.b32.xlu0 %v294, 2
  %v735 = vpop.permute.xlu0 %734
  %736 = vrot.lane.b32.xlu0 %v295, 2
  %v737 = vpop.permute.xlu0 %736
  %738 = vrot.lane.b32.xlu0 %v296, 2
  %v739 = vpop.permute.xlu0 %738
  %vm740 = vcmp.lt.s32.totalorder %v480, 2
  %v741 = vsel %vm740, %v737, %v739
  %v742 = vsel %vm740, %v735, %v737
  %v743 = vsel %vm740, %v733, %v735
  %v744 = vsel %vm740, %v739, %v733
  %s745 = scalar_lea.vmem %s3, 320
  %v746 = vld [vmem:[%s745] sm:$0xff]
  %v747 = vld [vmem:[%s745 + $0x8] sm:$0xff]
  %v748 = vld [vmem:[%s745 + $0x10] sm:$0xff]
  %v749 = vld [vmem:[%s745 + $0x18] sm:$0xff]
  %v750 = vmul.f32 %v744, %v746
  %v751 = vmul.f32 %v743, %v747
  %v752 = vmul.f32 %v742, %v748
  %v753 = vmul.f32 %v741, %v749
  %v754 = vadd.f32 %v728, %v750
  %v755 = vadd.f32 %v729, %v751
  %v756 = vadd.f32 %v730, %v752
  %v757 = vadd.f32 %v731, %v753
  %758 = vrot.lane.b32.xlu0 %v293, 1
  %v759 = vpop.permute.xlu0 %758
  %760 = vrot.lane.b32.xlu0 %v294, 1
  %v761 = vpop.permute.xlu0 %760
  %762 = vrot.lane.b32.xlu0 %v295, 1
  %v763 = vpop.permute.xlu0 %762
  %764 = vrot.lane.b32.xlu0 %v296, 1
  %v765 = vpop.permute.xlu0 %764
  %vm766 = vcmp.lt.s32.totalorder %v480, 1
  %v767 = vsel %vm766, %v763, %v765
  %v768 = vsel %vm766, %v761, %v763
  %v769 = vsel %vm766, %v759, %v761
  %v770 = vsel %vm766, %v765, %v759
  %s771 = scalar_lea.vmem %s3, 352
  %v772 = vld [vmem:[%s771] sm:$0xff]
  %v773 = vld [vmem:[%s771 + $0x8] sm:$0xff]
  %v774 = vld [vmem:[%s771 + $0x10] sm:$0xff]
  %v775 = vld [vmem:[%s771 + $0x18] sm:$0xff]
  %v776 = vmul.f32 %v770, %v772
  %v777 = vmul.f32 %v769, %v773
  %v778 = vmul.f32 %v768, %v774
  %v779 = vmul.f32 %v767, %v775
  %v780 = vadd.f32 %v754, %v776
  %v781 = vadd.f32 %v755, %v777
  %v782 = vadd.f32 %v756, %v778
  %v783 = vadd.f32 %v757, %v779
  %s784 = scalar_lea.vmem %s3, 384
  %v785 = vld [vmem:[%s784] sm:$0xff]
  %v786 = vld [vmem:[%s784 + $0x8] sm:$0xff]
  %v787 = vld [vmem:[%s784 + $0x10] sm:$0xff]
  %v788 = vld [vmem:[%s784 + $0x18] sm:$0xff]
  %v789 = vmul.f32 %v293, %v785
  %v790 = vmul.f32 %v294, %v786
  %v791 = vmul.f32 %v295, %v787
  %v792 = vmul.f32 %v296, %v788
  %v793 = vadd.f32 %v780, %v789
  %v794 = vadd.f32 %v781, %v790
  %v795 = vadd.f32 %v782, %v791
  %v796 = vadd.f32 %v783, %v792
  %797 = vrot.lane.b32.xlu0 %v293, 127
  %v798 = vpop.permute.xlu0 %797
  %799 = vrot.lane.b32.xlu0 %v294, 127
  %v800 = vpop.permute.xlu0 %799
  %801 = vrot.lane.b32.xlu0 %v295, 127
  %v802 = vpop.permute.xlu0 %801
  %803 = vrot.lane.b32.xlu0 %v296, 127
  %v804 = vpop.permute.xlu0 %803
  %vm805 = vcmp.lt.s32.totalorder %v480, 127
  %v806 = vsel %vm805, %v802, %v804
  %v807 = vsel %vm805, %v800, %v802
  %v808 = vsel %vm805, %v798, %v800
  %v809 = vsel %vm805, %v804, %v798
  %s810 = scalar_lea.vmem %s3, 416
  %v811 = vld [vmem:[%s810] sm:$0xff]
  %v812 = vld [vmem:[%s810 + $0x8] sm:$0xff]
  %v813 = vld [vmem:[%s810 + $0x10] sm:$0xff]
  %v814 = vld [vmem:[%s810 + $0x18] sm:$0xff]
  %v815 = vmul.f32 %v808, %v811
  %v816 = vmul.f32 %v807, %v812
  %v817 = vmul.f32 %v806, %v813
  %v818 = vmul.f32 %v809, %v814
  %v819 = vadd.f32 %v793, %v815
  %v820 = vadd.f32 %v794, %v816
  %v821 = vadd.f32 %v795, %v817
  %v822 = vadd.f32 %v796, %v818
  %823 = vrot.lane.b32.xlu0 %v293, 126
  %v824 = vpop.permute.xlu0 %823
  %825 = vrot.lane.b32.xlu0 %v294, 126
  %v826 = vpop.permute.xlu0 %825
  %827 = vrot.lane.b32.xlu0 %v295, 126
  %v828 = vpop.permute.xlu0 %827
  %829 = vrot.lane.b32.xlu0 %v296, 126
  %v830 = vpop.permute.xlu0 %829
  %vm831 = vcmp.lt.s32.totalorder %v480, 126
  %v832 = vsel %vm831, %v828, %v830
  %v833 = vsel %vm831, %v826, %v828
  %v834 = vsel %vm831, %v824, %v826
  %v835 = vsel %vm831, %v830, %v824
  %s836 = scalar_lea.vmem %s3, 448
  %v837 = vld [vmem:[%s836] sm:$0xff]
  %v838 = vld [vmem:[%s836 + $0x8] sm:$0xff]
  %v839 = vld [vmem:[%s836 + $0x10] sm:$0xff]
  %v840 = vld [vmem:[%s836 + $0x18] sm:$0xff]
  %v841 = vmul.f32 %v834, %v837
  %v842 = vmul.f32 %v833, %v838
  %v843 = vmul.f32 %v832, %v839
  %v844 = vmul.f32 %v835, %v840
  %v845 = vadd.f32 %v819, %v841
  %v846 = vadd.f32 %v820, %v842
  %v847 = vadd.f32 %v821, %v843
  %v848 = vadd.f32 %v822, %v844
  %849 = vrot.lane.b32.xlu0 %v293, 114
  %v850 = vpop.permute.xlu0 %849
  %851 = vrot.lane.b32.xlu0 %v294, 114
  %v852 = vpop.permute.xlu0 %851
  %853 = vrot.lane.b32.xlu0 %v295, 114
  %v854 = vpop.permute.xlu0 %853
  %855 = vrot.lane.b32.xlu0 %v296, 114
  %v856 = vpop.permute.xlu0 %855
  %vm857 = vcmp.lt.s32.totalorder %v480, 114
  %v858 = vsel %vm857, %v854, %v856
  %v859 = vsel %vm857, %v852, %v854
  %v860 = vsel %vm857, %v850, %v852
  %v861 = vsel %vm857, %v856, %v850
  %s862 = scalar_lea.vmem %s3, 480
  %v863 = vld [vmem:[%s862] sm:$0xff]
  %v864 = vld [vmem:[%s862 + $0x8] sm:$0xff]
  %v865 = vld [vmem:[%s862 + $0x10] sm:$0xff]
  %v866 = vld [vmem:[%s862 + $0x18] sm:$0xff]
  %v867 = vmul.f32 %v860, %v863
  %v868 = vmul.f32 %v859, %v864
  %v869 = vmul.f32 %v858, %v865
  %v870 = vmul.f32 %v861, %v866
  %v871 = vadd.f32 %v845, %v867
  %v872 = vadd.f32 %v846, %v868
  %v873 = vadd.f32 %v847, %v869
  %v874 = vadd.f32 %v848, %v870
  %875 = vrot.lane.b32.xlu0 %v293, 113
  %v876 = vpop.permute.xlu0 %875
  %877 = vrot.lane.b32.xlu0 %v294, 113
  %v878 = vpop.permute.xlu0 %877
  %879 = vrot.lane.b32.xlu0 %v295, 113
  %v880 = vpop.permute.xlu0 %879
  %881 = vrot.lane.b32.xlu0 %v296, 113
  %v882 = vpop.permute.xlu0 %881
  %vm883 = vcmp.lt.s32.totalorder %v480, 113
  %v884 = vsel %vm883, %v880, %v882
  %v885 = vsel %vm883, %v878, %v880
  %v886 = vsel %vm883, %v876, %v878
  %v887 = vsel %vm883, %v882, %v876
  %s888 = scalar_lea.vmem %s3, 512
  %v889 = vld [vmem:[%s888] sm:$0xff]
  %v890 = vld [vmem:[%s888 + $0x8] sm:$0xff]
  %v891 = vld [vmem:[%s888 + $0x10] sm:$0xff]
  %v892 = vld [vmem:[%s888 + $0x18] sm:$0xff]
  %v893 = vmul.f32 %v886, %v889
  %v894 = vmul.f32 %v885, %v890
  %v895 = vmul.f32 %v884, %v891
  %v896 = vmul.f32 %v887, %v892
  %v897 = vadd.f32 %v871, %v893
  %v898 = vadd.f32 %v872, %v894
  %v899 = vadd.f32 %v873, %v895
  %v900 = vadd.f32 %v874, %v896
  %901 = vrot.lane.b32.xlu0 %v293, 112
  %v902 = vpop.permute.xlu0 %901
  %903 = vrot.lane.b32.xlu0 %v294, 112
  %v904 = vpop.permute.xlu0 %903
  %905 = vrot.lane.b32.xlu0 %v295, 112
  %v906 = vpop.permute.xlu0 %905
  %907 = vrot.lane.b32.xlu0 %v296, 112
  %v908 = vpop.permute.xlu0 %907
  %vm909 = vcmp.lt.s32.totalorder %v480, 112
  %v910 = vsel %vm909, %v906, %v908
  %v911 = vsel %vm909, %v904, %v906
  %v912 = vsel %vm909, %v902, %v904
  %v913 = vsel %vm909, %v908, %v902
  %s914 = scalar_lea.vmem %s3, 544
  %v915 = vld [vmem:[%s914] sm:$0xff]
  %v916 = vld [vmem:[%s914 + $0x8] sm:$0xff]
  %v917 = vld [vmem:[%s914 + $0x10] sm:$0xff]
  %v918 = vld [vmem:[%s914 + $0x18] sm:$0xff]
  %v919 = vmul.f32 %v912, %v915
  %v920 = vmul.f32 %v911, %v916
  %v921 = vmul.f32 %v910, %v917
  %v922 = vmul.f32 %v913, %v918
  %v923 = vadd.f32 %v897, %v919
  %v924 = vadd.f32 %v898, %v920
  %v925 = vadd.f32 %v899, %v921
  %v926 = vadd.f32 %v900, %v922
  %927 = vrot.lane.b32.xlu0 %v293, 111
  %v928 = vpop.permute.xlu0 %927
  %929 = vrot.lane.b32.xlu0 %v294, 111
  %v930 = vpop.permute.xlu0 %929
  %931 = vrot.lane.b32.xlu0 %v295, 111
  %v932 = vpop.permute.xlu0 %931
  %933 = vrot.lane.b32.xlu0 %v296, 111
  %v934 = vpop.permute.xlu0 %933
  %vm935 = vcmp.lt.s32.totalorder %v480, 111
  %v936 = vsel %vm935, %v932, %v934
  %v937 = vsel %vm935, %v930, %v932
  %v938 = vsel %vm935, %v928, %v930
  %v939 = vsel %vm935, %v934, %v928
  %s940 = scalar_lea.vmem %s3, 576
  %v941 = vld [vmem:[%s940] sm:$0xff]
  %v942 = vld [vmem:[%s940 + $0x8] sm:$0xff]
  %v943 = vld [vmem:[%s940 + $0x10] sm:$0xff]
  %v944 = vld [vmem:[%s940 + $0x18] sm:$0xff]
  %v945 = vmul.f32 %v938, %v941
  %v946 = vmul.f32 %v937, %v942
  %v947 = vmul.f32 %v936, %v943
  %v948 = vmul.f32 %v939, %v944
  %v949 = vadd.f32 %v923, %v945
  %v950 = vadd.f32 %v924, %v946
  %v951 = vadd.f32 %v925, %v947
  %v952 = vadd.f32 %v926, %v948
  %953 = vrot.lane.b32.xlu0 %v293, 110
  %v954 = vpop.permute.xlu0 %953
  %955 = vrot.lane.b32.xlu0 %v294, 110
  %v956 = vpop.permute.xlu0 %955
  %957 = vrot.lane.b32.xlu0 %v295, 110
  %v958 = vpop.permute.xlu0 %957
  %959 = vrot.lane.b32.xlu0 %v296, 110
  %v960 = vpop.permute.xlu0 %959
  %vm961 = vcmp.lt.s32.totalorder %v480, 110
  %v962 = vsel %vm961, %v958, %v960
  %v963 = vsel %vm961, %v956, %v958
  %v964 = vsel %vm961, %v954, %v956
  %v965 = vsel %vm961, %v960, %v954
  %s966 = scalar_lea.vmem %s3, 608
  %v967 = vld [vmem:[%s966] sm:$0xff]
  %v968 = vld [vmem:[%s966 + $0x8] sm:$0xff]
  %v969 = vld [vmem:[%s966 + $0x10] sm:$0xff]
  %v970 = vld [vmem:[%s966 + $0x18] sm:$0xff]
  %v971 = vmul.f32 %v964, %v967
  %v972 = vmul.f32 %v963, %v968
  %v973 = vmul.f32 %v962, %v969
  %v974 = vmul.f32 %v965, %v970
  %v975 = vadd.f32 %v949, %v971
  %v976 = vadd.f32 %v950, %v972
  %v977 = vadd.f32 %v951, %v973
  %v978 = vadd.f32 %v952, %v974
  %979 = vrot.lane.b32.xlu0 %v293, 98
  %v980 = vpop.permute.xlu0 %979
  %981 = vrot.lane.b32.xlu0 %v294, 98
  %v982 = vpop.permute.xlu0 %981
  %983 = vrot.lane.b32.xlu0 %v295, 98
  %v984 = vpop.permute.xlu0 %983
  %985 = vrot.lane.b32.xlu0 %v296, 98
  %v986 = vpop.permute.xlu0 %985
  %vm987 = vcmp.lt.s32.totalorder %v480, 98
  %v988 = vsel %vm987, %v984, %v986
  %v989 = vsel %vm987, %v982, %v984
  %v990 = vsel %vm987, %v980, %v982
  %v991 = vsel %vm987, %v986, %v980
  %s992 = scalar_lea.vmem %s3, 640
  %v993 = vld [vmem:[%s992] sm:$0xff]
  %v994 = vld [vmem:[%s992 + $0x8] sm:$0xff]
  %v995 = vld [vmem:[%s992 + $0x10] sm:$0xff]
  %v996 = vld [vmem:[%s992 + $0x18] sm:$0xff]
  %v997 = vmul.f32 %v990, %v993
  %v998 = vmul.f32 %v989, %v994
  %v999 = vmul.f32 %v988, %v995
  %v1000 = vmul.f32 %v991, %v996
  %v1001 = vadd.f32 %v975, %v997
  %v1002 = vadd.f32 %v976, %v998
  %v1003 = vadd.f32 %v977, %v999
  %v1004 = vadd.f32 %v978, %v1000
  %1005 = vrot.lane.b32.xlu0 %v293, 97
  %v1006 = vpop.permute.xlu0 %1005
  %1007 = vrot.lane.b32.xlu0 %v294, 97
  %v1008 = vpop.permute.xlu0 %1007
  %1009 = vrot.lane.b32.xlu0 %v295, 97
  %v1010 = vpop.permute.xlu0 %1009
  %1011 = vrot.lane.b32.xlu0 %v296, 97
  %v1012 = vpop.permute.xlu0 %1011
  %vm1013 = vcmp.lt.s32.totalorder %v480, 97
  %v1014 = vsel %vm1013, %v1010, %v1012
  %v1015 = vsel %vm1013, %v1008, %v1010
  %v1016 = vsel %vm1013, %v1006, %v1008
  %v1017 = vsel %vm1013, %v1012, %v1006
  %s1018 = scalar_lea.vmem %s3, 672
  %v1019 = vld [vmem:[%s1018] sm:$0xff]
  %v1020 = vld [vmem:[%s1018 + $0x8] sm:$0xff]
  %v1021 = vld [vmem:[%s1018 + $0x10] sm:$0xff]
  %v1022 = vld [vmem:[%s1018 + $0x18] sm:$0xff]
  %v1023 = vmul.f32 %v1016, %v1019
  %v1024 = vmul.f32 %v1015, %v1020
  %v1025 = vmul.f32 %v1014, %v1021
  %v1026 = vmul.f32 %v1017, %v1022
  %v1027 = vadd.f32 %v1001, %v1023
  %v1028 = vadd.f32 %v1002, %v1024
  %v1029 = vadd.f32 %v1003, %v1025
  %v1030 = vadd.f32 %v1004, %v1026
  %1031 = vrot.lane.b32.xlu0 %v293, 96
  %v1032 = vpop.permute.xlu0 %1031
  %1033 = vrot.lane.b32.xlu0 %v294, 96
  %v1034 = vpop.permute.xlu0 %1033
  %1035 = vrot.lane.b32.xlu0 %v295, 96
  %v1036 = vpop.permute.xlu0 %1035
  %1037 = vrot.lane.b32.xlu0 %v296, 96
  %v1038 = vpop.permute.xlu0 %1037
  %vm1039 = vcmp.lt.s32.totalorder %v480, 96
  %v1040 = vsel %vm1039, %v1036, %v1038
  %v1041 = vsel %vm1039, %v1034, %v1036
  %v1042 = vsel %vm1039, %v1032, %v1034
  %v1043 = vsel %vm1039, %v1038, %v1032
  %s1044 = scalar_lea.vmem %s3, 704
  %v1045 = vld [vmem:[%s1044] sm:$0xff]
  %v1046 = vld [vmem:[%s1044 + $0x8] sm:$0xff]
  %v1047 = vld [vmem:[%s1044 + $0x10] sm:$0xff]
  %v1048 = vld [vmem:[%s1044 + $0x18] sm:$0xff]
  %v1049 = vmul.f32 %v1042, %v1045
  %v1050 = vmul.f32 %v1041, %v1046
  %v1051 = vmul.f32 %v1040, %v1047
  %v1052 = vmul.f32 %v1043, %v1048
  %v1053 = vadd.f32 %v1027, %v1049
  %v1054 = vadd.f32 %v1028, %v1050
  %v1055 = vadd.f32 %v1029, %v1051
  %v1056 = vadd.f32 %v1030, %v1052
  %1057 = vrot.lane.b32.xlu0 %v293, 95
  %v1058 = vpop.permute.xlu0 %1057
  %1059 = vrot.lane.b32.xlu0 %v294, 95
  %v1060 = vpop.permute.xlu0 %1059
  %1061 = vrot.lane.b32.xlu0 %v295, 95
  %v1062 = vpop.permute.xlu0 %1061
  %1063 = vrot.lane.b32.xlu0 %v296, 95
  %v1064 = vpop.permute.xlu0 %1063
  %vm1065 = vcmp.lt.s32.totalorder %v480, 95
  %v1066 = vsel %vm1065, %v1062, %v1064
  %v1067 = vsel %vm1065, %v1060, %v1062
  %v1068 = vsel %vm1065, %v1058, %v1060
  %v1069 = vsel %vm1065, %v1064, %v1058
  %s1070 = scalar_lea.vmem %s3, 736
  %v1071 = vld [vmem:[%s1070] sm:$0xff]
  %v1072 = vld [vmem:[%s1070 + $0x8] sm:$0xff]
  %v1073 = vld [vmem:[%s1070 + $0x10] sm:$0xff]
  %v1074 = vld [vmem:[%s1070 + $0x18] sm:$0xff]
  %v1075 = vmul.f32 %v1068, %v1071
  %v1076 = vmul.f32 %v1067, %v1072
  %v1077 = vmul.f32 %v1066, %v1073
  %v1078 = vmul.f32 %v1069, %v1074
  %v1079 = vadd.f32 %v1053, %v1075
  %v1080 = vadd.f32 %v1054, %v1076
  %v1081 = vadd.f32 %v1055, %v1077
  %v1082 = vadd.f32 %v1056, %v1078
  %1083 = vrot.lane.b32.xlu0 %v293, 94
  %v1084 = vpop.permute.xlu0 %1083
  %1085 = vrot.lane.b32.xlu0 %v294, 94
  %v1086 = vpop.permute.xlu0 %1085
  %1087 = vrot.lane.b32.xlu0 %v295, 94
  %v1088 = vpop.permute.xlu0 %1087
  %1089 = vrot.lane.b32.xlu0 %v296, 94
  %v1090 = vpop.permute.xlu0 %1089
  %vm1091 = vcmp.lt.s32.totalorder %v480, 94
  %v1092 = vsel %vm1091, %v1088, %v1090
  %v1093 = vsel %vm1091, %v1086, %v1088
  %v1094 = vsel %vm1091, %v1084, %v1086
  %v1095 = vsel %vm1091, %v1090, %v1084
  %s1096 = scalar_lea.vmem %s3, 768
  %v1097 = vld [vmem:[%s1096] sm:$0xff]
  %v1098 = vld [vmem:[%s1096 + $0x8] sm:$0xff]
  %v1099 = vld [vmem:[%s1096 + $0x10] sm:$0xff]
  %v1100 = vld [vmem:[%s1096 + $0x18] sm:$0xff]
  %v1101 = vmul.f32 %v1094, %v1097
  %v1102 = vmul.f32 %v1093, %v1098
  %v1103 = vmul.f32 %v1092, %v1099
  %v1104 = vmul.f32 %v1095, %v1100
  %v1105 = vadd.f32 %v1079, %v1101
  %v1106 = vadd.f32 %v1080, %v1102
  %v1107 = vadd.f32 %v1081, %v1103
  %v1108 = vadd.f32 %v1082, %v1104
  %s1109 = scalar_lea.vmem %s2, 24
  %v1110 = vld [vmem:[%s1109] sm:$0xff]
  %1112 = vset.pattern.permute.xlu0 0
  %1113 = vperm.xlu0 %1112, %v1110
  %v1114 = vpop.permute.xlu0 %1113
  %v1116 = vadd.f32 %v1105, %v1114
  %v1117 = vadd.f32 %v1106, %v1114
  %v1118 = vadd.f32 %v1107, %v1114
  %v1119 = vadd.f32 %v1108, %v1114
  %s1120 = scalar_lea.vmem %s2, 56
  %v1121 = vld [vmem:[%s1120] sm:$0xff]
  %1123 = vset.pattern.permute.xlu0 0
  %1124 = vperm.xlu0 %1123, %v1121
  %v1125 = vpop.permute.xlu0 %1124
  %v1127 = vmul.f32 %v1125, %v1116
  %v1128 = vmul.f32 %v1125, %v1117
  %v1129 = vmul.f32 %v1125, %v1118
  %v1130 = vmul.f32 %v1125, %v1119
  %s1131 = scalar_lea.vmem %s2, 32
  %v1132 = vld [vmem:[%s1131] sm:$0xff]
  %1134 = vset.pattern.permute.xlu0 0
  %1135 = vperm.xlu0 %1134, %v1132
  %v1136 = vpop.permute.xlu0 %1135
  %v1138 = vadd.f32 %v1127, %v1136
  %v1139 = vadd.f32 %v1128, %v1136
  %v1140 = vadd.f32 %v1129, %v1136
  %v1141 = vadd.f32 %v1130, %v1136
  %1142 = vrot.lane.b32.xlu0 %v1116, 68
  %v1143 = vpop.permute.xlu0 %1142
  %1144 = vrot.lane.b32.xlu0 %v1117, 68
  %v1145 = vpop.permute.xlu0 %1144
  %1146 = vrot.lane.b32.xlu0 %v1118, 68
  %v1147 = vpop.permute.xlu0 %1146
  %1148 = vrot.lane.b32.xlu0 %v1119, 68
  %v1149 = vpop.permute.xlu0 %1148
  %vm1150 = vcmp.lt.s32.totalorder %v480, 68
  %v1151 = vsel %vm1150, %v1147, %v1149
  %v1152 = vsel %vm1150, %v1145, %v1147
  %v1153 = vsel %vm1150, %v1143, %v1145
  %v1154 = vsel %vm1150, %v1149, %v1143
  %s1155 = scalar_lea.vmem %s3, 800
  %v1156 = vld [vmem:[%s1155] sm:$0xff]
  %v1157 = vld [vmem:[%s1155 + $0x8] sm:$0xff]
  %v1158 = vld [vmem:[%s1155 + $0x10] sm:$0xff]
  %v1159 = vld [vmem:[%s1155 + $0x18] sm:$0xff]
  %v1160 = vmul.f32 %v1154, %v1156
  %v1161 = vmul.f32 %v1153, %v1157
  %v1162 = vmul.f32 %v1152, %v1158
  %v1163 = vmul.f32 %v1151, %v1159
  %v1164 = vadd.f32 %v1138, %v1160
  %v1165 = vadd.f32 %v1139, %v1161
  %v1166 = vadd.f32 %v1140, %v1162
  %v1167 = vadd.f32 %v1141, %v1163
  %1168 = vrot.lane.b32.xlu0 %v1116, 66
  %v1169 = vpop.permute.xlu0 %1168
  %1170 = vrot.lane.b32.xlu0 %v1117, 66
  %v1171 = vpop.permute.xlu0 %1170
  %1172 = vrot.lane.b32.xlu0 %v1118, 66
  %v1173 = vpop.permute.xlu0 %1172
  %1174 = vrot.lane.b32.xlu0 %v1119, 66
  %v1175 = vpop.permute.xlu0 %1174
  %vm1176 = vcmp.lt.s32.totalorder %v480, 66
  %v1177 = vsel %vm1176, %v1173, %v1175
  %v1178 = vsel %vm1176, %v1171, %v1173
  %v1179 = vsel %vm1176, %v1169, %v1171
  %v1180 = vsel %vm1176, %v1175, %v1169
  %s1181 = scalar_lea.vmem %s3, 832
  %v1182 = vld [vmem:[%s1181] sm:$0xff]
  %v1183 = vld [vmem:[%s1181 + $0x8] sm:$0xff]
  %v1184 = vld [vmem:[%s1181 + $0x10] sm:$0xff]
  %v1185 = vld [vmem:[%s1181 + $0x18] sm:$0xff]
  %v1186 = vmul.f32 %v1180, %v1182
  %v1187 = vmul.f32 %v1179, %v1183
  %v1188 = vmul.f32 %v1178, %v1184
  %v1189 = vmul.f32 %v1177, %v1185
  %v1190 = vadd.f32 %v1164, %v1186
  %v1191 = vadd.f32 %v1165, %v1187
  %v1192 = vadd.f32 %v1166, %v1188
  %v1193 = vadd.f32 %v1167, %v1189
  %1194 = vrot.lane.b32.xlu0 %v1116, 64
  %v1195 = vpop.permute.xlu0 %1194
  %1196 = vrot.lane.b32.xlu0 %v1117, 64
  %v1197 = vpop.permute.xlu0 %1196
  %1198 = vrot.lane.b32.xlu0 %v1118, 64
  %v1199 = vpop.permute.xlu0 %1198
  %1200 = vrot.lane.b32.xlu0 %v1119, 64
  %v1201 = vpop.permute.xlu0 %1200
  %vm1202 = vcmp.lt.s32.totalorder %v480, 64
  %v1203 = vsel %vm1202, %v1199, %v1201
  %v1204 = vsel %vm1202, %v1197, %v1199
  %v1205 = vsel %vm1202, %v1195, %v1197
  %v1206 = vsel %vm1202, %v1201, %v1195
  %s1207 = scalar_lea.vmem %s3, 864
  %v1208 = vld [vmem:[%s1207] sm:$0xff]
  %v1209 = vld [vmem:[%s1207 + $0x8] sm:$0xff]
  %v1210 = vld [vmem:[%s1207 + $0x10] sm:$0xff]
  %v1211 = vld [vmem:[%s1207 + $0x18] sm:$0xff]
  %v1212 = vmul.f32 %v1206, %v1208
  %v1213 = vmul.f32 %v1205, %v1209
  %v1214 = vmul.f32 %v1204, %v1210
  %v1215 = vmul.f32 %v1203, %v1211
  %v1216 = vadd.f32 %v1190, %v1212
  %v1217 = vadd.f32 %v1191, %v1213
  %v1218 = vadd.f32 %v1192, %v1214
  %v1219 = vadd.f32 %v1193, %v1215
  %1220 = vrot.lane.b32.xlu0 %v1116, 62
  %v1221 = vpop.permute.xlu0 %1220
  %1222 = vrot.lane.b32.xlu0 %v1117, 62
  %v1223 = vpop.permute.xlu0 %1222
  %1224 = vrot.lane.b32.xlu0 %v1118, 62
  %v1225 = vpop.permute.xlu0 %1224
  %1226 = vrot.lane.b32.xlu0 %v1119, 62
  %v1227 = vpop.permute.xlu0 %1226
  %vm1228 = vcmp.lt.s32.totalorder %v480, 62
  %v1229 = vsel %vm1228, %v1225, %v1227
  %v1230 = vsel %vm1228, %v1223, %v1225
  %v1231 = vsel %vm1228, %v1221, %v1223
  %v1232 = vsel %vm1228, %v1227, %v1221
  %s1233 = scalar_lea.vmem %s3, 896
  %v1234 = vld [vmem:[%s1233] sm:$0xff]
  %v1235 = vld [vmem:[%s1233 + $0x8] sm:$0xff]
  %v1236 = vld [vmem:[%s1233 + $0x10] sm:$0xff]
  %v1237 = vld [vmem:[%s1233 + $0x18] sm:$0xff]
  %v1238 = vmul.f32 %v1232, %v1234
  %v1239 = vmul.f32 %v1231, %v1235
  %v1240 = vmul.f32 %v1230, %v1236
  %v1241 = vmul.f32 %v1229, %v1237
  %v1242 = vadd.f32 %v1216, %v1238
  %v1243 = vadd.f32 %v1217, %v1239
  %v1244 = vadd.f32 %v1218, %v1240
  %v1245 = vadd.f32 %v1219, %v1241
  %1246 = vrot.lane.b32.xlu0 %v1116, 60
  %v1247 = vpop.permute.xlu0 %1246
  %1248 = vrot.lane.b32.xlu0 %v1117, 60
  %v1249 = vpop.permute.xlu0 %1248
  %1250 = vrot.lane.b32.xlu0 %v1118, 60
  %v1251 = vpop.permute.xlu0 %1250
  %1252 = vrot.lane.b32.xlu0 %v1119, 60
  %v1253 = vpop.permute.xlu0 %1252
  %vm1254 = vcmp.lt.s32.totalorder %v480, 60
  %v1255 = vsel %vm1254, %v1251, %v1253
  %v1256 = vsel %vm1254, %v1249, %v1251
  %v1257 = vsel %vm1254, %v1247, %v1249
  %v1258 = vsel %vm1254, %v1253, %v1247
  %s1259 = scalar_lea.vmem %s3, 928
  %v1260 = vld [vmem:[%s1259] sm:$0xff]
  %v1261 = vld [vmem:[%s1259 + $0x8] sm:$0xff]
  %v1262 = vld [vmem:[%s1259 + $0x10] sm:$0xff]
  %v1263 = vld [vmem:[%s1259 + $0x18] sm:$0xff]
  %v1264 = vmul.f32 %v1258, %v1260
  %v1265 = vmul.f32 %v1257, %v1261
  %v1266 = vmul.f32 %v1256, %v1262
  %v1267 = vmul.f32 %v1255, %v1263
  %v1268 = vadd.f32 %v1242, %v1264
  %v1269 = vadd.f32 %v1243, %v1265
  %v1270 = vadd.f32 %v1244, %v1266
  %v1271 = vadd.f32 %v1245, %v1267
  %1272 = vrot.lane.b32.xlu0 %v1116, 36
  %v1273 = vpop.permute.xlu0 %1272
  %1274 = vrot.lane.b32.xlu0 %v1117, 36
  %v1275 = vpop.permute.xlu0 %1274
  %1276 = vrot.lane.b32.xlu0 %v1118, 36
  %v1277 = vpop.permute.xlu0 %1276
  %1278 = vrot.lane.b32.xlu0 %v1119, 36
  %v1279 = vpop.permute.xlu0 %1278
  %vm1280 = vcmp.lt.s32.totalorder %v480, 36
  %v1281 = vsel %vm1280, %v1277, %v1279
  %v1282 = vsel %vm1280, %v1275, %v1277
  %v1283 = vsel %vm1280, %v1273, %v1275
  %v1284 = vsel %vm1280, %v1279, %v1273
  %s1285 = scalar_lea.vmem %s3, 960
  %v1286 = vld [vmem:[%s1285] sm:$0xff]
  %v1287 = vld [vmem:[%s1285 + $0x8] sm:$0xff]
  %v1288 = vld [vmem:[%s1285 + $0x10] sm:$0xff]
  %v1289 = vld [vmem:[%s1285 + $0x18] sm:$0xff]
  %v1290 = vmul.f32 %v1284, %v1286
  %v1291 = vmul.f32 %v1283, %v1287
  %v1292 = vmul.f32 %v1282, %v1288
  %v1293 = vmul.f32 %v1281, %v1289
  %v1294 = vadd.f32 %v1268, %v1290
  %v1295 = vadd.f32 %v1269, %v1291
  %v1296 = vadd.f32 %v1270, %v1292
  %v1297 = vadd.f32 %v1271, %v1293
  %1298 = vrot.lane.b32.xlu0 %v1116, 34
  %v1299 = vpop.permute.xlu0 %1298
  %1300 = vrot.lane.b32.xlu0 %v1117, 34
  %v1301 = vpop.permute.xlu0 %1300
  %1302 = vrot.lane.b32.xlu0 %v1118, 34
  %v1303 = vpop.permute.xlu0 %1302
  %1304 = vrot.lane.b32.xlu0 %v1119, 34
  %v1305 = vpop.permute.xlu0 %1304
  %v1306 = vsel %vm481, %v1303, %v1305
  %v1307 = vsel %vm481, %v1301, %v1303
  %v1308 = vsel %vm481, %v1299, %v1301
  %v1309 = vsel %vm481, %v1305, %v1299
  %s1310 = scalar_lea.vmem %s3, 992
  %v1311 = vld [vmem:[%s1310] sm:$0xff]
  %v1312 = vld [vmem:[%s1310 + $0x8] sm:$0xff]
  %v1313 = vld [vmem:[%s1310 + $0x10] sm:$0xff]
  %v1314 = vld [vmem:[%s1310 + $0x18] sm:$0xff]
  %v1315 = vmul.f32 %v1309, %v1311
  %v1316 = vmul.f32 %v1308, %v1312
  %v1317 = vmul.f32 %v1307, %v1313
  %v1318 = vmul.f32 %v1306, %v1314
  %v1319 = vadd.f32 %v1294, %v1315
  %v1320 = vadd.f32 %v1295, %v1316
  %v1321 = vadd.f32 %v1296, %v1317
  %v1322 = vadd.f32 %v1297, %v1318
  %1323 = vrot.lane.b32.xlu0 %v1116, 32
  %v1324 = vpop.permute.xlu0 %1323
  %1325 = vrot.lane.b32.xlu0 %v1117, 32
  %v1326 = vpop.permute.xlu0 %1325
  %1327 = vrot.lane.b32.xlu0 %v1118, 32
  %v1328 = vpop.permute.xlu0 %1327
  %1329 = vrot.lane.b32.xlu0 %v1119, 32
  %v1330 = vpop.permute.xlu0 %1329
  %v1331 = vsel %vm532, %v1328, %v1330
  %v1332 = vsel %vm532, %v1326, %v1328
  %v1333 = vsel %vm532, %v1324, %v1326
  %v1334 = vsel %vm532, %v1330, %v1324
  %s1335 = scalar_lea.vmem %s3, 1024
  %v1336 = vld [vmem:[%s1335] sm:$0xff]
  %v1337 = vld [vmem:[%s1335 + $0x8] sm:$0xff]
  %v1338 = vld [vmem:[%s1335 + $0x10] sm:$0xff]
  %v1339 = vld [vmem:[%s1335 + $0x18] sm:$0xff]
  %v1340 = vmul.f32 %v1334, %v1336
  %v1341 = vmul.f32 %v1333, %v1337
  %v1342 = vmul.f32 %v1332, %v1338
  %v1343 = vmul.f32 %v1331, %v1339
  %v1344 = vadd.f32 %v1319, %v1340
  %v1345 = vadd.f32 %v1320, %v1341
  %v1346 = vadd.f32 %v1321, %v1342
  %v1347 = vadd.f32 %v1322, %v1343
  %1348 = vrot.lane.b32.xlu0 %v1116, 30
  %v1349 = vpop.permute.xlu0 %1348
  %1350 = vrot.lane.b32.xlu0 %v1117, 30
  %v1351 = vpop.permute.xlu0 %1350
  %1352 = vrot.lane.b32.xlu0 %v1118, 30
  %v1353 = vpop.permute.xlu0 %1352
  %1354 = vrot.lane.b32.xlu0 %v1119, 30
  %v1355 = vpop.permute.xlu0 %1354
  %v1356 = vsel %vm584, %v1353, %v1355
  %v1357 = vsel %vm584, %v1351, %v1353
  %v1358 = vsel %vm584, %v1349, %v1351
  %v1359 = vsel %vm584, %v1355, %v1349
  %s1360 = scalar_lea.vmem %s3, 1056
  %v1361 = vld [vmem:[%s1360] sm:$0xff]
  %v1362 = vld [vmem:[%s1360 + $0x8] sm:$0xff]
  %v1363 = vld [vmem:[%s1360 + $0x10] sm:$0xff]
  %v1364 = vld [vmem:[%s1360 + $0x18] sm:$0xff]
  %v1365 = vmul.f32 %v1359, %v1361
  %v1366 = vmul.f32 %v1358, %v1362
  %v1367 = vmul.f32 %v1357, %v1363
  %v1368 = vmul.f32 %v1356, %v1364
  %v1369 = vadd.f32 %v1344, %v1365
  %v1370 = vadd.f32 %v1345, %v1366
  %v1371 = vadd.f32 %v1346, %v1367
  %v1372 = vadd.f32 %v1347, %v1368
  %1373 = vrot.lane.b32.xlu0 %v1116, 28
  %v1374 = vpop.permute.xlu0 %1373
  %1375 = vrot.lane.b32.xlu0 %v1117, 28
  %v1376 = vpop.permute.xlu0 %1375
  %1377 = vrot.lane.b32.xlu0 %v1118, 28
  %v1378 = vpop.permute.xlu0 %1377
  %1379 = vrot.lane.b32.xlu0 %v1119, 28
  %v1380 = vpop.permute.xlu0 %1379
  %vm1381 = vcmp.lt.s32.totalorder %v480, 28
  %v1382 = vsel %vm1381, %v1378, %v1380
  %v1383 = vsel %vm1381, %v1376, %v1378
  %v1384 = vsel %vm1381, %v1374, %v1376
  %v1385 = vsel %vm1381, %v1380, %v1374
  %s1386 = scalar_lea.vmem %s3, 1088
  %v1387 = vld [vmem:[%s1386] sm:$0xff]
  %v1388 = vld [vmem:[%s1386 + $0x8] sm:$0xff]
  %v1389 = vld [vmem:[%s1386 + $0x10] sm:$0xff]
  %v1390 = vld [vmem:[%s1386 + $0x18] sm:$0xff]
  %v1391 = vmul.f32 %v1385, %v1387
  %v1392 = vmul.f32 %v1384, %v1388
  %v1393 = vmul.f32 %v1383, %v1389
  %v1394 = vmul.f32 %v1382, %v1390
  %v1395 = vadd.f32 %v1369, %v1391
  %v1396 = vadd.f32 %v1370, %v1392
  %v1397 = vadd.f32 %v1371, %v1393
  %v1398 = vadd.f32 %v1372, %v1394
  %1399 = vrot.lane.b32.xlu0 %v1116, 4
  %v1400 = vpop.permute.xlu0 %1399
  %1401 = vrot.lane.b32.xlu0 %v1117, 4
  %v1402 = vpop.permute.xlu0 %1401
  %1403 = vrot.lane.b32.xlu0 %v1118, 4
  %v1404 = vpop.permute.xlu0 %1403
  %1405 = vrot.lane.b32.xlu0 %v1119, 4
  %v1406 = vpop.permute.xlu0 %1405
  %vm1407 = vcmp.lt.s32.totalorder %v480, 4
  %v1408 = vsel %vm1407, %v1404, %v1406
  %v1409 = vsel %vm1407, %v1402, %v1404
  %v1410 = vsel %vm1407, %v1400, %v1402
  %v1411 = vsel %vm1407, %v1406, %v1400
  %s1412 = scalar_lea.vmem %s3, 1120
  %v1413 = vld [vmem:[%s1412] sm:$0xff]
  %v1414 = vld [vmem:[%s1412 + $0x8] sm:$0xff]
  %v1415 = vld [vmem:[%s1412 + $0x10] sm:$0xff]
  %v1416 = vld [vmem:[%s1412 + $0x18] sm:$0xff]
  %v1417 = vmul.f32 %v1411, %v1413
  %v1418 = vmul.f32 %v1410, %v1414
  %v1419 = vmul.f32 %v1409, %v1415
  %v1420 = vmul.f32 %v1408, %v1416
  %v1421 = vadd.f32 %v1395, %v1417
  %v1422 = vadd.f32 %v1396, %v1418
  %v1423 = vadd.f32 %v1397, %v1419
  %v1424 = vadd.f32 %v1398, %v1420
  %1425 = vrot.lane.b32.xlu0 %v1116, 2
  %v1426 = vpop.permute.xlu0 %1425
  %1427 = vrot.lane.b32.xlu0 %v1117, 2
  %v1428 = vpop.permute.xlu0 %1427
  %1429 = vrot.lane.b32.xlu0 %v1118, 2
  %v1430 = vpop.permute.xlu0 %1429
  %1431 = vrot.lane.b32.xlu0 %v1119, 2
  %v1432 = vpop.permute.xlu0 %1431
  %v1433 = vsel %vm740, %v1430, %v1432
  %v1434 = vsel %vm740, %v1428, %v1430
  %v1435 = vsel %vm740, %v1426, %v1428
  %v1436 = vsel %vm740, %v1432, %v1426
  %s1437 = scalar_lea.vmem %s3, 1152
  %v1438 = vld [vmem:[%s1437] sm:$0xff]
  %v1439 = vld [vmem:[%s1437 + $0x8] sm:$0xff]
  %v1440 = vld [vmem:[%s1437 + $0x10] sm:$0xff]
  %v1441 = vld [vmem:[%s1437 + $0x18] sm:$0xff]
  %v1442 = vmul.f32 %v1436, %v1438
  %v1443 = vmul.f32 %v1435, %v1439
  %v1444 = vmul.f32 %v1434, %v1440
  %v1445 = vmul.f32 %v1433, %v1441
  %v1446 = vadd.f32 %v1421, %v1442
  %v1447 = vadd.f32 %v1422, %v1443
  %v1448 = vadd.f32 %v1423, %v1444
  %v1449 = vadd.f32 %v1424, %v1445
  %s1450 = scalar_lea.vmem %s3, 1184
  %v1451 = vld [vmem:[%s1450] sm:$0xff]
  %v1452 = vld [vmem:[%s1450 + $0x8] sm:$0xff]
  %v1453 = vld [vmem:[%s1450 + $0x10] sm:$0xff]
  %v1454 = vld [vmem:[%s1450 + $0x18] sm:$0xff]
  %v1455 = vmul.f32 %v1116, %v1451
  %v1456 = vmul.f32 %v1117, %v1452
  %v1457 = vmul.f32 %v1118, %v1453
  %v1458 = vmul.f32 %v1119, %v1454
  %v1459 = vadd.f32 %v1446, %v1455
  %v1460 = vadd.f32 %v1447, %v1456
  %v1461 = vadd.f32 %v1448, %v1457
  %v1462 = vadd.f32 %v1449, %v1458
  %1463 = vrot.lane.b32.xlu0 %v1116, 126
  %v1464 = vpop.permute.xlu0 %1463
  %1465 = vrot.lane.b32.xlu0 %v1117, 126
  %v1466 = vpop.permute.xlu0 %1465
  %1467 = vrot.lane.b32.xlu0 %v1118, 126
  %v1468 = vpop.permute.xlu0 %1467
  %1469 = vrot.lane.b32.xlu0 %v1119, 126
  %v1470 = vpop.permute.xlu0 %1469
  %v1471 = vsel %vm831, %v1468, %v1470
  %v1472 = vsel %vm831, %v1466, %v1468
  %v1473 = vsel %vm831, %v1464, %v1466
  %v1474 = vsel %vm831, %v1470, %v1464
  %s1475 = scalar_lea.vmem %s3, 1216
  %v1476 = vld [vmem:[%s1475] sm:$0xff]
  %v1477 = vld [vmem:[%s1475 + $0x8] sm:$0xff]
  %v1478 = vld [vmem:[%s1475 + $0x10] sm:$0xff]
  %v1479 = vld [vmem:[%s1475 + $0x18] sm:$0xff]
  %v1480 = vmul.f32 %v1473, %v1476
  %v1481 = vmul.f32 %v1472, %v1477
  %v1482 = vmul.f32 %v1471, %v1478
  %v1483 = vmul.f32 %v1474, %v1479
  %v1484 = vadd.f32 %v1459, %v1480
  %v1485 = vadd.f32 %v1460, %v1481
  %v1486 = vadd.f32 %v1461, %v1482
  %v1487 = vadd.f32 %v1462, %v1483
  %1488 = vrot.lane.b32.xlu0 %v1116, 124
  %v1489 = vpop.permute.xlu0 %1488
  %1490 = vrot.lane.b32.xlu0 %v1117, 124
  %v1491 = vpop.permute.xlu0 %1490
  %1492 = vrot.lane.b32.xlu0 %v1118, 124
  %v1493 = vpop.permute.xlu0 %1492
  %1494 = vrot.lane.b32.xlu0 %v1119, 124
  %v1495 = vpop.permute.xlu0 %1494
  %vm1496 = vcmp.lt.s32.totalorder %v480, 124
  %v1497 = vsel %vm1496, %v1493, %v1495
  %v1498 = vsel %vm1496, %v1491, %v1493
  %v1499 = vsel %vm1496, %v1489, %v1491
  %v1500 = vsel %vm1496, %v1495, %v1489
  %s1501 = scalar_lea.vmem %s3, 1248
  %v1502 = vld [vmem:[%s1501] sm:$0xff]
  %v1503 = vld [vmem:[%s1501 + $0x8] sm:$0xff]
  %v1504 = vld [vmem:[%s1501 + $0x10] sm:$0xff]
  %v1505 = vld [vmem:[%s1501 + $0x18] sm:$0xff]
  %v1506 = vmul.f32 %v1499, %v1502
  %v1507 = vmul.f32 %v1498, %v1503
  %v1508 = vmul.f32 %v1497, %v1504
  %v1509 = vmul.f32 %v1500, %v1505
  %v1510 = vadd.f32 %v1484, %v1506
  %v1511 = vadd.f32 %v1485, %v1507
  %v1512 = vadd.f32 %v1486, %v1508
  %v1513 = vadd.f32 %v1487, %v1509
  %1514 = vrot.lane.b32.xlu0 %v1116, 100
  %v1515 = vpop.permute.xlu0 %1514
  %1516 = vrot.lane.b32.xlu0 %v1117, 100
  %v1517 = vpop.permute.xlu0 %1516
  %1518 = vrot.lane.b32.xlu0 %v1118, 100
  %v1519 = vpop.permute.xlu0 %1518
  %1520 = vrot.lane.b32.xlu0 %v1119, 100
  %v1521 = vpop.permute.xlu0 %1520
  %vm1522 = vcmp.lt.s32.totalorder %v480, 100
  %v1523 = vsel %vm1522, %v1519, %v1521
  %v1524 = vsel %vm1522, %v1517, %v1519
  %v1525 = vsel %vm1522, %v1515, %v1517
  %v1526 = vsel %vm1522, %v1521, %v1515
  %s1527 = scalar_lea.vmem %s3, 1280
  %v1528 = vld [vmem:[%s1527] sm:$0xff]
  %v1529 = vld [vmem:[%s1527 + $0x8] sm:$0xff]
  %v1530 = vld [vmem:[%s1527 + $0x10] sm:$0xff]
  %v1531 = vld [vmem:[%s1527 + $0x18] sm:$0xff]
  %v1532 = vmul.f32 %v1525, %v1528
  %v1533 = vmul.f32 %v1524, %v1529
  %v1534 = vmul.f32 %v1523, %v1530
  %v1535 = vmul.f32 %v1526, %v1531
  %v1536 = vadd.f32 %v1510, %v1532
  %v1537 = vadd.f32 %v1511, %v1533
  %v1538 = vadd.f32 %v1512, %v1534
  %v1539 = vadd.f32 %v1513, %v1535
  %1540 = vrot.lane.b32.xlu0 %v1116, 98
  %v1541 = vpop.permute.xlu0 %1540
  %1542 = vrot.lane.b32.xlu0 %v1117, 98
  %v1543 = vpop.permute.xlu0 %1542
  %1544 = vrot.lane.b32.xlu0 %v1118, 98
  %v1545 = vpop.permute.xlu0 %1544
  %1546 = vrot.lane.b32.xlu0 %v1119, 98
  %v1547 = vpop.permute.xlu0 %1546
  %v1548 = vsel %vm987, %v1545, %v1547
  %v1549 = vsel %vm987, %v1543, %v1545
  %v1550 = vsel %vm987, %v1541, %v1543
  %v1551 = vsel %vm987, %v1547, %v1541
  %s1552 = scalar_lea.vmem %s3, 1312
  %v1553 = vld [vmem:[%s1552] sm:$0xff]
  %v1554 = vld [vmem:[%s1552 + $0x8] sm:$0xff]
  %v1555 = vld [vmem:[%s1552 + $0x10] sm:$0xff]
  %v1556 = vld [vmem:[%s1552 + $0x18] sm:$0xff]
  %v1557 = vmul.f32 %v1550, %v1553
  %v1558 = vmul.f32 %v1549, %v1554
  %v1559 = vmul.f32 %v1548, %v1555
  %v1560 = vmul.f32 %v1551, %v1556
  %v1561 = vadd.f32 %v1536, %v1557
  %v1562 = vadd.f32 %v1537, %v1558
  %v1563 = vadd.f32 %v1538, %v1559
  %v1564 = vadd.f32 %v1539, %v1560
  %1565 = vrot.lane.b32.xlu0 %v1116, 96
  %v1566 = vpop.permute.xlu0 %1565
  %1567 = vrot.lane.b32.xlu0 %v1117, 96
  %v1568 = vpop.permute.xlu0 %1567
  %1569 = vrot.lane.b32.xlu0 %v1118, 96
  %v1570 = vpop.permute.xlu0 %1569
  %1571 = vrot.lane.b32.xlu0 %v1119, 96
  %v1572 = vpop.permute.xlu0 %1571
  %v1573 = vsel %vm1039, %v1570, %v1572
  %v1574 = vsel %vm1039, %v1568, %v1570
  %v1575 = vsel %vm1039, %v1566, %v1568
  %v1576 = vsel %vm1039, %v1572, %v1566
  %s1577 = scalar_lea.vmem %s3, 1344
  %v1578 = vld [vmem:[%s1577] sm:$0xff]
  %v1579 = vld [vmem:[%s1577 + $0x8] sm:$0xff]
  %v1580 = vld [vmem:[%s1577 + $0x10] sm:$0xff]
  %v1581 = vld [vmem:[%s1577 + $0x18] sm:$0xff]
  %v1582 = vmul.f32 %v1575, %v1578
  %v1583 = vmul.f32 %v1574, %v1579
  %v1584 = vmul.f32 %v1573, %v1580
  %v1585 = vmul.f32 %v1576, %v1581
  %v1586 = vadd.f32 %v1561, %v1582
  %v1587 = vadd.f32 %v1562, %v1583
  %v1588 = vadd.f32 %v1563, %v1584
  %v1589 = vadd.f32 %v1564, %v1585
  %1590 = vrot.lane.b32.xlu0 %v1116, 94
  %v1591 = vpop.permute.xlu0 %1590
  %1592 = vrot.lane.b32.xlu0 %v1117, 94
  %v1593 = vpop.permute.xlu0 %1592
  %1594 = vrot.lane.b32.xlu0 %v1118, 94
  %v1595 = vpop.permute.xlu0 %1594
  %1596 = vrot.lane.b32.xlu0 %v1119, 94
  %v1597 = vpop.permute.xlu0 %1596
  %v1598 = vsel %vm1091, %v1595, %v1597
  %v1599 = vsel %vm1091, %v1593, %v1595
  %v1600 = vsel %vm1091, %v1591, %v1593
  %v1601 = vsel %vm1091, %v1597, %v1591
  %s1602 = scalar_lea.vmem %s3, 1376
  %v1603 = vld [vmem:[%s1602] sm:$0xff]
  %v1604 = vld [vmem:[%s1602 + $0x8] sm:$0xff]
  %v1605 = vld [vmem:[%s1602 + $0x10] sm:$0xff]
  %v1606 = vld [vmem:[%s1602 + $0x18] sm:$0xff]
  %v1607 = vmul.f32 %v1600, %v1603
  %v1608 = vmul.f32 %v1599, %v1604
  %v1609 = vmul.f32 %v1598, %v1605
  %v1610 = vmul.f32 %v1601, %v1606
  %v1611 = vadd.f32 %v1586, %v1607
  %v1612 = vadd.f32 %v1587, %v1608
  %v1613 = vadd.f32 %v1588, %v1609
  %v1614 = vadd.f32 %v1589, %v1610
  %1615 = vrot.lane.b32.xlu0 %v1116, 92
  %v1616 = vpop.permute.xlu0 %1615
  %1617 = vrot.lane.b32.xlu0 %v1117, 92
  %v1618 = vpop.permute.xlu0 %1617
  %1619 = vrot.lane.b32.xlu0 %v1118, 92
  %v1620 = vpop.permute.xlu0 %1619
  %1621 = vrot.lane.b32.xlu0 %v1119, 92
  %v1622 = vpop.permute.xlu0 %1621
  %vm1623 = vcmp.lt.s32.totalorder %v480, 92
  %v1624 = vsel %vm1623, %v1620, %v1622
  %v1625 = vsel %vm1623, %v1618, %v1620
  %v1626 = vsel %vm1623, %v1616, %v1618
  %v1627 = vsel %vm1623, %v1622, %v1616
  %s1628 = scalar_lea.vmem %s3, 1408
  %v1629 = vld [vmem:[%s1628] sm:$0xff]
  %v1630 = vld [vmem:[%s1628 + $0x8] sm:$0xff]
  %v1631 = vld [vmem:[%s1628 + $0x10] sm:$0xff]
  %v1632 = vld [vmem:[%s1628 + $0x18] sm:$0xff]
  %v1633 = vmul.f32 %v1626, %v1629
  %v1634 = vmul.f32 %v1625, %v1630
  %v1635 = vmul.f32 %v1624, %v1631
  %v1636 = vmul.f32 %v1627, %v1632
  %v1637 = vadd.f32 %v1611, %v1633
  %v1638 = vadd.f32 %v1612, %v1634
  %v1639 = vadd.f32 %v1613, %v1635
  %v1640 = vadd.f32 %v1614, %v1636
  %s1641 = scalar_lea.vmem %s3, 1440
  %v1642 = vld [vmem:[%s1641] sm:$0xff]
  %v1643 = vld [vmem:[%s1641 + $0x8] sm:$0xff]
  %v1644 = vld [vmem:[%s1641 + $0x10] sm:$0xff]
  %v1645 = vld [vmem:[%s1641 + $0x18] sm:$0xff]
  %v1646 = vmul.f32 %v1153, %v1642
  %v1647 = vmul.f32 %v1152, %v1643
  %v1648 = vmul.f32 %v1151, %v1644
  %v1649 = vmul.f32 %v1154, %v1645
  %v1650 = vadd.f32 %v1637, %v1646
  %v1651 = vadd.f32 %v1638, %v1647
  %v1652 = vadd.f32 %v1639, %v1648
  %v1653 = vadd.f32 %v1640, %v1649
  %s1654 = scalar_lea.vmem %s3, 1472
  %v1655 = vld [vmem:[%s1654] sm:$0xff]
  %v1656 = vld [vmem:[%s1654 + $0x8] sm:$0xff]
  %v1657 = vld [vmem:[%s1654 + $0x10] sm:$0xff]
  %v1658 = vld [vmem:[%s1654 + $0x18] sm:$0xff]
  %v1659 = vmul.f32 %v1179, %v1655
  %v1660 = vmul.f32 %v1178, %v1656
  %v1661 = vmul.f32 %v1177, %v1657
  %v1662 = vmul.f32 %v1180, %v1658
  %v1663 = vadd.f32 %v1650, %v1659
  %v1664 = vadd.f32 %v1651, %v1660
  %v1665 = vadd.f32 %v1652, %v1661
  %v1666 = vadd.f32 %v1653, %v1662
  %s1667 = scalar_lea.vmem %s3, 1504
  %v1668 = vld [vmem:[%s1667] sm:$0xff]
  %v1669 = vld [vmem:[%s1667 + $0x8] sm:$0xff]
  %v1670 = vld [vmem:[%s1667 + $0x10] sm:$0xff]
  %v1671 = vld [vmem:[%s1667 + $0x18] sm:$0xff]
  %v1672 = vmul.f32 %v1205, %v1668
  %v1673 = vmul.f32 %v1204, %v1669
  %v1674 = vmul.f32 %v1203, %v1670
  %v1675 = vmul.f32 %v1206, %v1671
  %v1676 = vadd.f32 %v1663, %v1672
  %v1677 = vadd.f32 %v1664, %v1673
  %v1678 = vadd.f32 %v1665, %v1674
  %v1679 = vadd.f32 %v1666, %v1675
  %s1680 = scalar_lea.vmem %s3, 1536
  %v1681 = vld [vmem:[%s1680] sm:$0xff]
  %v1682 = vld [vmem:[%s1680 + $0x8] sm:$0xff]
  %v1683 = vld [vmem:[%s1680 + $0x10] sm:$0xff]
  %v1684 = vld [vmem:[%s1680 + $0x18] sm:$0xff]
  %v1685 = vmul.f32 %v1231, %v1681
  %v1686 = vmul.f32 %v1230, %v1682
  %v1687 = vmul.f32 %v1229, %v1683
  %v1688 = vmul.f32 %v1232, %v1684
  %v1689 = vadd.f32 %v1676, %v1685
  %v1690 = vadd.f32 %v1677, %v1686
  %v1691 = vadd.f32 %v1678, %v1687
  %v1692 = vadd.f32 %v1679, %v1688
  %s1693 = scalar_lea.vmem %s3, 1568
  %v1694 = vld [vmem:[%s1693] sm:$0xff]
  %v1695 = vld [vmem:[%s1693 + $0x8] sm:$0xff]
  %v1696 = vld [vmem:[%s1693 + $0x10] sm:$0xff]
  %v1697 = vld [vmem:[%s1693 + $0x18] sm:$0xff]
  %v1698 = vmul.f32 %v1257, %v1694
  %v1699 = vmul.f32 %v1256, %v1695
  %v1700 = vmul.f32 %v1255, %v1696
  %v1701 = vmul.f32 %v1258, %v1697
  %v1702 = vadd.f32 %v1689, %v1698
  %v1703 = vadd.f32 %v1690, %v1699
  %v1704 = vadd.f32 %v1691, %v1700
  %v1705 = vadd.f32 %v1692, %v1701
  %1706 = vrot.lane.b32.xlu0 %v1116, 25
  %v1707 = vpop.permute.xlu0 %1706
  %1708 = vrot.lane.b32.xlu0 %v1117, 25
  %v1709 = vpop.permute.xlu0 %1708
  %1710 = vrot.lane.b32.xlu0 %v1118, 25
  %v1711 = vpop.permute.xlu0 %1710
  %1712 = vrot.lane.b32.xlu0 %v1119, 25
  %v1713 = vpop.permute.xlu0 %1712
  %vm1714 = vcmp.lt.s32.totalorder %v480, 25
  %v1715 = vsel %vm1714, %v1711, %v1713
  %v1716 = vsel %vm1714, %v1709, %v1711
  %v1717 = vsel %vm1714, %v1707, %v1709
  %v1718 = vsel %vm1714, %v1713, %v1707
  %s1719 = scalar_lea.vmem %s3, 1600
  %v1720 = vld [vmem:[%s1719] sm:$0xff]
  %v1721 = vld [vmem:[%s1719 + $0x8] sm:$0xff]
  %v1722 = vld [vmem:[%s1719 + $0x10] sm:$0xff]
  %v1723 = vld [vmem:[%s1719 + $0x18] sm:$0xff]
  %v1724 = vmul.f32 %v1715, %v1720
  %v1725 = vmul.f32 %v1718, %v1721
  %v1726 = vmul.f32 %v1717, %v1722
  %v1727 = vmul.f32 %v1716, %v1723
  %v1728 = vadd.f32 %v1702, %v1724
  %v1729 = vadd.f32 %v1703, %v1725
  %v1730 = vadd.f32 %v1704, %v1726
  %v1731 = vadd.f32 %v1705, %v1727
  %1732 = vrot.lane.b32.xlu0 %v1116, 22
  %v1733 = vpop.permute.xlu0 %1732
  %1734 = vrot.lane.b32.xlu0 %v1117, 22
  %v1735 = vpop.permute.xlu0 %1734
  %1736 = vrot.lane.b32.xlu0 %v1118, 22
  %v1737 = vpop.permute.xlu0 %1736
  %1738 = vrot.lane.b32.xlu0 %v1119, 22
  %v1739 = vpop.permute.xlu0 %1738
  %vm1740 = vcmp.lt.s32.totalorder %v480, 22
  %v1741 = vsel %vm1740, %v1737, %v1739
  %v1742 = vsel %vm1740, %v1735, %v1737
  %v1743 = vsel %vm1740, %v1733, %v1735
  %v1744 = vsel %vm1740, %v1739, %v1733
  %s1745 = scalar_lea.vmem %s3, 1632
  %v1746 = vld [vmem:[%s1745] sm:$0xff]
  %v1747 = vld [vmem:[%s1745 + $0x8] sm:$0xff]
  %v1748 = vld [vmem:[%s1745 + $0x10] sm:$0xff]
  %v1749 = vld [vmem:[%s1745 + $0x18] sm:$0xff]
  %v1750 = vmul.f32 %v1741, %v1746
  %v1751 = vmul.f32 %v1744, %v1747
  %v1752 = vmul.f32 %v1743, %v1748
  %v1753 = vmul.f32 %v1742, %v1749
  %v1754 = vadd.f32 %v1728, %v1750
  %v1755 = vadd.f32 %v1729, %v1751
  %v1756 = vadd.f32 %v1730, %v1752
  %v1757 = vadd.f32 %v1731, %v1753
  %1758 = vrot.lane.b32.xlu0 %v1116, 19
  %v1759 = vpop.permute.xlu0 %1758
  %1760 = vrot.lane.b32.xlu0 %v1117, 19
  %v1761 = vpop.permute.xlu0 %1760
  %1762 = vrot.lane.b32.xlu0 %v1118, 19
  %v1763 = vpop.permute.xlu0 %1762
  %1764 = vrot.lane.b32.xlu0 %v1119, 19
  %v1765 = vpop.permute.xlu0 %1764
  %vm1766 = vcmp.lt.s32.totalorder %v480, 19
  %v1767 = vsel %vm1766, %v1763, %v1765
  %v1768 = vsel %vm1766, %v1761, %v1763
  %v1769 = vsel %vm1766, %v1759, %v1761
  %v1770 = vsel %vm1766, %v1765, %v1759
  %s1771 = scalar_lea.vmem %s3, 1664
  %v1772 = vld [vmem:[%s1771] sm:$0xff]
  %v1773 = vld [vmem:[%s1771 + $0x8] sm:$0xff]
  %v1774 = vld [vmem:[%s1771 + $0x10] sm:$0xff]
  %v1775 = vld [vmem:[%s1771 + $0x18] sm:$0xff]
  %v1776 = vmul.f32 %v1767, %v1772
  %v1777 = vmul.f32 %v1770, %v1773
  %v1778 = vmul.f32 %v1769, %v1774
  %v1779 = vmul.f32 %v1768, %v1775
  %v1780 = vadd.f32 %v1754, %v1776
  %v1781 = vadd.f32 %v1755, %v1777
  %v1782 = vadd.f32 %v1756, %v1778
  %v1783 = vadd.f32 %v1757, %v1779
  %1784 = vrot.lane.b32.xlu0 %v1116, 16
  %v1785 = vpop.permute.xlu0 %1784
  %1786 = vrot.lane.b32.xlu0 %v1117, 16
  %v1787 = vpop.permute.xlu0 %1786
  %1788 = vrot.lane.b32.xlu0 %v1118, 16
  %v1789 = vpop.permute.xlu0 %1788
  %1790 = vrot.lane.b32.xlu0 %v1119, 16
  %v1791 = vpop.permute.xlu0 %1790
  %v1792 = vsel %vm662, %v1789, %v1791
  %v1793 = vsel %vm662, %v1787, %v1789
  %v1794 = vsel %vm662, %v1785, %v1787
  %v1795 = vsel %vm662, %v1791, %v1785
  %s1796 = scalar_lea.vmem %s3, 1696
  %v1797 = vld [vmem:[%s1796] sm:$0xff]
  %v1798 = vld [vmem:[%s1796 + $0x8] sm:$0xff]
  %v1799 = vld [vmem:[%s1796 + $0x10] sm:$0xff]
  %v1800 = vld [vmem:[%s1796 + $0x18] sm:$0xff]
  %v1801 = vmul.f32 %v1792, %v1797
  %v1802 = vmul.f32 %v1795, %v1798
  %v1803 = vmul.f32 %v1794, %v1799
  %v1804 = vmul.f32 %v1793, %v1800
  %v1805 = vadd.f32 %v1780, %v1801
  %v1806 = vadd.f32 %v1781, %v1802
  %v1807 = vadd.f32 %v1782, %v1803
  %v1808 = vadd.f32 %v1783, %v1804
  %1809 = vrot.lane.b32.xlu0 %v1116, 13
  %v1810 = vpop.permute.xlu0 %1809
  %1811 = vrot.lane.b32.xlu0 %v1117, 13
  %v1812 = vpop.permute.xlu0 %1811
  %1813 = vrot.lane.b32.xlu0 %v1118, 13
  %v1814 = vpop.permute.xlu0 %1813
  %1815 = vrot.lane.b32.xlu0 %v1119, 13
  %v1816 = vpop.permute.xlu0 %1815
  %vm1817 = vcmp.lt.s32.totalorder %v480, 13
  %v1818 = vsel %vm1817, %v1814, %v1816
  %v1819 = vsel %vm1817, %v1812, %v1814
  %v1820 = vsel %vm1817, %v1810, %v1812
  %v1821 = vsel %vm1817, %v1816, %v1810
  %s1822 = scalar_lea.vmem %s3, 1728
  %v1823 = vld [vmem:[%s1822] sm:$0xff]
  %v1824 = vld [vmem:[%s1822 + $0x8] sm:$0xff]
  %v1825 = vld [vmem:[%s1822 + $0x10] sm:$0xff]
  %v1826 = vld [vmem:[%s1822 + $0x18] sm:$0xff]
  %v1827 = vmul.f32 %v1818, %v1823
  %v1828 = vmul.f32 %v1821, %v1824
  %v1829 = vmul.f32 %v1820, %v1825
  %v1830 = vmul.f32 %v1819, %v1826
  %v1831 = vadd.f32 %v1805, %v1827
  %v1832 = vadd.f32 %v1806, %v1828
  %v1833 = vadd.f32 %v1807, %v1829
  %v1834 = vadd.f32 %v1808, %v1830
  %1835 = vrot.lane.b32.xlu0 %v1116, 10
  %v1836 = vpop.permute.xlu0 %1835
  %1837 = vrot.lane.b32.xlu0 %v1117, 10
  %v1838 = vpop.permute.xlu0 %1837
  %1839 = vrot.lane.b32.xlu0 %v1118, 10
  %v1840 = vpop.permute.xlu0 %1839
  %1841 = vrot.lane.b32.xlu0 %v1119, 10
  %v1842 = vpop.permute.xlu0 %1841
  %vm1843 = vcmp.lt.s32.totalorder %v480, 10
  %v1844 = vsel %vm1843, %v1840, %v1842
  %v1845 = vsel %vm1843, %v1838, %v1840
  %v1846 = vsel %vm1843, %v1836, %v1838
  %v1847 = vsel %vm1843, %v1842, %v1836
  %s1848 = scalar_lea.vmem %s3, 1760
  %v1849 = vld [vmem:[%s1848] sm:$0xff]
  %v1850 = vld [vmem:[%s1848 + $0x8] sm:$0xff]
  %v1851 = vld [vmem:[%s1848 + $0x10] sm:$0xff]
  %v1852 = vld [vmem:[%s1848 + $0x18] sm:$0xff]
  %v1853 = vmul.f32 %v1844, %v1849
  %v1854 = vmul.f32 %v1847, %v1850
  %v1855 = vmul.f32 %v1846, %v1851
  %v1856 = vmul.f32 %v1845, %v1852
  %v1857 = vadd.f32 %v1831, %v1853
  %v1858 = vadd.f32 %v1832, %v1854
  %v1859 = vadd.f32 %v1833, %v1855
  %v1860 = vadd.f32 %v1834, %v1856
  %1861 = vrot.lane.b32.xlu0 %v1116, 7
  %v1862 = vpop.permute.xlu0 %1861
  %1863 = vrot.lane.b32.xlu0 %v1117, 7
  %v1864 = vpop.permute.xlu0 %1863
  %1865 = vrot.lane.b32.xlu0 %v1118, 7
  %v1866 = vpop.permute.xlu0 %1865
  %1867 = vrot.lane.b32.xlu0 %v1119, 7
  %v1868 = vpop.permute.xlu0 %1867
  %vm1869 = vcmp.lt.s32.totalorder %v480, 7
  %v1870 = vsel %vm1869, %v1866, %v1868
  %v1871 = vsel %vm1869, %v1864, %v1866
  %v1872 = vsel %vm1869, %v1862, %v1864
  %v1873 = vsel %vm1869, %v1868, %v1862
  %s1874 = scalar_lea.vmem %s3, 1792
  %v1875 = vld [vmem:[%s1874] sm:$0xff]
  %v1876 = vld [vmem:[%s1874 + $0x8] sm:$0xff]
  %v1877 = vld [vmem:[%s1874 + $0x10] sm:$0xff]
  %v1878 = vld [vmem:[%s1874 + $0x18] sm:$0xff]
  %v1879 = vmul.f32 %v1870, %v1875
  %v1880 = vmul.f32 %v1873, %v1876
  %v1881 = vmul.f32 %v1872, %v1877
  %v1882 = vmul.f32 %v1871, %v1878
  %v1883 = vadd.f32 %v1857, %v1879
  %v1884 = vadd.f32 %v1858, %v1880
  %v1885 = vadd.f32 %v1859, %v1881
  %v1886 = vadd.f32 %v1860, %v1882
  %1887 = vrot.lane.b32.xlu0 %v1116, 105
  %v1888 = vpop.permute.xlu0 %1887
  %1889 = vrot.lane.b32.xlu0 %v1117, 105
  %v1890 = vpop.permute.xlu0 %1889
  %1891 = vrot.lane.b32.xlu0 %v1118, 105
  %v1892 = vpop.permute.xlu0 %1891
  %1893 = vrot.lane.b32.xlu0 %v1119, 105
  %v1894 = vpop.permute.xlu0 %1893
  %vm1895 = vcmp.lt.s32.totalorder %v480, 105
  %v1896 = vsel %vm1895, %v1892, %v1894
  %v1897 = vsel %vm1895, %v1890, %v1892
  %v1898 = vsel %vm1895, %v1888, %v1890
  %v1899 = vsel %vm1895, %v1894, %v1888
  %s1900 = scalar_lea.vmem %s3, 1824
  %v1901 = vld [vmem:[%s1900] sm:$0xff]
  %v1902 = vld [vmem:[%s1900 + $0x8] sm:$0xff]
  %v1903 = vld [vmem:[%s1900 + $0x10] sm:$0xff]
  %v1904 = vld [vmem:[%s1900 + $0x18] sm:$0xff]
  %v1905 = vmul.f32 %v1899, %v1901
  %v1906 = vmul.f32 %v1898, %v1902
  %v1907 = vmul.f32 %v1897, %v1903
  %v1908 = vmul.f32 %v1896, %v1904
  %v1909 = vadd.f32 %v1883, %v1905
  %v1910 = vadd.f32 %v1884, %v1906
  %v1911 = vadd.f32 %v1885, %v1907
  %v1912 = vadd.f32 %v1886, %v1908
  %1913 = vrot.lane.b32.xlu0 %v1116, 102
  %v1914 = vpop.permute.xlu0 %1913
  %1915 = vrot.lane.b32.xlu0 %v1117, 102
  %v1916 = vpop.permute.xlu0 %1915
  %1917 = vrot.lane.b32.xlu0 %v1118, 102
  %v1918 = vpop.permute.xlu0 %1917
  %1919 = vrot.lane.b32.xlu0 %v1119, 102
  %v1920 = vpop.permute.xlu0 %1919
  %vm1921 = vcmp.lt.s32.totalorder %v480, 102
  %v1922 = vsel %vm1921, %v1918, %v1920
  %v1923 = vsel %vm1921, %v1916, %v1918
  %v1924 = vsel %vm1921, %v1914, %v1916
  %v1925 = vsel %vm1921, %v1920, %v1914
  %s1926 = scalar_lea.vmem %s3, 1856
  %v1927 = vld [vmem:[%s1926] sm:$0xff]
  %v1928 = vld [vmem:[%s1926 + $0x8] sm:$0xff]
  %v1929 = vld [vmem:[%s1926 + $0x10] sm:$0xff]
  %v1930 = vld [vmem:[%s1926 + $0x18] sm:$0xff]
  %v1931 = vmul.f32 %v1925, %v1927
  %v1932 = vmul.f32 %v1924, %v1928
  %v1933 = vmul.f32 %v1923, %v1929
  %v1934 = vmul.f32 %v1922, %v1930
  %v1935 = vadd.f32 %v1909, %v1931
  %v1936 = vadd.f32 %v1910, %v1932
  %v1937 = vadd.f32 %v1911, %v1933
  %v1938 = vadd.f32 %v1912, %v1934
  %1939 = vrot.lane.b32.xlu0 %v1116, 99
  %v1940 = vpop.permute.xlu0 %1939
  %1941 = vrot.lane.b32.xlu0 %v1117, 99
  %v1942 = vpop.permute.xlu0 %1941
  %1943 = vrot.lane.b32.xlu0 %v1118, 99
  %v1944 = vpop.permute.xlu0 %1943
  %1945 = vrot.lane.b32.xlu0 %v1119, 99
  %v1946 = vpop.permute.xlu0 %1945
  %vm1947 = vcmp.lt.s32.totalorder %v480, 99
  %v1948 = vsel %vm1947, %v1944, %v1946
  %v1949 = vsel %vm1947, %v1942, %v1944
  %v1950 = vsel %vm1947, %v1940, %v1942
  %v1951 = vsel %vm1947, %v1946, %v1940
  %s1952 = scalar_lea.vmem %s3, 1888
  %v1953 = vld [vmem:[%s1952] sm:$0xff]
  %v1954 = vld [vmem:[%s1952 + $0x8] sm:$0xff]
  %v1955 = vld [vmem:[%s1952 + $0x10] sm:$0xff]
  %v1956 = vld [vmem:[%s1952 + $0x18] sm:$0xff]
  %v1957 = vmul.f32 %v1951, %v1953
  %v1958 = vmul.f32 %v1950, %v1954
  %v1959 = vmul.f32 %v1949, %v1955
  %v1960 = vmul.f32 %v1948, %v1956
  %v1961 = vadd.f32 %v1935, %v1957
  %v1962 = vadd.f32 %v1936, %v1958
  %v1963 = vadd.f32 %v1937, %v1959
  %v1964 = vadd.f32 %v1938, %v1960
  %s1965 = scalar_lea.vmem %s3, 1920
  %v1966 = vld [vmem:[%s1965] sm:$0xff]
  %v1967 = vld [vmem:[%s1965 + $0x8] sm:$0xff]
  %v1968 = vld [vmem:[%s1965 + $0x10] sm:$0xff]
  %v1969 = vld [vmem:[%s1965 + $0x18] sm:$0xff]
  %v1970 = vmul.f32 %v1576, %v1966
  %v1971 = vmul.f32 %v1575, %v1967
  %v1972 = vmul.f32 %v1574, %v1968
  %v1973 = vmul.f32 %v1573, %v1969
  %v1974 = vadd.f32 %v1961, %v1970
  %v1975 = vadd.f32 %v1962, %v1971
  %v1976 = vadd.f32 %v1963, %v1972
  %v1977 = vadd.f32 %v1964, %v1973
  %1978 = vrot.lane.b32.xlu0 %v1116, 93
  %v1979 = vpop.permute.xlu0 %1978
  %1980 = vrot.lane.b32.xlu0 %v1117, 93
  %v1981 = vpop.permute.xlu0 %1980
  %1982 = vrot.lane.b32.xlu0 %v1118, 93
  %v1983 = vpop.permute.xlu0 %1982
  %1984 = vrot.lane.b32.xlu0 %v1119, 93
  %v1985 = vpop.permute.xlu0 %1984
  %vm1986 = vcmp.lt.s32.totalorder %v480, 93
  %v1987 = vsel %vm1986, %v1983, %v1985
  %v1988 = vsel %vm1986, %v1981, %v1983
  %v1989 = vsel %vm1986, %v1979, %v1981
  %v1990 = vsel %vm1986, %v1985, %v1979
  %s1991 = scalar_lea.vmem %s3, 1952
  %v1992 = vld [vmem:[%s1991] sm:$0xff]
  %v1993 = vld [vmem:[%s1991 + $0x8] sm:$0xff]
  %v1994 = vld [vmem:[%s1991 + $0x10] sm:$0xff]
  %v1995 = vld [vmem:[%s1991 + $0x18] sm:$0xff]
  %v1996 = vmul.f32 %v1990, %v1992
  %v1997 = vmul.f32 %v1989, %v1993
  %v1998 = vmul.f32 %v1988, %v1994
  %v1999 = vmul.f32 %v1987, %v1995
  %v2000 = vadd.f32 %v1974, %v1996
  %v2001 = vadd.f32 %v1975, %v1997
  %v2002 = vadd.f32 %v1976, %v1998
  %v2003 = vadd.f32 %v1977, %v1999
  %2004 = vrot.lane.b32.xlu0 %v1116, 90
  %v2005 = vpop.permute.xlu0 %2004
  %2006 = vrot.lane.b32.xlu0 %v1117, 90
  %v2007 = vpop.permute.xlu0 %2006
  %2008 = vrot.lane.b32.xlu0 %v1118, 90
  %v2009 = vpop.permute.xlu0 %2008
  %2010 = vrot.lane.b32.xlu0 %v1119, 90
  %v2011 = vpop.permute.xlu0 %2010
  %vm2012 = vcmp.lt.s32.totalorder %v480, 90
  %v2013 = vsel %vm2012, %v2009, %v2011
  %v2014 = vsel %vm2012, %v2007, %v2009
  %v2015 = vsel %vm2012, %v2005, %v2007
  %v2016 = vsel %vm2012, %v2011, %v2005
  %s2017 = scalar_lea.vmem %s3, 1984
  %v2018 = vld [vmem:[%s2017] sm:$0xff]
  %v2019 = vld [vmem:[%s2017 + $0x8] sm:$0xff]
  %v2020 = vld [vmem:[%s2017 + $0x10] sm:$0xff]
  %v2021 = vld [vmem:[%s2017 + $0x18] sm:$0xff]
  %v2022 = vmul.f32 %v2016, %v2018
  %v2023 = vmul.f32 %v2015, %v2019
  %v2024 = vmul.f32 %v2014, %v2020
  %v2025 = vmul.f32 %v2013, %v2021
  %v2026 = vadd.f32 %v2000, %v2022
  %v2027 = vadd.f32 %v2001, %v2023
  %v2028 = vadd.f32 %v2002, %v2024
  %v2029 = vadd.f32 %v2003, %v2025
  %2030 = vrot.lane.b32.xlu0 %v1116, 87
  %v2031 = vpop.permute.xlu0 %2030
  %2032 = vrot.lane.b32.xlu0 %v1117, 87
  %v2033 = vpop.permute.xlu0 %2032
  %2034 = vrot.lane.b32.xlu0 %v1118, 87
  %v2035 = vpop.permute.xlu0 %2034
  %2036 = vrot.lane.b32.xlu0 %v1119, 87
  %v2037 = vpop.permute.xlu0 %2036
  %vm2038 = vcmp.lt.s32.totalorder %v480, 87
  %v2039 = vsel %vm2038, %v2035, %v2037
  %v2040 = vsel %vm2038, %v2033, %v2035
  %v2041 = vsel %vm2038, %v2031, %v2033
  %v2042 = vsel %vm2038, %v2037, %v2031
  %s2043 = scalar_lea.vmem %s3, 2016
  %v2044 = vld [vmem:[%s2043] sm:$0xff]
  %v2045 = vld [vmem:[%s2043 + $0x8] sm:$0xff]
  %v2046 = vld [vmem:[%s2043 + $0x10] sm:$0xff]
  %v2047 = vld [vmem:[%s2043 + $0x18] sm:$0xff]
  %v2048 = vmul.f32 %v2042, %v2044
  %v2049 = vmul.f32 %v2041, %v2045
  %v2050 = vmul.f32 %v2040, %v2046
  %v2051 = vmul.f32 %v2039, %v2047
  %v2052 = vadd.f32 %v2026, %v2048
  %v2053 = vadd.f32 %v2027, %v2049
  %v2054 = vadd.f32 %v2028, %v2050
  %v2055 = vadd.f32 %v2029, %v2051
  %2056 = vrot.lane.b32.xlu0 %v1116, 57
  %v2057 = vpop.permute.xlu0 %2056
  %2058 = vrot.lane.b32.xlu0 %v1117, 57
  %v2059 = vpop.permute.xlu0 %2058
  %2060 = vrot.lane.b32.xlu0 %v1118, 57
  %v2061 = vpop.permute.xlu0 %2060
  %2062 = vrot.lane.b32.xlu0 %v1119, 57
  %v2063 = vpop.permute.xlu0 %2062
  %vm2064 = vcmp.lt.s32.totalorder %v480, 57
  %v2065 = vsel %vm2064, %v2061, %v2063
  %v2066 = vsel %vm2064, %v2059, %v2061
  %v2067 = vsel %vm2064, %v2057, %v2059
  %v2068 = vsel %vm2064, %v2063, %v2057
  %s2069 = scalar_lea.vmem %s3, 2048
  %v2070 = vld [vmem:[%s2069] sm:$0xff]
  %v2071 = vld [vmem:[%s2069 + $0x8] sm:$0xff]
  %v2072 = vld [vmem:[%s2069 + $0x10] sm:$0xff]
  %v2073 = vld [vmem:[%s2069 + $0x18] sm:$0xff]
  %v2074 = vmul.f32 %v2068, %v2070
  %v2075 = vmul.f32 %v2067, %v2071
  %v2076 = vmul.f32 %v2066, %v2072
  %v2077 = vmul.f32 %v2065, %v2073
  %v2078 = vadd.f32 %v2052, %v2074
  %v2079 = vadd.f32 %v2053, %v2075
  %v2080 = vadd.f32 %v2054, %v2076
  %v2081 = vadd.f32 %v2055, %v2077
  %2082 = vrot.lane.b32.xlu0 %v1116, 54
  %v2083 = vpop.permute.xlu0 %2082
  %2084 = vrot.lane.b32.xlu0 %v1117, 54
  %v2085 = vpop.permute.xlu0 %2084
  %2086 = vrot.lane.b32.xlu0 %v1118, 54
  %v2087 = vpop.permute.xlu0 %2086
  %2088 = vrot.lane.b32.xlu0 %v1119, 54
  %v2089 = vpop.permute.xlu0 %2088
  %vm2090 = vcmp.lt.s32.totalorder %v480, 54
  %v2091 = vsel %vm2090, %v2087, %v2089
  %v2092 = vsel %vm2090, %v2085, %v2087
  %v2093 = vsel %vm2090, %v2083, %v2085
  %v2094 = vsel %vm2090, %v2089, %v2083
  %s2095 = scalar_lea.vmem %s3, 2080
  %v2096 = vld [vmem:[%s2095] sm:$0xff]
  %v2097 = vld [vmem:[%s2095 + $0x8] sm:$0xff]
  %v2098 = vld [vmem:[%s2095 + $0x10] sm:$0xff]
  %v2099 = vld [vmem:[%s2095 + $0x18] sm:$0xff]
  %v2100 = vmul.f32 %v2094, %v2096
  %v2101 = vmul.f32 %v2093, %v2097
  %v2102 = vmul.f32 %v2092, %v2098
  %v2103 = vmul.f32 %v2091, %v2099
  %v2104 = vadd.f32 %v2078, %v2100
  %v2105 = vadd.f32 %v2079, %v2101
  %v2106 = vadd.f32 %v2080, %v2102
  %v2107 = vadd.f32 %v2081, %v2103
  %2108 = vrot.lane.b32.xlu0 %v1116, 51
  %v2109 = vpop.permute.xlu0 %2108
  %2110 = vrot.lane.b32.xlu0 %v1117, 51
  %v2111 = vpop.permute.xlu0 %2110
  %2112 = vrot.lane.b32.xlu0 %v1118, 51
  %v2113 = vpop.permute.xlu0 %2112
  %2114 = vrot.lane.b32.xlu0 %v1119, 51
  %v2115 = vpop.permute.xlu0 %2114
  %vm2116 = vcmp.lt.s32.totalorder %v480, 51
  %v2117 = vsel %vm2116, %v2113, %v2115
  %v2118 = vsel %vm2116, %v2111, %v2113
  %v2119 = vsel %vm2116, %v2109, %v2111
  %v2120 = vsel %vm2116, %v2115, %v2109
  %s2121 = scalar_lea.vmem %s3, 2112
  %v2122 = vld [vmem:[%s2121] sm:$0xff]
  %v2123 = vld [vmem:[%s2121 + $0x8] sm:$0xff]
  %v2124 = vld [vmem:[%s2121 + $0x10] sm:$0xff]
  %v2125 = vld [vmem:[%s2121 + $0x18] sm:$0xff]
  %v2126 = vmul.f32 %v2120, %v2122
  %v2127 = vmul.f32 %v2119, %v2123
  %v2128 = vmul.f32 %v2118, %v2124
  %v2129 = vmul.f32 %v2117, %v2125
  %v2130 = vadd.f32 %v2104, %v2126
  %v2131 = vadd.f32 %v2105, %v2127
  %v2132 = vadd.f32 %v2106, %v2128
  %v2133 = vadd.f32 %v2107, %v2129
  %2134 = vrot.lane.b32.xlu0 %v1116, 48
  %v2135 = vpop.permute.xlu0 %2134
  %2136 = vrot.lane.b32.xlu0 %v1117, 48
  %v2137 = vpop.permute.xlu0 %2136
  %2138 = vrot.lane.b32.xlu0 %v1118, 48
  %v2139 = vpop.permute.xlu0 %2138
  %2140 = vrot.lane.b32.xlu0 %v1119, 48
  %v2141 = vpop.permute.xlu0 %2140
  %vm2142 = vcmp.lt.s32.totalorder %v480, 48
  %v2143 = vsel %vm2142, %v2139, %v2141
  %v2144 = vsel %vm2142, %v2137, %v2139
  %v2145 = vsel %vm2142, %v2135, %v2137
  %v2146 = vsel %vm2142, %v2141, %v2135
  %s2147 = scalar_lea.vmem %s3, 2144
  %v2148 = vld [vmem:[%s2147] sm:$0xff]
  %v2149 = vld [vmem:[%s2147 + $0x8] sm:$0xff]
  %v2150 = vld [vmem:[%s2147 + $0x10] sm:$0xff]
  %v2151 = vld [vmem:[%s2147 + $0x18] sm:$0xff]
  %v2152 = vmul.f32 %v2146, %v2148
  %v2153 = vmul.f32 %v2145, %v2149
  %v2154 = vmul.f32 %v2144, %v2150
  %v2155 = vmul.f32 %v2143, %v2151
  %v2156 = vadd.f32 %v2130, %v2152
  %v2157 = vadd.f32 %v2131, %v2153
  %v2158 = vadd.f32 %v2132, %v2154
  %v2159 = vadd.f32 %v2133, %v2155
  %2160 = vrot.lane.b32.xlu0 %v1116, 45
  %v2161 = vpop.permute.xlu0 %2160
  %2162 = vrot.lane.b32.xlu0 %v1117, 45
  %v2163 = vpop.permute.xlu0 %2162
  %2164 = vrot.lane.b32.xlu0 %v1118, 45
  %v2165 = vpop.permute.xlu0 %2164
  %2166 = vrot.lane.b32.xlu0 %v1119, 45
  %v2167 = vpop.permute.xlu0 %2166
  %vm2168 = vcmp.lt.s32.totalorder %v480, 45
  %v2169 = vsel %vm2168, %v2165, %v2167
  %v2170 = vsel %vm2168, %v2163, %v2165
  %v2171 = vsel %vm2168, %v2161, %v2163
  %v2172 = vsel %vm2168, %v2167, %v2161
  %s2173 = scalar_lea.vmem %s3, 2176
  %v2174 = vld [vmem:[%s2173] sm:$0xff]
  %v2175 = vld [vmem:[%s2173 + $0x8] sm:$0xff]
  %v2176 = vld [vmem:[%s2173 + $0x10] sm:$0xff]
  %v2177 = vld [vmem:[%s2173 + $0x18] sm:$0xff]
  %v2178 = vmul.f32 %v2172, %v2174
  %v2179 = vmul.f32 %v2171, %v2175
  %v2180 = vmul.f32 %v2170, %v2176
  %v2181 = vmul.f32 %v2169, %v2177
  %v2182 = vadd.f32 %v2156, %v2178
  %v2183 = vadd.f32 %v2157, %v2179
  %v2184 = vadd.f32 %v2158, %v2180
  %v2185 = vadd.f32 %v2159, %v2181
  %2186 = vrot.lane.b32.xlu0 %v1116, 42
  %v2187 = vpop.permute.xlu0 %2186
  %2188 = vrot.lane.b32.xlu0 %v1117, 42
  %v2189 = vpop.permute.xlu0 %2188
  %2190 = vrot.lane.b32.xlu0 %v1118, 42
  %v2191 = vpop.permute.xlu0 %2190
  %2192 = vrot.lane.b32.xlu0 %v1119, 42
  %v2193 = vpop.permute.xlu0 %2192
  %vm2194 = vcmp.lt.s32.totalorder %v480, 42
  %v2195 = vsel %vm2194, %v2191, %v2193
  %v2196 = vsel %vm2194, %v2189, %v2191
  %v2197 = vsel %vm2194, %v2187, %v2189
  %v2198 = vsel %vm2194, %v2193, %v2187
  %s2199 = scalar_lea.vmem %s3, 2208
  %v2200 = vld [vmem:[%s2199] sm:$0xff]
  %v2201 = vld [vmem:[%s2199 + $0x8] sm:$0xff]
  %v2202 = vld [vmem:[%s2199 + $0x10] sm:$0xff]
  %v2203 = vld [vmem:[%s2199 + $0x18] sm:$0xff]
  %v2204 = vmul.f32 %v2198, %v2200
  %v2205 = vmul.f32 %v2197, %v2201
  %v2206 = vmul.f32 %v2196, %v2202
  %v2207 = vmul.f32 %v2195, %v2203
  %v2208 = vadd.f32 %v2182, %v2204
  %v2209 = vadd.f32 %v2183, %v2205
  %v2210 = vadd.f32 %v2184, %v2206
  %v2211 = vadd.f32 %v2185, %v2207
  %2212 = vrot.lane.b32.xlu0 %v1116, 39
  %v2213 = vpop.permute.xlu0 %2212
  %2214 = vrot.lane.b32.xlu0 %v1117, 39
  %v2215 = vpop.permute.xlu0 %2214
  %2216 = vrot.lane.b32.xlu0 %v1118, 39
  %v2217 = vpop.permute.xlu0 %2216
  %2218 = vrot.lane.b32.xlu0 %v1119, 39
  %v2219 = vpop.permute.xlu0 %2218
  %vm2220 = vcmp.lt.s32.totalorder %v480, 39
  %v2221 = vsel %vm2220, %v2217, %v2219
  %v2222 = vsel %vm2220, %v2215, %v2217
  %v2223 = vsel %vm2220, %v2213, %v2215
  %v2224 = vsel %vm2220, %v2219, %v2213
  %s2225 = scalar_lea.vmem %s3, 2240
  %v2226 = vld [vmem:[%s2225] sm:$0xff]
  %v2227 = vld [vmem:[%s2225 + $0x8] sm:$0xff]
  %v2228 = vld [vmem:[%s2225 + $0x10] sm:$0xff]
  %v2229 = vld [vmem:[%s2225 + $0x18] sm:$0xff]
  %v2230 = vmul.f32 %v2224, %v2226
  %v2231 = vmul.f32 %v2223, %v2227
  %v2232 = vmul.f32 %v2222, %v2228
  %v2233 = vmul.f32 %v2221, %v2229
  %v2234 = vadd.f32 %v2208, %v2230
  %v2235 = vadd.f32 %v2209, %v2231
  %v2236 = vadd.f32 %v2210, %v2232
  %v2237 = vadd.f32 %v2211, %v2233
  %2238 = vrot.lane.b32.xlu0 %v1116, 9
  %v2239 = vpop.permute.xlu0 %2238
  %2240 = vrot.lane.b32.xlu0 %v1117, 9
  %v2241 = vpop.permute.xlu0 %2240
  %2242 = vrot.lane.b32.xlu0 %v1118, 9
  %v2243 = vpop.permute.xlu0 %2242
  %2244 = vrot.lane.b32.xlu0 %v1119, 9
  %v2245 = vpop.permute.xlu0 %2244
  %vm2246 = vcmp.lt.s32.totalorder %v480, 9
  %v2247 = vsel %vm2246, %v2243, %v2245
  %v2248 = vsel %vm2246, %v2241, %v2243
  %v2249 = vsel %vm2246, %v2239, %v2241
  %v2250 = vsel %vm2246, %v2245, %v2239
  %s2251 = scalar_lea.vmem %s3, 2272
  %v2252 = vld [vmem:[%s2251] sm:$0xff]
  %v2253 = vld [vmem:[%s2251 + $0x8] sm:$0xff]
  %v2254 = vld [vmem:[%s2251 + $0x10] sm:$0xff]
  %v2255 = vld [vmem:[%s2251 + $0x18] sm:$0xff]
  %v2256 = vmul.f32 %v2250, %v2252
  %v2257 = vmul.f32 %v2249, %v2253
  %v2258 = vmul.f32 %v2248, %v2254
  %v2259 = vmul.f32 %v2247, %v2255
  %v2260 = vadd.f32 %v2234, %v2256
  %v2261 = vadd.f32 %v2235, %v2257
  %v2262 = vadd.f32 %v2236, %v2258
  %v2263 = vadd.f32 %v2237, %v2259
  %2264 = vrot.lane.b32.xlu0 %v1116, 6
  %v2265 = vpop.permute.xlu0 %2264
  %2266 = vrot.lane.b32.xlu0 %v1117, 6
  %v2267 = vpop.permute.xlu0 %2266
  %2268 = vrot.lane.b32.xlu0 %v1118, 6
  %v2269 = vpop.permute.xlu0 %2268
  %2270 = vrot.lane.b32.xlu0 %v1119, 6
  %v2271 = vpop.permute.xlu0 %2270
  %vm2272 = vcmp.lt.s32.totalorder %v480, 6
  %v2273 = vsel %vm2272, %v2269, %v2271
  %v2274 = vsel %vm2272, %v2267, %v2269
  %v2275 = vsel %vm2272, %v2265, %v2267
  %v2276 = vsel %vm2272, %v2271, %v2265
  %s2277 = scalar_lea.vmem %s3, 2304
  %v2278 = vld [vmem:[%s2277] sm:$0xff]
  %v2279 = vld [vmem:[%s2277 + $0x8] sm:$0xff]
  %v2280 = vld [vmem:[%s2277 + $0x10] sm:$0xff]
  %v2281 = vld [vmem:[%s2277 + $0x18] sm:$0xff]
  %v2282 = vmul.f32 %v2276, %v2278
  %v2283 = vmul.f32 %v2275, %v2279
  %v2284 = vmul.f32 %v2274, %v2280
  %v2285 = vmul.f32 %v2273, %v2281
  %v2286 = vadd.f32 %v2260, %v2282
  %v2287 = vadd.f32 %v2261, %v2283
  %v2288 = vadd.f32 %v2262, %v2284
  %v2289 = vadd.f32 %v2263, %v2285
  %2290 = vrot.lane.b32.xlu0 %v1116, 3
  %v2291 = vpop.permute.xlu0 %2290
  %2292 = vrot.lane.b32.xlu0 %v1117, 3
  %v2293 = vpop.permute.xlu0 %2292
  %2294 = vrot.lane.b32.xlu0 %v1118, 3
  %v2295 = vpop.permute.xlu0 %2294
  %2296 = vrot.lane.b32.xlu0 %v1119, 3
  %v2297 = vpop.permute.xlu0 %2296
  %vm2298 = vcmp.lt.s32.totalorder %v480, 3
  %v2299 = vsel %vm2298, %v2295, %v2297
  %v2300 = vsel %vm2298, %v2293, %v2295
  %v2301 = vsel %vm2298, %v2291, %v2293
  %v2302 = vsel %vm2298, %v2297, %v2291
  %s2303 = scalar_lea.vmem %s3, 2336
  %v2304 = vld [vmem:[%s2303] sm:$0xff]
  %v2305 = vld [vmem:[%s2303 + $0x8] sm:$0xff]
  %v2306 = vld [vmem:[%s2303 + $0x10] sm:$0xff]
  %v2307 = vld [vmem:[%s2303 + $0x18] sm:$0xff]
  %v2308 = vmul.f32 %v2302, %v2304
  %v2309 = vmul.f32 %v2301, %v2305
  %v2310 = vmul.f32 %v2300, %v2306
  %v2311 = vmul.f32 %v2299, %v2307
  %v2312 = vadd.f32 %v2286, %v2308
  %v2313 = vadd.f32 %v2287, %v2309
  %v2314 = vadd.f32 %v2288, %v2310
  %v2315 = vadd.f32 %v2289, %v2311
  %s2316 = scalar_lea.vmem %s3, 2368
  %v2317 = vld [vmem:[%s2316] sm:$0xff]
  %v2318 = vld [vmem:[%s2316 + $0x8] sm:$0xff]
  %v2319 = vld [vmem:[%s2316 + $0x10] sm:$0xff]
  %v2320 = vld [vmem:[%s2316 + $0x18] sm:$0xff]
  %v2321 = vmul.f32 %v1116, %v2317
  %v2322 = vmul.f32 %v1117, %v2318
  %v2323 = vmul.f32 %v1118, %v2319
  %v2324 = vmul.f32 %v1119, %v2320
  %v2325 = vadd.f32 %v2312, %v2321
  %v2326 = vadd.f32 %v2313, %v2322
  %v2327 = vadd.f32 %v2314, %v2323
  %v2328 = vadd.f32 %v2315, %v2324
  %2329 = vrot.lane.b32.xlu0 %v1116, 125
  %v2330 = vpop.permute.xlu0 %2329
  %2331 = vrot.lane.b32.xlu0 %v1117, 125
  %v2332 = vpop.permute.xlu0 %2331
  %2333 = vrot.lane.b32.xlu0 %v1118, 125
  %v2334 = vpop.permute.xlu0 %2333
  %2335 = vrot.lane.b32.xlu0 %v1119, 125
  %v2336 = vpop.permute.xlu0 %2335
  %vm2337 = vcmp.lt.s32.totalorder %v480, 125
  %v2338 = vsel %vm2337, %v2334, %v2336
  %v2339 = vsel %vm2337, %v2332, %v2334
  %v2340 = vsel %vm2337, %v2330, %v2332
  %v2341 = vsel %vm2337, %v2336, %v2330
  %s2342 = scalar_lea.vmem %s3, 2400
  %v2343 = vld [vmem:[%s2342] sm:$0xff]
  %v2344 = vld [vmem:[%s2342 + $0x8] sm:$0xff]
  %v2345 = vld [vmem:[%s2342 + $0x10] sm:$0xff]
  %v2346 = vld [vmem:[%s2342 + $0x18] sm:$0xff]
  %v2347 = vmul.f32 %v2340, %v2343
  %v2348 = vmul.f32 %v2339, %v2344
  %v2349 = vmul.f32 %v2338, %v2345
  %v2350 = vmul.f32 %v2341, %v2346
  %v2351 = vadd.f32 %v2325, %v2347
  %v2352 = vadd.f32 %v2326, %v2348
  %v2353 = vadd.f32 %v2327, %v2349
  %v2354 = vadd.f32 %v2328, %v2350
  %2355 = vrot.lane.b32.xlu0 %v1116, 122
  %v2356 = vpop.permute.xlu0 %2355
  %2357 = vrot.lane.b32.xlu0 %v1117, 122
  %v2358 = vpop.permute.xlu0 %2357
  %2359 = vrot.lane.b32.xlu0 %v1118, 122
  %v2360 = vpop.permute.xlu0 %2359
  %2361 = vrot.lane.b32.xlu0 %v1119, 122
  %v2362 = vpop.permute.xlu0 %2361
  %vm2363 = vcmp.lt.s32.totalorder %v480, 122
  %v2364 = vsel %vm2363, %v2360, %v2362
  %v2365 = vsel %vm2363, %v2358, %v2360
  %v2366 = vsel %vm2363, %v2356, %v2358
  %v2367 = vsel %vm2363, %v2362, %v2356
  %s2368 = scalar_lea.vmem %s3, 2432
  %v2369 = vld [vmem:[%s2368] sm:$0xff]
  %v2370 = vld [vmem:[%s2368 + $0x8] sm:$0xff]
  %v2371 = vld [vmem:[%s2368 + $0x10] sm:$0xff]
  %v2372 = vld [vmem:[%s2368 + $0x18] sm:$0xff]
  %v2373 = vmul.f32 %v2366, %v2369
  %v2374 = vmul.f32 %v2365, %v2370
  %v2375 = vmul.f32 %v2364, %v2371
  %v2376 = vmul.f32 %v2367, %v2372
  %v2377 = vadd.f32 %v2351, %v2373
  %v2378 = vadd.f32 %v2352, %v2374
  %v2379 = vadd.f32 %v2353, %v2375
  %v2380 = vadd.f32 %v2354, %v2376
  %2381 = vrot.lane.b32.xlu0 %v1116, 119
  %v2382 = vpop.permute.xlu0 %2381
  %2383 = vrot.lane.b32.xlu0 %v1117, 119
  %v2384 = vpop.permute.xlu0 %2383
  %2385 = vrot.lane.b32.xlu0 %v1118, 119
  %v2386 = vpop.permute.xlu0 %2385
  %2387 = vrot.lane.b32.xlu0 %v1119, 119
  %v2388 = vpop.permute.xlu0 %2387
  %vm2389 = vcmp.lt.s32.totalorder %v480, 119
  %v2390 = vsel %vm2389, %v2386, %v2388
  %v2391 = vsel %vm2389, %v2384, %v2386
  %v2392 = vsel %vm2389, %v2382, %v2384
  %v2393 = vsel %vm2389, %v2388, %v2382
  %s2394 = scalar_lea.vmem %s3, 2464
  %v2395 = vld [vmem:[%s2394] sm:$0xff]
  %v2396 = vld [vmem:[%s2394 + $0x8] sm:$0xff]
  %v2397 = vld [vmem:[%s2394 + $0x10] sm:$0xff]
  %v2398 = vld [vmem:[%s2394 + $0x18] sm:$0xff]
  %v2399 = vmul.f32 %v2392, %v2395
  %v2400 = vmul.f32 %v2391, %v2396
  %v2401 = vmul.f32 %v2390, %v2397
  %v2402 = vmul.f32 %v2393, %v2398
  %v2403 = vadd.f32 %v2377, %v2399
  %v2404 = vadd.f32 %v2378, %v2400
  %v2405 = vadd.f32 %v2379, %v2401
  %v2406 = vadd.f32 %v2380, %v2402
  %2407 = vrot.lane.b32.xlu0 %v1116, 89
  %v2408 = vpop.permute.xlu0 %2407
  %2409 = vrot.lane.b32.xlu0 %v1117, 89
  %v2410 = vpop.permute.xlu0 %2409
  %2411 = vrot.lane.b32.xlu0 %v1118, 89
  %v2412 = vpop.permute.xlu0 %2411
  %2413 = vrot.lane.b32.xlu0 %v1119, 89
  %v2414 = vpop.permute.xlu0 %2413
  %vm2415 = vcmp.lt.s32.totalorder %v480, 89
  %v2416 = vsel %vm2415, %v2412, %v2414
  %v2417 = vsel %vm2415, %v2410, %v2412
  %v2418 = vsel %vm2415, %v2408, %v2410
  %v2419 = vsel %vm2415, %v2414, %v2408
  %s2420 = scalar_lea.vmem %s3, 2496
  %v2421 = vld [vmem:[%s2420] sm:$0xff]
  %v2422 = vld [vmem:[%s2420 + $0x8] sm:$0xff]
  %v2423 = vld [vmem:[%s2420 + $0x10] sm:$0xff]
  %v2424 = vld [vmem:[%s2420 + $0x18] sm:$0xff]
  %v2425 = vmul.f32 %v2418, %v2421
  %v2426 = vmul.f32 %v2417, %v2422
  %v2427 = vmul.f32 %v2416, %v2423
  %v2428 = vmul.f32 %v2419, %v2424
  %v2429 = vadd.f32 %v2403, %v2425
  %v2430 = vadd.f32 %v2404, %v2426
  %v2431 = vadd.f32 %v2405, %v2427
  %v2432 = vadd.f32 %v2406, %v2428
  %2433 = vrot.lane.b32.xlu0 %v1116, 86
  %v2434 = vpop.permute.xlu0 %2433
  %2435 = vrot.lane.b32.xlu0 %v1117, 86
  %v2436 = vpop.permute.xlu0 %2435
  %2437 = vrot.lane.b32.xlu0 %v1118, 86
  %v2438 = vpop.permute.xlu0 %2437
  %2439 = vrot.lane.b32.xlu0 %v1119, 86
  %v2440 = vpop.permute.xlu0 %2439
  %vm2441 = vcmp.lt.s32.totalorder %v480, 86
  %v2442 = vsel %vm2441, %v2438, %v2440
  %v2443 = vsel %vm2441, %v2436, %v2438
  %v2444 = vsel %vm2441, %v2434, %v2436
  %v2445 = vsel %vm2441, %v2440, %v2434
  %s2446 = scalar_lea.vmem %s3, 2528
  %v2447 = vld [vmem:[%s2446] sm:$0xff]
  %v2448 = vld [vmem:[%s2446 + $0x8] sm:$0xff]
  %v2449 = vld [vmem:[%s2446 + $0x10] sm:$0xff]
  %v2450 = vld [vmem:[%s2446 + $0x18] sm:$0xff]
  %v2451 = vmul.f32 %v2444, %v2447
  %v2452 = vmul.f32 %v2443, %v2448
  %v2453 = vmul.f32 %v2442, %v2449
  %v2454 = vmul.f32 %v2445, %v2450
  %v2455 = vadd.f32 %v2429, %v2451
  %v2456 = vadd.f32 %v2430, %v2452
  %v2457 = vadd.f32 %v2431, %v2453
  %v2458 = vadd.f32 %v2432, %v2454
  %2459 = vrot.lane.b32.xlu0 %v1116, 83
  %v2460 = vpop.permute.xlu0 %2459
  %2461 = vrot.lane.b32.xlu0 %v1117, 83
  %v2462 = vpop.permute.xlu0 %2461
  %2463 = vrot.lane.b32.xlu0 %v1118, 83
  %v2464 = vpop.permute.xlu0 %2463
  %2465 = vrot.lane.b32.xlu0 %v1119, 83
  %v2466 = vpop.permute.xlu0 %2465
  %vm2467 = vcmp.lt.s32.totalorder %v480, 83
  %v2468 = vsel %vm2467, %v2464, %v2466
  %v2469 = vsel %vm2467, %v2462, %v2464
  %v2470 = vsel %vm2467, %v2460, %v2462
  %v2471 = vsel %vm2467, %v2466, %v2460
  %s2472 = scalar_lea.vmem %s3, 2560
  %v2473 = vld [vmem:[%s2472] sm:$0xff]
  %v2474 = vld [vmem:[%s2472 + $0x8] sm:$0xff]
  %v2475 = vld [vmem:[%s2472 + $0x10] sm:$0xff]
  %v2476 = vld [vmem:[%s2472 + $0x18] sm:$0xff]
  %v2477 = vmul.f32 %v2470, %v2473
  %v2478 = vmul.f32 %v2469, %v2474
  %v2479 = vmul.f32 %v2468, %v2475
  %v2480 = vmul.f32 %v2471, %v2476
  %v2481 = vadd.f32 %v2455, %v2477
  %v2482 = vadd.f32 %v2456, %v2478
  %v2483 = vadd.f32 %v2457, %v2479
  %v2484 = vadd.f32 %v2458, %v2480
  %2485 = vrot.lane.b32.xlu0 %v1116, 80
  %v2486 = vpop.permute.xlu0 %2485
  %2487 = vrot.lane.b32.xlu0 %v1117, 80
  %v2488 = vpop.permute.xlu0 %2487
  %2489 = vrot.lane.b32.xlu0 %v1118, 80
  %v2490 = vpop.permute.xlu0 %2489
  %2491 = vrot.lane.b32.xlu0 %v1119, 80
  %v2492 = vpop.permute.xlu0 %2491
  %vm2493 = vcmp.lt.s32.totalorder %v480, 80
  %v2494 = vsel %vm2493, %v2490, %v2492
  %v2495 = vsel %vm2493, %v2488, %v2490
  %v2496 = vsel %vm2493, %v2486, %v2488
  %v2497 = vsel %vm2493, %v2492, %v2486
  %s2498 = scalar_lea.vmem %s3, 2592
  %v2499 = vld [vmem:[%s2498] sm:$0xff]
  %v2500 = vld [vmem:[%s2498 + $0x8] sm:$0xff]
  %v2501 = vld [vmem:[%s2498 + $0x10] sm:$0xff]
  %v2502 = vld [vmem:[%s2498 + $0x18] sm:$0xff]
  %v2503 = vmul.f32 %v2496, %v2499
  %v2504 = vmul.f32 %v2495, %v2500
  %v2505 = vmul.f32 %v2494, %v2501
  %v2506 = vmul.f32 %v2497, %v2502
  %v2507 = vadd.f32 %v2481, %v2503
  %v2508 = vadd.f32 %v2482, %v2504
  %v2509 = vadd.f32 %v2483, %v2505
  %v2510 = vadd.f32 %v2484, %v2506
  %2511 = vrot.lane.b32.xlu0 %v1116, 77
  %v2512 = vpop.permute.xlu0 %2511
  %2513 = vrot.lane.b32.xlu0 %v1117, 77
  %v2514 = vpop.permute.xlu0 %2513
  %2515 = vrot.lane.b32.xlu0 %v1118, 77
  %v2516 = vpop.permute.xlu0 %2515
  %2517 = vrot.lane.b32.xlu0 %v1119, 77
  %v2518 = vpop.permute.xlu0 %2517
  %vm2519 = vcmp.lt.s32.totalorder %v480, 77
  %v2520 = vsel %vm2519, %v2516, %v2518
  %v2521 = vsel %vm2519, %v2514, %v2516
  %v2522 = vsel %vm2519, %v2512, %v2514
  %v2523 = vsel %vm2519, %v2518, %v2512
  %s2524 = scalar_lea.vmem %s3, 2624
  %v2525 = vld [vmem:[%s2524] sm:$0xff]
  %v2526 = vld [vmem:[%s2524 + $0x8] sm:$0xff]
  %v2527 = vld [vmem:[%s2524 + $0x10] sm:$0xff]
  %v2528 = vld [vmem:[%s2524 + $0x18] sm:$0xff]
  %v2529 = vmul.f32 %v2522, %v2525
  %v2530 = vmul.f32 %v2521, %v2526
  %v2531 = vmul.f32 %v2520, %v2527
  %v2532 = vmul.f32 %v2523, %v2528
  %v2533 = vadd.f32 %v2507, %v2529
  %v2534 = vadd.f32 %v2508, %v2530
  %v2535 = vadd.f32 %v2509, %v2531
  %v2536 = vadd.f32 %v2510, %v2532
  %2537 = vrot.lane.b32.xlu0 %v1116, 74
  %v2538 = vpop.permute.xlu0 %2537
  %2539 = vrot.lane.b32.xlu0 %v1117, 74
  %v2540 = vpop.permute.xlu0 %2539
  %2541 = vrot.lane.b32.xlu0 %v1118, 74
  %v2542 = vpop.permute.xlu0 %2541
  %2543 = vrot.lane.b32.xlu0 %v1119, 74
  %v2544 = vpop.permute.xlu0 %2543
  %vm2545 = vcmp.lt.s32.totalorder %v480, 74
  %v2546 = vsel %vm2545, %v2542, %v2544
  %v2547 = vsel %vm2545, %v2540, %v2542
  %v2548 = vsel %vm2545, %v2538, %v2540
  %v2549 = vsel %vm2545, %v2544, %v2538
  %s2550 = scalar_lea.vmem %s3, 2656
  %v2551 = vld [vmem:[%s2550] sm:$0xff]
  %v2552 = vld [vmem:[%s2550 + $0x8] sm:$0xff]
  %v2553 = vld [vmem:[%s2550 + $0x10] sm:$0xff]
  %v2554 = vld [vmem:[%s2550 + $0x18] sm:$0xff]
  %v2555 = vmul.f32 %v2548, %v2551
  %v2556 = vmul.f32 %v2547, %v2552
  %v2557 = vmul.f32 %v2546, %v2553
  %v2558 = vmul.f32 %v2549, %v2554
  %v2559 = vadd.f32 %v2533, %v2555
  %v2560 = vadd.f32 %v2534, %v2556
  %v2561 = vadd.f32 %v2535, %v2557
  %v2562 = vadd.f32 %v2536, %v2558
  %2563 = vrot.lane.b32.xlu0 %v1116, 71
  %v2564 = vpop.permute.xlu0 %2563
  %2565 = vrot.lane.b32.xlu0 %v1117, 71
  %v2566 = vpop.permute.xlu0 %2565
  %2567 = vrot.lane.b32.xlu0 %v1118, 71
  %v2568 = vpop.permute.xlu0 %2567
  %2569 = vrot.lane.b32.xlu0 %v1119, 71
  %v2570 = vpop.permute.xlu0 %2569
  %vm2571 = vcmp.lt.s32.totalorder %v480, 71
  %v2572 = vsel %vm2571, %v2568, %v2570
  %v2573 = vsel %vm2571, %v2566, %v2568
  %v2574 = vsel %vm2571, %v2564, %v2566
  %v2575 = vsel %vm2571, %v2570, %v2564
  %s2576 = scalar_lea.vmem %s3, 2688
  %v2577 = vld [vmem:[%s2576] sm:$0xff]
  %v2578 = vld [vmem:[%s2576 + $0x8] sm:$0xff]
  %v2579 = vld [vmem:[%s2576 + $0x10] sm:$0xff]
  %v2580 = vld [vmem:[%s2576 + $0x18] sm:$0xff]
  %v2581 = vmul.f32 %v2574, %v2577
  %v2582 = vmul.f32 %v2573, %v2578
  %v2583 = vmul.f32 %v2572, %v2579
  %v2584 = vmul.f32 %v2575, %v2580
  %v2585 = vadd.f32 %v2559, %v2581
  %v2586 = vadd.f32 %v2560, %v2582
  %v2587 = vadd.f32 %v2561, %v2583
  %v2588 = vadd.f32 %v2562, %v2584
  %2589 = vrot.lane.b32.xlu0 %v1116, 41
  %v2590 = vpop.permute.xlu0 %2589
  %2591 = vrot.lane.b32.xlu0 %v1117, 41
  %v2592 = vpop.permute.xlu0 %2591
  %2593 = vrot.lane.b32.xlu0 %v1118, 41
  %v2594 = vpop.permute.xlu0 %2593
  %2595 = vrot.lane.b32.xlu0 %v1119, 41
  %v2596 = vpop.permute.xlu0 %2595
  %vm2597 = vcmp.lt.s32.totalorder %v480, 41
  %v2598 = vsel %vm2597, %v2594, %v2596
  %v2599 = vsel %vm2597, %v2592, %v2594
  %v2600 = vsel %vm2597, %v2590, %v2592
  %v2601 = vsel %vm2597, %v2596, %v2590
  %s2602 = scalar_lea.vmem %s3, 2720
  %v2603 = vld [vmem:[%s2602] sm:$0xff]
  %v2604 = vld [vmem:[%s2602 + $0x8] sm:$0xff]
  %v2605 = vld [vmem:[%s2602 + $0x10] sm:$0xff]
  %v2606 = vld [vmem:[%s2602 + $0x18] sm:$0xff]
  %v2607 = vmul.f32 %v2600, %v2603
  %v2608 = vmul.f32 %v2599, %v2604
  %v2609 = vmul.f32 %v2598, %v2605
  %v2610 = vmul.f32 %v2601, %v2606
  %v2611 = vadd.f32 %v2585, %v2607
  %v2612 = vadd.f32 %v2586, %v2608
  %v2613 = vadd.f32 %v2587, %v2609
  %v2614 = vadd.f32 %v2588, %v2610
  %2615 = vrot.lane.b32.xlu0 %v1116, 38
  %v2616 = vpop.permute.xlu0 %2615
  %2617 = vrot.lane.b32.xlu0 %v1117, 38
  %v2618 = vpop.permute.xlu0 %2617
  %2619 = vrot.lane.b32.xlu0 %v1118, 38
  %v2620 = vpop.permute.xlu0 %2619
  %2621 = vrot.lane.b32.xlu0 %v1119, 38
  %v2622 = vpop.permute.xlu0 %2621
  %vm2623 = vcmp.lt.s32.totalorder %v480, 38
  %v2624 = vsel %vm2623, %v2620, %v2622
  %v2625 = vsel %vm2623, %v2618, %v2620
  %v2626 = vsel %vm2623, %v2616, %v2618
  %v2627 = vsel %vm2623, %v2622, %v2616
  %s2628 = scalar_lea.vmem %s3, 2752
  %v2629 = vld [vmem:[%s2628] sm:$0xff]
  %v2630 = vld [vmem:[%s2628 + $0x8] sm:$0xff]
  %v2631 = vld [vmem:[%s2628 + $0x10] sm:$0xff]
  %v2632 = vld [vmem:[%s2628 + $0x18] sm:$0xff]
  %v2633 = vmul.f32 %v2626, %v2629
  %v2634 = vmul.f32 %v2625, %v2630
  %v2635 = vmul.f32 %v2624, %v2631
  %v2636 = vmul.f32 %v2627, %v2632
  %v2637 = vadd.f32 %v2611, %v2633
  %v2638 = vadd.f32 %v2612, %v2634
  %v2639 = vadd.f32 %v2613, %v2635
  %v2640 = vadd.f32 %v2614, %v2636
  %2641 = vrot.lane.b32.xlu0 %v1116, 35
  %v2642 = vpop.permute.xlu0 %2641
  %2643 = vrot.lane.b32.xlu0 %v1117, 35
  %v2644 = vpop.permute.xlu0 %2643
  %2645 = vrot.lane.b32.xlu0 %v1118, 35
  %v2646 = vpop.permute.xlu0 %2645
  %2647 = vrot.lane.b32.xlu0 %v1119, 35
  %v2648 = vpop.permute.xlu0 %2647
  %vm2649 = vcmp.lt.s32.totalorder %v480, 35
  %v2650 = vsel %vm2649, %v2646, %v2648
  %v2651 = vsel %vm2649, %v2644, %v2646
  %v2652 = vsel %vm2649, %v2642, %v2644
  %v2653 = vsel %vm2649, %v2648, %v2642
  %s2654 = scalar_lea.vmem %s3, 2784
  %v2655 = vld [vmem:[%s2654] sm:$0xff]
  %v2656 = vld [vmem:[%s2654 + $0x8] sm:$0xff]
  %v2657 = vld [vmem:[%s2654 + $0x10] sm:$0xff]
  %v2658 = vld [vmem:[%s2654 + $0x18] sm:$0xff]
  %v2659 = vmul.f32 %v2652, %v2655
  %v2660 = vmul.f32 %v2651, %v2656
  %v2661 = vmul.f32 %v2650, %v2657
  %v2662 = vmul.f32 %v2653, %v2658
  %v2663 = vadd.f32 %v2637, %v2659
  %v2664 = vadd.f32 %v2638, %v2660
  %v2665 = vadd.f32 %v2639, %v2661
  %v2666 = vadd.f32 %v2640, %v2662
  %s2667 = scalar_lea.vmem %s3, 2816
  %v2668 = vld [vmem:[%s2667] sm:$0xff]
  %v2669 = vld [vmem:[%s2667 + $0x8] sm:$0xff]
  %v2670 = vld [vmem:[%s2667 + $0x10] sm:$0xff]
  %v2671 = vld [vmem:[%s2667 + $0x18] sm:$0xff]
  %v2672 = vmul.f32 %v1333, %v2668
  %v2673 = vmul.f32 %v1332, %v2669
  %v2674 = vmul.f32 %v1331, %v2670
  %v2675 = vmul.f32 %v1334, %v2671
  %v2676 = vadd.f32 %v2663, %v2672
  %v2677 = vadd.f32 %v2664, %v2673
  %v2678 = vadd.f32 %v2665, %v2674
  %v2679 = vadd.f32 %v2666, %v2675
  %2680 = vrot.lane.b32.xlu0 %v1116, 29
  %v2681 = vpop.permute.xlu0 %2680
  %2682 = vrot.lane.b32.xlu0 %v1117, 29
  %v2683 = vpop.permute.xlu0 %2682
  %2684 = vrot.lane.b32.xlu0 %v1118, 29
  %v2685 = vpop.permute.xlu0 %2684
  %2686 = vrot.lane.b32.xlu0 %v1119, 29
  %v2687 = vpop.permute.xlu0 %2686
  %vm2688 = vcmp.lt.s32.totalorder %v480, 29
  %v2689 = vsel %vm2688, %v2685, %v2687
  %v2690 = vsel %vm2688, %v2683, %v2685
  %v2691 = vsel %vm2688, %v2681, %v2683
  %v2692 = vsel %vm2688, %v2687, %v2681
  %s2693 = scalar_lea.vmem %s3, 2848
  %v2694 = vld [vmem:[%s2693] sm:$0xff]
  %v2695 = vld [vmem:[%s2693 + $0x8] sm:$0xff]
  %v2696 = vld [vmem:[%s2693 + $0x10] sm:$0xff]
  %v2697 = vld [vmem:[%s2693 + $0x18] sm:$0xff]
  %v2698 = vmul.f32 %v2691, %v2694
  %v2699 = vmul.f32 %v2690, %v2695
  %v2700 = vmul.f32 %v2689, %v2696
  %v2701 = vmul.f32 %v2692, %v2697
  %v2702 = vadd.f32 %v2676, %v2698
  %v2703 = vadd.f32 %v2677, %v2699
  %v2704 = vadd.f32 %v2678, %v2700
  %v2705 = vadd.f32 %v2679, %v2701
  %2706 = vrot.lane.b32.xlu0 %v1116, 26
  %v2707 = vpop.permute.xlu0 %2706
  %2708 = vrot.lane.b32.xlu0 %v1117, 26
  %v2709 = vpop.permute.xlu0 %2708
  %2710 = vrot.lane.b32.xlu0 %v1118, 26
  %v2711 = vpop.permute.xlu0 %2710
  %2712 = vrot.lane.b32.xlu0 %v1119, 26
  %v2713 = vpop.permute.xlu0 %2712
  %vm2714 = vcmp.lt.s32.totalorder %v480, 26
  %v2715 = vsel %vm2714, %v2711, %v2713
  %v2716 = vsel %vm2714, %v2709, %v2711
  %v2717 = vsel %vm2714, %v2707, %v2709
  %v2718 = vsel %vm2714, %v2713, %v2707
  %s2719 = scalar_lea.vmem %s3, 2880
  %v2720 = vld [vmem:[%s2719] sm:$0xff]
  %v2721 = vld [vmem:[%s2719 + $0x8] sm:$0xff]
  %v2722 = vld [vmem:[%s2719 + $0x10] sm:$0xff]
  %v2723 = vld [vmem:[%s2719 + $0x18] sm:$0xff]
  %v2724 = vmul.f32 %v2717, %v2720
  %v2725 = vmul.f32 %v2716, %v2721
  %v2726 = vmul.f32 %v2715, %v2722
  %v2727 = vmul.f32 %v2718, %v2723
  %v2728 = vadd.f32 %v2702, %v2724
  %v2729 = vadd.f32 %v2703, %v2725
  %v2730 = vadd.f32 %v2704, %v2726
  %v2731 = vadd.f32 %v2705, %v2727
  %2732 = vrot.lane.b32.xlu0 %v1116, 23
  %v2733 = vpop.permute.xlu0 %2732
  %2734 = vrot.lane.b32.xlu0 %v1117, 23
  %v2735 = vpop.permute.xlu0 %2734
  %2736 = vrot.lane.b32.xlu0 %v1118, 23
  %v2737 = vpop.permute.xlu0 %2736
  %2738 = vrot.lane.b32.xlu0 %v1119, 23
  %v2739 = vpop.permute.xlu0 %2738
  %vm2740 = vcmp.lt.s32.totalorder %v480, 23
  %v2741 = vsel %vm2740, %v2737, %v2739
  %v2742 = vsel %vm2740, %v2735, %v2737
  %v2743 = vsel %vm2740, %v2733, %v2735
  %v2744 = vsel %vm2740, %v2739, %v2733
  %s2745 = scalar_lea.vmem %s3, 2912
  %v2746 = vld [vmem:[%s2745] sm:$0xff]
  %v2747 = vld [vmem:[%s2745 + $0x8] sm:$0xff]
  %v2748 = vld [vmem:[%s2745 + $0x10] sm:$0xff]
  %v2749 = vld [vmem:[%s2745 + $0x18] sm:$0xff]
  %v2750 = vmul.f32 %v2743, %v2746
  %v2751 = vmul.f32 %v2742, %v2747
  %v2752 = vmul.f32 %v2741, %v2748
  %v2753 = vmul.f32 %v2744, %v2749
  %v2754 = vadd.f32 %v2728, %v2750
  %v2755 = vadd.f32 %v2729, %v2751
  %v2756 = vadd.f32 %v2730, %v2752
  %v2757 = vadd.f32 %v2731, %v2753
  %2758 = vrot.lane.b32.xlu0 %v1116, 121
  %v2759 = vpop.permute.xlu0 %2758
  %2760 = vrot.lane.b32.xlu0 %v1117, 121
  %v2761 = vpop.permute.xlu0 %2760
  %2762 = vrot.lane.b32.xlu0 %v1118, 121
  %v2763 = vpop.permute.xlu0 %2762
  %2764 = vrot.lane.b32.xlu0 %v1119, 121
  %v2765 = vpop.permute.xlu0 %2764
  %vm2766 = vcmp.lt.s32.totalorder %v480, 121
  %v2767 = vsel %vm2766, %v2763, %v2765
  %v2768 = vsel %vm2766, %v2761, %v2763
  %v2769 = vsel %vm2766, %v2759, %v2761
  %v2770 = vsel %vm2766, %v2765, %v2759
  %s2771 = scalar_lea.vmem %s3, 2944
  %v2772 = vld [vmem:[%s2771] sm:$0xff]
  %v2773 = vld [vmem:[%s2771 + $0x8] sm:$0xff]
  %v2774 = vld [vmem:[%s2771 + $0x10] sm:$0xff]
  %v2775 = vld [vmem:[%s2771 + $0x18] sm:$0xff]
  %v2776 = vmul.f32 %v2768, %v2772
  %v2777 = vmul.f32 %v2767, %v2773
  %v2778 = vmul.f32 %v2770, %v2774
  %v2779 = vmul.f32 %v2769, %v2775
  %v2780 = vadd.f32 %v2754, %v2776
  %v2781 = vadd.f32 %v2755, %v2777
  %v2782 = vadd.f32 %v2756, %v2778
  %v2783 = vadd.f32 %v2757, %v2779
  %2784 = vrot.lane.b32.xlu0 %v1116, 118
  %v2785 = vpop.permute.xlu0 %2784
  %2786 = vrot.lane.b32.xlu0 %v1117, 118
  %v2787 = vpop.permute.xlu0 %2786
  %2788 = vrot.lane.b32.xlu0 %v1118, 118
  %v2789 = vpop.permute.xlu0 %2788
  %2790 = vrot.lane.b32.xlu0 %v1119, 118
  %v2791 = vpop.permute.xlu0 %2790
  %vm2792 = vcmp.lt.s32.totalorder %v480, 118
  %v2793 = vsel %vm2792, %v2789, %v2791
  %v2794 = vsel %vm2792, %v2787, %v2789
  %v2795 = vsel %vm2792, %v2785, %v2787
  %v2796 = vsel %vm2792, %v2791, %v2785
  %s2797 = scalar_lea.vmem %s3, 2976
  %v2798 = vld [vmem:[%s2797] sm:$0xff]
  %v2799 = vld [vmem:[%s2797 + $0x8] sm:$0xff]
  %v2800 = vld [vmem:[%s2797 + $0x10] sm:$0xff]
  %v2801 = vld [vmem:[%s2797 + $0x18] sm:$0xff]
  %v2802 = vmul.f32 %v2794, %v2798
  %v2803 = vmul.f32 %v2793, %v2799
  %v2804 = vmul.f32 %v2796, %v2800
  %v2805 = vmul.f32 %v2795, %v2801
  %v2806 = vadd.f32 %v2780, %v2802
  %v2807 = vadd.f32 %v2781, %v2803
  %v2808 = vadd.f32 %v2782, %v2804
  %v2809 = vadd.f32 %v2783, %v2805
  %2810 = vrot.lane.b32.xlu0 %v1116, 115
  %v2811 = vpop.permute.xlu0 %2810
  %2812 = vrot.lane.b32.xlu0 %v1117, 115
  %v2813 = vpop.permute.xlu0 %2812
  %2814 = vrot.lane.b32.xlu0 %v1118, 115
  %v2815 = vpop.permute.xlu0 %2814
  %2816 = vrot.lane.b32.xlu0 %v1119, 115
  %v2817 = vpop.permute.xlu0 %2816
  %vm2818 = vcmp.lt.s32.totalorder %v480, 115
  %v2819 = vsel %vm2818, %v2815, %v2817
  %v2820 = vsel %vm2818, %v2813, %v2815
  %v2821 = vsel %vm2818, %v2811, %v2813
  %v2822 = vsel %vm2818, %v2817, %v2811
  %s2823 = scalar_lea.vmem %s3, 3008
  %v2824 = vld [vmem:[%s2823] sm:$0xff]
  %v2825 = vld [vmem:[%s2823 + $0x8] sm:$0xff]
  %v2826 = vld [vmem:[%s2823 + $0x10] sm:$0xff]
  %v2827 = vld [vmem:[%s2823 + $0x18] sm:$0xff]
  %v2828 = vmul.f32 %v2820, %v2824
  %v2829 = vmul.f32 %v2819, %v2825
  %v2830 = vmul.f32 %v2822, %v2826
  %v2831 = vmul.f32 %v2821, %v2827
  %v2832 = vadd.f32 %v2806, %v2828
  %v2833 = vadd.f32 %v2807, %v2829
  %v2834 = vadd.f32 %v2808, %v2830
  %v2835 = vadd.f32 %v2809, %v2831
  %2836 = vrot.lane.b32.xlu0 %v1116, 112
  %v2837 = vpop.permute.xlu0 %2836
  %2838 = vrot.lane.b32.xlu0 %v1117, 112
  %v2839 = vpop.permute.xlu0 %2838
  %2840 = vrot.lane.b32.xlu0 %v1118, 112
  %v2841 = vpop.permute.xlu0 %2840
  %2842 = vrot.lane.b32.xlu0 %v1119, 112
  %v2843 = vpop.permute.xlu0 %2842
  %v2844 = vsel %vm909, %v2841, %v2843
  %v2845 = vsel %vm909, %v2839, %v2841
  %v2846 = vsel %vm909, %v2837, %v2839
  %v2847 = vsel %vm909, %v2843, %v2837
  %s2848 = scalar_lea.vmem %s3, 3040
  %v2849 = vld [vmem:[%s2848] sm:$0xff]
  %v2850 = vld [vmem:[%s2848 + $0x8] sm:$0xff]
  %v2851 = vld [vmem:[%s2848 + $0x10] sm:$0xff]
  %v2852 = vld [vmem:[%s2848 + $0x18] sm:$0xff]
  %v2853 = vmul.f32 %v2845, %v2849
  %v2854 = vmul.f32 %v2844, %v2850
  %v2855 = vmul.f32 %v2847, %v2851
  %v2856 = vmul.f32 %v2846, %v2852
  %v2857 = vadd.f32 %v2832, %v2853
  %v2858 = vadd.f32 %v2833, %v2854
  %v2859 = vadd.f32 %v2834, %v2855
  %v2860 = vadd.f32 %v2835, %v2856
  %2861 = vrot.lane.b32.xlu0 %v1116, 109
  %v2862 = vpop.permute.xlu0 %2861
  %2863 = vrot.lane.b32.xlu0 %v1117, 109
  %v2864 = vpop.permute.xlu0 %2863
  %2865 = vrot.lane.b32.xlu0 %v1118, 109
  %v2866 = vpop.permute.xlu0 %2865
  %2867 = vrot.lane.b32.xlu0 %v1119, 109
  %v2868 = vpop.permute.xlu0 %2867
  %vm2869 = vcmp.lt.s32.totalorder %v480, 109
  %v2870 = vsel %vm2869, %v2866, %v2868
  %v2871 = vsel %vm2869, %v2864, %v2866
  %v2872 = vsel %vm2869, %v2862, %v2864
  %v2873 = vsel %vm2869, %v2868, %v2862
  %s2874 = scalar_lea.vmem %s3, 3072
  %v2875 = vld [vmem:[%s2874] sm:$0xff]
  %v2876 = vld [vmem:[%s2874 + $0x8] sm:$0xff]
  %v2877 = vld [vmem:[%s2874 + $0x10] sm:$0xff]
  %v2878 = vld [vmem:[%s2874 + $0x18] sm:$0xff]
  %v2879 = vmul.f32 %v2871, %v2875
  %v2880 = vmul.f32 %v2870, %v2876
  %v2881 = vmul.f32 %v2873, %v2877
  %v2882 = vmul.f32 %v2872, %v2878
  %v2883 = vadd.f32 %v2857, %v2879
  %v2884 = vadd.f32 %v2858, %v2880
  %v2885 = vadd.f32 %v2859, %v2881
  %v2886 = vadd.f32 %v2860, %v2882
  %2887 = vrot.lane.b32.xlu0 %v1116, 106
  %v2888 = vpop.permute.xlu0 %2887
  %2889 = vrot.lane.b32.xlu0 %v1117, 106
  %v2890 = vpop.permute.xlu0 %2889
  %2891 = vrot.lane.b32.xlu0 %v1118, 106
  %v2892 = vpop.permute.xlu0 %2891
  %2893 = vrot.lane.b32.xlu0 %v1119, 106
  %v2894 = vpop.permute.xlu0 %2893
  %vm2895 = vcmp.lt.s32.totalorder %v480, 106
  %v2896 = vsel %vm2895, %v2892, %v2894
  %v2897 = vsel %vm2895, %v2890, %v2892
  %v2898 = vsel %vm2895, %v2888, %v2890
  %v2899 = vsel %vm2895, %v2894, %v2888
  %s2900 = scalar_lea.vmem %s3, 3104
  %v2901 = vld [vmem:[%s2900] sm:$0xff]
  %v2902 = vld [vmem:[%s2900 + $0x8] sm:$0xff]
  %v2903 = vld [vmem:[%s2900 + $0x10] sm:$0xff]
  %v2904 = vld [vmem:[%s2900 + $0x18] sm:$0xff]
  %v2905 = vmul.f32 %v2897, %v2901
  %v2906 = vmul.f32 %v2896, %v2902
  %v2907 = vmul.f32 %v2899, %v2903
  %v2908 = vmul.f32 %v2898, %v2904
  %v2909 = vadd.f32 %v2883, %v2905
  %v2910 = vadd.f32 %v2884, %v2906
  %v2911 = vadd.f32 %v2885, %v2907
  %v2912 = vadd.f32 %v2886, %v2908
  %2913 = vrot.lane.b32.xlu0 %v1116, 103
  %v2914 = vpop.permute.xlu0 %2913
  %2915 = vrot.lane.b32.xlu0 %v1117, 103
  %v2916 = vpop.permute.xlu0 %2915
  %2917 = vrot.lane.b32.xlu0 %v1118, 103
  %v2918 = vpop.permute.xlu0 %2917
  %2919 = vrot.lane.b32.xlu0 %v1119, 103
  %v2920 = vpop.permute.xlu0 %2919
  %vm2921 = vcmp.lt.s32.totalorder %v480, 103
  %v2922 = vsel %vm2921, %v2918, %v2920
  %v2923 = vsel %vm2921, %v2916, %v2918
  %v2924 = vsel %vm2921, %v2914, %v2916
  %v2925 = vsel %vm2921, %v2920, %v2914
  %s2926 = scalar_lea.vmem %s3, 3136
  %v2927 = vld [vmem:[%s2926] sm:$0xff]
  %v2928 = vld [vmem:[%s2926 + $0x8] sm:$0xff]
  %v2929 = vld [vmem:[%s2926 + $0x10] sm:$0xff]
  %v2930 = vld [vmem:[%s2926 + $0x18] sm:$0xff]
  %v2931 = vmul.f32 %v2923, %v2927
  %v2932 = vmul.f32 %v2922, %v2928
  %v2933 = vmul.f32 %v2925, %v2929
  %v2934 = vmul.f32 %v2924, %v2930
  %v2935 = vadd.f32 %v2909, %v2931
  %v2936 = vadd.f32 %v2910, %v2932
  %v2937 = vadd.f32 %v2911, %v2933
  %v2938 = vadd.f32 %v2912, %v2934
  %s2939 = scalar_lea.vmem %s1, 16
  %v2940 = vld [vmem:[%s2939] sm:$0xff]
  %s2941 = scalar_lea.vmem %s2, 40
  %v2942 = vld [vmem:[%s2941] sm:$0xff]
  %2944 = vset.pattern.permute.xlu0 0
  %2945 = vperm.xlu0 %2944, %v2942
  %v2946 = vpop.permute.xlu0 %2945
  %v2949 = vsel %vm31, %v2940, 0
  %2951 = vmatprep.subr.mxu0 %v2936
  %2952 = vmatpush1.msra.mxu0 %v2935
  %2953 = vmatprep.subr.mxu0 0.0
  %2954 = vmatpush1.msra.mxu0 0.0
  %2955 = vmatprep.subr.mxu0 0.0
  %2956 = vmatpush1.msra.mxu0 0.0
  %2957 = vmatprep.subr.mxu0 0.0
  %2958 = vmatpush1.msra.mxu0 0.0
  %2959 = vmatprep.subr.mxu0 0.0
  %2960 = vmatpush1.msra.mxu0 0.0
  %2961 = vmatprep.subr.mxu0 0.0
  %2962 = vmatpush1.msra.mxu0 0.0
  %2963 = vmatprep.subr.mxu0 0.0
  %2964 = vmatpush1.msra.mxu0 0.0
  %2965 = vmatprep.subr.mxu0 0.0
  %2966 = vmatpush1.msra.mxu0 0.0
  %2967 = vmatprep.subr.mxu0 0.0
  %2968 = vmatpush1.msra.mxu0 0.0
  %2969 = vmatprep.subr.mxu0 0.0
  %2970 = vmatpush1.msra.mxu0 0.0
  %2971 = vmatprep.subr.mxu0 0.0
  %2972 = vmatpush1.msra.mxu0 0.0
  %2973 = vmatprep.subr.mxu0 0.0
  %2974 = vmatpush1.msra.mxu0 0.0
  %2975 = vmatprep.subr.mxu0 0.0
  %2976 = vmatpush1.msra.mxu0 0.0
  %2977 = vmatprep.subr.mxu0 0.0
  %2978 = vmatpush1.msra.mxu0 0.0
  %2979 = vmatprep.subr.mxu0 0.0
  %2980 = vmatpush1.msra.mxu0 0.0
  %2981 = vmatprep.subr.mxu0 0.0
  %2982 = vmatpush1.msra.mxu0 0.0
  %2983 = vmatprep.subr.mxu0 0.0
  %2984 = vmatpush1.msra.mxu0 0.0
  %2985 = vmatprep.subr.mxu0 0.0
  %2986 = vmatpush1.msra.mxu0 0.0
  %2987 = vmatprep.subr.mxu0 0.0
  %2988 = vmatpush1.msra.mxu0 0.0
  %2989 = vmatprep.subr.mxu0 0.0
  %2990 = vmatpush1.msra.mxu0 0.0
  %2991 = vmatprep.subr.mxu0 0.0
  %2992 = vmatpush1.msra.mxu0 0.0
  %2993 = vmatprep.subr.mxu0 0.0
  %2994 = vmatpush1.msra.mxu0 0.0
  %2995 = vmatprep.subr.mxu0 0.0
  %2996 = vmatpush1.msra.mxu0 0.0
  %2997 = vmatprep.subr.mxu0 0.0
  %2998 = vmatpush1.msra.mxu0 0.0
  %2999 = vmatprep.subr.mxu0 0.0
  %3000 = vmatpush1.msra.mxu0 0.0
  %3001 = vmatprep.subr.mxu0 0.0
  %3002 = vmatpush1.msra.mxu0 0.0
  %3003 = vmatprep.subr.mxu0 0.0
  %3004 = vmatpush1.msra.mxu0 0.0
  %3005 = vmatprep.subr.mxu0 0.0
  %3006 = vmatpush1.msra.mxu0 0.0
  %3007 = vmatprep.subr.mxu0 0.0
  %3008 = vmatpush1.msra.mxu0 0.0
  %3009 = vmatprep.subr.mxu0 0.0
  %3010 = vmatpush1.msra.mxu0 0.0
  %3011 = vmatprep.subr.mxu0 0.0
  %3012 = vmatpush1.msra.mxu0 0.0
  %3013 = vmatprep.subr.mxu0 0.0
  %3014 = vmatpush1.msra.mxu0 0.0
  %3015 = vmatprep.mubr.f32.mxu0 0.0
  %3016 = vmatmul.mubr.f32.gmra.mrb[0].mxu0 %v2949
  %v3017 = vpop.f32.mrb[0].mxu0
  %v3018 = vadd.f32 %v2946, %v3017
  %v3019 = vpop.f32.mrb[0].mxu0
  %v3020 = vadd.f32 %v2946, %v3019
  %3021 = vdwg.mxu0
  %3022 = vmatprep.subr.mxu0 %v2938
  %3023 = vmatpush1.msra.mxu0 %v2937
  %3024 = vmatprep.subr.mxu0 0.0
  %3025 = vmatpush1.msra.mxu0 0.0
  %3026 = vmatprep.subr.mxu0 0.0
  %3027 = vmatpush1.msra.mxu0 0.0
  %3028 = vmatprep.subr.mxu0 0.0
  %3029 = vmatpush1.msra.mxu0 0.0
  %3030 = vmatprep.subr.mxu0 0.0
  %3031 = vmatpush1.msra.mxu0 0.0
  %3032 = vmatprep.subr.mxu0 0.0
  %3033 = vmatpush1.msra.mxu0 0.0
  %3034 = vmatprep.subr.mxu0 0.0
  %3035 = vmatpush1.msra.mxu0 0.0
  %3036 = vmatprep.subr.mxu0 0.0
  %3037 = vmatpush1.msra.mxu0 0.0
  %3038 = vmatprep.subr.mxu0 0.0
  %3039 = vmatpush1.msra.mxu0 0.0
  %3040 = vmatprep.subr.mxu0 0.0
  %3041 = vmatpush1.msra.mxu0 0.0
  %3042 = vmatprep.subr.mxu0 0.0
  %3043 = vmatpush1.msra.mxu0 0.0
  %3044 = vmatprep.subr.mxu0 0.0
  %3045 = vmatpush1.msra.mxu0 0.0
  %3046 = vmatprep.subr.mxu0 0.0
  %3047 = vmatpush1.msra.mxu0 0.0
  %3048 = vmatprep.subr.mxu0 0.0
  %3049 = vmatpush1.msra.mxu0 0.0
  %3050 = vmatprep.subr.mxu0 0.0
  %3051 = vmatpush1.msra.mxu0 0.0
  %3052 = vmatprep.subr.mxu0 0.0
  %3053 = vmatpush1.msra.mxu0 0.0
  %3054 = vmatprep.subr.mxu0 0.0
  %3055 = vmatpush1.msra.mxu0 0.0
  %3056 = vmatprep.subr.mxu0 0.0
  %3057 = vmatpush1.msra.mxu0 0.0
  %3058 = vmatprep.subr.mxu0 0.0
  %3059 = vmatpush1.msra.mxu0 0.0
  %3060 = vmatprep.subr.mxu0 0.0
  %3061 = vmatpush1.msra.mxu0 0.0
  %3062 = vmatprep.subr.mxu0 0.0
  %3063 = vmatpush1.msra.mxu0 0.0
  %3064 = vmatprep.subr.mxu0 0.0
  %3065 = vmatpush1.msra.mxu0 0.0
  %3066 = vmatprep.subr.mxu0 0.0
  %3067 = vmatpush1.msra.mxu0 0.0
  %3068 = vmatprep.subr.mxu0 0.0
  %3069 = vmatpush1.msra.mxu0 0.0
  %3070 = vmatprep.subr.mxu0 0.0
  %3071 = vmatpush1.msra.mxu0 0.0
  %3072 = vmatprep.subr.mxu0 0.0
  %3073 = vmatpush1.msra.mxu0 0.0
  %3074 = vmatprep.subr.mxu0 0.0
  %3075 = vmatpush1.msra.mxu0 0.0
  %3076 = vmatprep.subr.mxu0 0.0
  %3077 = vmatpush1.msra.mxu0 0.0
  %3078 = vmatprep.subr.mxu0 0.0
  %3079 = vmatpush1.msra.mxu0 0.0
  %3080 = vmatprep.subr.mxu0 0.0
  %3081 = vmatpush1.msra.mxu0 0.0
  %3082 = vmatprep.subr.mxu0 0.0
  %3083 = vmatpush1.msra.mxu0 0.0
  %3084 = vmatprep.subr.mxu0 0.0
  %3085 = vmatpush1.msra.mxu0 0.0
  %3086 = vmatprep.mubr.f32.mxu0 0.0
  %3087 = vmatmul.mubr.f32.gmra.mrb[0].mxu0 %v2949
  %v3088 = vpop.f32.mrb[0].mxu0
  %v3089 = vadd.f32 %v2946, %v3088
  %v3090 = vpop.f32.mrb[0].mxu0
  %v3091 = vadd.f32 %v2946, %v3090
  %3092 = vdwg.mxu0
  %v3093 = vmul.f32 %v3018, 0.5
  %v3094 = vmul.f32 %v3020, 0.5
  %v3095 = vmul.f32 %v3089, 0.5
  %v3096 = vmul.f32 %v3091, 0.5
  %v3097 = vtanh.pop %v3093
  %v3098 = vtanh.pop %v3094
  %v3099 = vtanh.pop %v3095
  %v3100 = vtanh.pop %v3096
  %v3101 = vadd.f32 %v3097, 1.0
  %v3102 = vadd.f32 %v3098, 1.0
  %v3103 = vadd.f32 %v3099, 1.0
  %v3104 = vadd.f32 %v3100, 1.0
  %v3105 = vmul.f32 %v3101, 0.5
  %v3106 = vmul.f32 %v3102, 0.5
  %v3107 = vmul.f32 %v3103, 0.5
  %v3108 = vmul.f32 %v3104, 0.5
  %v3109 = vmul.f32 %v3018, %v3105
  %v3110 = vmul.f32 %v3020, %v3106
  %v3111 = vmul.f32 %v3089, %v3107
  %v3112 = vmul.f32 %v3091, %v3108
  %v3113 = vmul.f32 %v467, %v3109
  %v3114 = vmul.f32 %v468, %v3110
  %v3115 = vmul.f32 %v469, %v3111
  %v3116 = vmul.f32 %v470, %v3112
  %s3117 = scalar_lea.vmem %s1, 24
  %v3118 = vld [vmem:[%s3117] sm:$0xff]
  %s3119 = scalar_lea.vmem %s2, 48
  %v3120 = vld [vmem:[%s3119] sm:$0xff]
  %3122 = vset.pattern.permute.xlu0 0
  %3123 = vperm.xlu0 %3122, %v3120
  %v3124 = vpop.permute.xlu0 %3123
  %v3127 = vsel %vm31, %v3118, 0
  %3129 = vmatprep.subr.mxu0 %v3114
  %3130 = vmatpush1.msra.mxu0 %v3113
  %3131 = vmatprep.subr.mxu0 0.0
  %3132 = vmatpush1.msra.mxu0 0.0
  %3133 = vmatprep.subr.mxu0 0.0
  %3134 = vmatpush1.msra.mxu0 0.0
  %3135 = vmatprep.subr.mxu0 0.0
  %3136 = vmatpush1.msra.mxu0 0.0
  %3137 = vmatprep.subr.mxu0 0.0
  %3138 = vmatpush1.msra.mxu0 0.0
  %3139 = vmatprep.subr.mxu0 0.0
  %3140 = vmatpush1.msra.mxu0 0.0
  %3141 = vmatprep.subr.mxu0 0.0
  %3142 = vmatpush1.msra.mxu0 0.0
  %3143 = vmatprep.subr.mxu0 0.0
  %3144 = vmatpush1.msra.mxu0 0.0
  %3145 = vmatprep.subr.mxu0 0.0
  %3146 = vmatpush1.msra.mxu0 0.0
  %3147 = vmatprep.subr.mxu0 0.0
  %3148 = vmatpush1.msra.mxu0 0.0
  %3149 = vmatprep.subr.mxu0 0.0
  %3150 = vmatpush1.msra.mxu0 0.0
  %3151 = vmatprep.subr.mxu0 0.0
  %3152 = vmatpush1.msra.mxu0 0.0
  %3153 = vmatprep.subr.mxu0 0.0
  %3154 = vmatpush1.msra.mxu0 0.0
  %3155 = vmatprep.subr.mxu0 0.0
  %3156 = vmatpush1.msra.mxu0 0.0
  %3157 = vmatprep.subr.mxu0 0.0
  %3158 = vmatpush1.msra.mxu0 0.0
  %3159 = vmatprep.subr.mxu0 0.0
  %3160 = vmatpush1.msra.mxu0 0.0
  %3161 = vmatprep.subr.mxu0 0.0
  %3162 = vmatpush1.msra.mxu0 0.0
  %3163 = vmatprep.subr.mxu0 0.0
  %3164 = vmatpush1.msra.mxu0 0.0
  %3165 = vmatprep.subr.mxu0 0.0
  %3166 = vmatpush1.msra.mxu0 0.0
  %3167 = vmatprep.subr.mxu0 0.0
  %3168 = vmatpush1.msra.mxu0 0.0
  %3169 = vmatprep.subr.mxu0 0.0
  %3170 = vmatpush1.msra.mxu0 0.0
  %3171 = vmatprep.subr.mxu0 0.0
  %3172 = vmatpush1.msra.mxu0 0.0
  %3173 = vmatprep.subr.mxu0 0.0
  %3174 = vmatpush1.msra.mxu0 0.0
  %3175 = vmatprep.subr.mxu0 0.0
  %3176 = vmatpush1.msra.mxu0 0.0
  %3177 = vmatprep.subr.mxu0 0.0
  %3178 = vmatpush1.msra.mxu0 0.0
  %3179 = vmatprep.subr.mxu0 0.0
  %3180 = vmatpush1.msra.mxu0 0.0
  %3181 = vmatprep.subr.mxu0 0.0
  %3182 = vmatpush1.msra.mxu0 0.0
  %3183 = vmatprep.subr.mxu0 0.0
  %3184 = vmatpush1.msra.mxu0 0.0
  %3185 = vmatprep.subr.mxu0 0.0
  %3186 = vmatpush1.msra.mxu0 0.0
  %3187 = vmatprep.subr.mxu0 0.0
  %3188 = vmatpush1.msra.mxu0 0.0
  %3189 = vmatprep.subr.mxu0 0.0
  %3190 = vmatpush1.msra.mxu0 0.0
  %3191 = vmatprep.subr.mxu0 0.0
  %3192 = vmatpush1.msra.mxu0 0.0
  %3193 = vmatprep.mubr.f32.mxu0 0.0
  %3194 = vmatmul.mubr.f32.gmra.mrb[0].mxu0 %v3127
  %v3195 = vpop.f32.mrb[0].mxu0
  %v3196 = vadd.f32 %v3124, %v3195
  %v3197 = vpop.f32.mrb[0].mxu0
  %v3198 = vadd.f32 %v3124, %v3197
  %3199 = vdwg.mxu0
  %3200 = vmatprep.subr.mxu0 %v3116
  %3201 = vmatpush1.msra.mxu0 %v3115
  %3202 = vmatprep.subr.mxu0 0.0
  %3203 = vmatpush1.msra.mxu0 0.0
  %3204 = vmatprep.subr.mxu0 0.0
  %3205 = vmatpush1.msra.mxu0 0.0
  %3206 = vmatprep.subr.mxu0 0.0
  %3207 = vmatpush1.msra.mxu0 0.0
  %3208 = vmatprep.subr.mxu0 0.0
  %3209 = vmatpush1.msra.mxu0 0.0
  %3210 = vmatprep.subr.mxu0 0.0
  %3211 = vmatpush1.msra.mxu0 0.0
  %3212 = vmatprep.subr.mxu0 0.0
  %3213 = vmatpush1.msra.mxu0 0.0
  %3214 = vmatprep.subr.mxu0 0.0
  %3215 = vmatpush1.msra.mxu0 0.0
  %3216 = vmatprep.subr.mxu0 0.0
  %3217 = vmatpush1.msra.mxu0 0.0
  %3218 = vmatprep.subr.mxu0 0.0
  %3219 = vmatpush1.msra.mxu0 0.0
  %3220 = vmatprep.subr.mxu0 0.0
  %3221 = vmatpush1.msra.mxu0 0.0
  %3222 = vmatprep.subr.mxu0 0.0
  %3223 = vmatpush1.msra.mxu0 0.0
  %3224 = vmatprep.subr.mxu0 0.0
  %3225 = vmatpush1.msra.mxu0 0.0
  %3226 = vmatprep.subr.mxu0 0.0
  %3227 = vmatpush1.msra.mxu0 0.0
  %3228 = vmatprep.subr.mxu0 0.0
  %3229 = vmatpush1.msra.mxu0 0.0
  %3230 = vmatprep.subr.mxu0 0.0
  %3231 = vmatpush1.msra.mxu0 0.0
  %3232 = vmatprep.subr.mxu0 0.0
  %3233 = vmatpush1.msra.mxu0 0.0
  %3234 = vmatprep.subr.mxu0 0.0
  %3235 = vmatpush1.msra.mxu0 0.0
  %3236 = vmatprep.subr.mxu0 0.0
  %3237 = vmatpush1.msra.mxu0 0.0
  %3238 = vmatprep.subr.mxu0 0.0
  %3239 = vmatpush1.msra.mxu0 0.0
  %3240 = vmatprep.subr.mxu0 0.0
  %3241 = vmatpush1.msra.mxu0 0.0
  %3242 = vmatprep.subr.mxu0 0.0
  %3243 = vmatpush1.msra.mxu0 0.0
  %3244 = vmatprep.subr.mxu0 0.0
  %3245 = vmatpush1.msra.mxu0 0.0
  %3246 = vmatprep.subr.mxu0 0.0
  %3247 = vmatpush1.msra.mxu0 0.0
  %3248 = vmatprep.subr.mxu0 0.0
  %3249 = vmatpush1.msra.mxu0 0.0
  %3250 = vmatprep.subr.mxu0 0.0
  %3251 = vmatpush1.msra.mxu0 0.0
  %3252 = vmatprep.subr.mxu0 0.0
  %3253 = vmatpush1.msra.mxu0 0.0
  %3254 = vmatprep.subr.mxu0 0.0
  %3255 = vmatpush1.msra.mxu0 0.0
  %3256 = vmatprep.subr.mxu0 0.0
  %3257 = vmatpush1.msra.mxu0 0.0
  %3258 = vmatprep.subr.mxu0 0.0
  %3259 = vmatpush1.msra.mxu0 0.0
  %3260 = vmatprep.subr.mxu0 0.0
  %3261 = vmatpush1.msra.mxu0 0.0
  %3262 = vmatprep.subr.mxu0 0.0
  %3263 = vmatpush1.msra.mxu0 0.0
  %3264 = vmatprep.mubr.f32.mxu0 0.0
  %3265 = vmatmul.mubr.f32.gmra.mrb[0].mxu0 %v3127
  %v3266 = vpop.f32.mrb[0].mxu0
  %v3267 = vadd.f32 %v3124, %v3266
  %v3268 = vpop.f32.mrb[0].mxu0
  %v3269 = vadd.f32 %v3124, %v3268
  %3270 = vdwg.mxu0
  %v3271 = vadd.f32 %v3196, %v20
  %v3272 = vadd.f32 %v3198, %v21
  %v3273 = vadd.f32 %v3267, %v22
  %v3274 = vadd.f32 %v3269, %v23
  %3275 = vst [vmem:[%s5] sm:$0xff] %v3271
  %3276 = vst [vmem:[%s5 + $0x8] sm:$0xff] %v3272
  %3277 = vst [vmem:[%s5 + $0x10] sm:$0xff] %v3273
  %3278 = vst [vmem:[%s5 + $0x18] sm:$0xff] %v3274
  // Predicated region
  $region22: #{moga_forward.1} parent=0 // pred_check
    _
  $region23: #{moga_forward.1} parent=0 // pred_check_branch
    %3280 = sbr.rel (0) target = $region25
  $region24: #{moga_forward.1} parent=0 // pred_region
    _
  $region25: #{moga_forward.1} parent=0 // pred_fallthru
    _
  // Predicated region
  $region26: #{moga_forward.1} parent=0 // pred_check
    _
  $region27: #{moga_forward.1} parent=0 // pred_check_branch
    %3282 = sbr.rel (0) target = $region29
  $region28: #{moga_forward.1} parent=0 // pred_region
    _
  $region29: #{moga_forward.1} parent=0 // pred_fallthru
    _

</llo_original>
